<compile_context>
chip_gen: v7x
topology: tpu7x:2x2x1
jax: 0.10.0
libtpu: 0.0.40
codegen_flags: <defaults>
</compile_context>

<pallas_src>
import functools
import math

import jax
import jax.numpy as jnp
from jax.experimental import pallas as pl
from jax.experimental.pallas import tpu as pltpu

# ----------------------------- model dimensions ------------------------------
# (scaled-down versions of hidden_dim=5002, latent_dim=512, nhead=8, layers=4)
B = 2            # batch
S = 1            # seq length (model's decode() squeeze(1) implies S == 1)
HIDDEN = 64      # hidden_dim  (input/output feature dim)
LATENT = 128     # latent_dim  (transformer d_model)
COND = 4         # condition_dim
HEADS = 4        # num attention heads (folded away on the S == 1 path)
FF = 256         # dim_feedforward of nn.TransformerEncoderLayer
LAYERS = 2       # num transformer layers (encoder and decoder each)
LN_EPS = 1e-5


def _round_up(x, m):
    return ((x + m - 1) // m) * m


HIDDEN_PAD = _round_up(HIDDEN, 128)   # lane-dense padded output width


# ------------------------------ fused Pallas kernel ---------------------------
def _vae_fused_kernel(
    # data
    x_ref, c_ref, eps_ref, pe_ref,
    # collapsed input MLP (fc1*fc2*fc3)
    win_ref, bin_ref,
    # stacked transformer layers (encoder 0..L-1, decoder L..2L-1), attention
    # already folded to W_vo = W_v @ W_o
    wvo_ref, bvo_ref, g1_ref, be1_ref,
    wf1_ref, bf1_ref, wf2_ref, bf2_ref, g2_ref, be2_ref,
    # fused mu|logvar head (h-part) + concatenated condition weights
    wml_ref, bml_ref, wc_ref,
    # collapsed fc_latent_to_input*fc_decoder_input (z-part)
    wzd_ref, bzd_ref,
    # collapsed output MLP (fc1_out*fc2_out*fc3_out padded to HIDDEN_PAD lanes)
    wout_ref, bout_ref,
    # outputs
    recon_ref, mu_ref, logvar_ref,
    *, layers, latent, cond,
):
    def dot(a, w):
        # Weights are stored bf16 (HBM/VMEM savings); upcast at the MXU boundary
        # so activations / accumulation stay f32.
        return jnp.dot(a, w.astype(jnp.float32),
                       preferred_element_type=jnp.float32)

    def layer_norm(x, g, beta):
        # var = E[x^2] - E[x]^2: the two cross-lane reductions are independent.
        mean = jnp.mean(x, axis=-1, keepdims=True)
        mean_sq = jnp.mean(x * x, axis=-1, keepdims=True)
        var = mean_sq - mean * mean
        return (x - mean) * jax.lax.rsqrt(var + LN_EPS) * g + beta

    def transformer_layer(x, li):
        # Post-norm nn.TransformerEncoderLayer at inference (dropout = identity):
        #   x = norm1(x + attn(x)); x = norm2(x + lin2(relu(lin1(x))))
        # S == 1 => attn(x) == x @ (W_v @ W_o) + (b_v @ W_o + b_o)  (pre-folded).
        attn = dot(x, wvo_ref[li]) + bvo_ref[li]
        x = layer_norm(x + attn, g1_ref[li], be1_ref[li])
        ff = jnp.maximum(dot(x, wf1_ref[li]) + bf1_ref[li], 0.0)   # ReLU
        ff = dot(ff, wf2_ref[li]) + bf2_ref[li]
        return layer_norm(x + ff, g2_ref[li], be2_ref[li])

    x = x_ref[...]                     # (rows, HIDDEN)
    cexp = c_ref[...]                  # (rows, COND)
    pe = pe_ref[...]                   # (rows, LATENT)

    # Condition contributions for (mu | logvar | decoder-input) computed ONCE,
    # off the critical chain, as unrolled VPU broadcast-MACs (K == COND == 4).
    wc = wc_ref[...]                   # (COND, 3*LATENT) f32
    cond_acc = cexp[:, 0:1] * wc[0:1, :]
    for j in range(1, cond):
        cond_acc = cond_acc + cexp[:, j:j + 1] * wc[j:j + 1, :]

    # ----- encode -----
    h = dot(x, win_ref[...]) + bin_ref[...] + pe          # collapsed input MLP + PE
    for li in range(layers):
        h = transformer_layer(h, li)

    # fused mu | logvar head: one (rows,128) x (128,256) matmul
    ml = dot(h, wml_ref[...]) + bml_ref[...]
    mu = ml[:, :latent] + cond_acc[:, :latent]
    logvar = ml[:, latent:2 * latent] + cond_acc[:, latent:2 * latent]
    mu_ref[...] = mu
    logvar_ref[...] = logvar

    # ----- reparameterize -----
    z = mu + eps_ref[...] * jnp.exp(0.5 * logvar)

    # ----- decode -----
    d = (dot(z, wzd_ref[...]) + bzd_ref[...]
         + cond_acc[:, 2 * latent:3 * latent] + pe)       # collapsed z-proj + PE
    for li in range(layers):
        d = transformer_layer(d, layers + li)

    # collapsed output MLP; HIDDEN padded to 128 lanes -> unmasked lane-dense vst
    recon_ref[...] = dot(d, wout_ref[...]) + bout_ref[...]


# ----------------------------- parameters / glue ------------------------------
def _dense(key, din, dout, scale=0.02):
    kw, kb = jax.random.split(key)
    w = jax.random.normal(kw, (din, dout), jnp.float32) * scale
    b = jax.random.normal(kb, (1, dout), jnp.float32) * scale
    return w, b


def positional_encoding(max_len, d_model):
    pos = jnp.arange(max_len, dtype=jnp.float32)[:, None]
    div = jnp.exp(jnp.arange(0, d_model, 2, dtype=jnp.float32)
                  * (-math.log(10000.0) / d_model))
    pe = jnp.zeros((max_len, d_model), jnp.float32)
    pe = pe.at[:, 0::2].set(jnp.sin(pos * div))
    pe = pe.at[:, 1::2].set(jnp.cos(pos * div))
    return pe


def init_vae_params(key):
    """Create the original module's parameters, then fold them host-side."""
    ks = jax.random.split(key, 11)
    # --- original module parameters (f32) ---
    w1i, b1i = _dense(ks[0], HIDDEN, 4 * LATENT)          # fc1_input_to_latent
    w2i, b2i = _dense(ks[1], 4 * LATENT, 2 * LATENT)      # fc2_input_to_latent
    w3i, b3i = _dense(ks[2], 2 * LATENT, LATENT)          # fc3_input_to_latent
    w_mu, b_mu = _dense(ks[3], LATENT + COND, LATENT)     # fc_mu
    w_lv, b_lv = _dense(ks[4], LATENT + COND, LATENT)     # fc_logvar
    w_zi, b_zi = _dense(ks[5], LATENT + COND, LATENT)     # fc_latent_to_input
    w_di, b_di = _dense(ks[6], LATENT, LATENT)            # fc_decoder_input
    w1o, b1o = _dense(ks[7], LATENT, 2 * LATENT)          # fc1_output
    w2o, b2o = _dense(ks[8], 2 * LATENT, 4 * LATENT)      # fc2_output
    w3o, b3o = _dense(ks[9], 4 * LATENT, HIDDEN)          # fc3_output

    # --- exact host-side algebraic folds (no activations between these) ---
    w_in = w1i @ w2i @ w3i                                 # (HIDDEN, LATENT)
    b_in = (b1i @ w2i + b2i) @ w3i + b3i

    w3o_p = jnp.pad(w3o, ((0, 0), (0, HIDDEN_PAD - HIDDEN)))
    b3o_p = jnp.pad(b3o, ((0, 0), (0, HIDDEN_PAD - HIDDEN)))
    w_out = w1o @ w2o @ w3o_p                              # (LATENT, HIDDEN_PAD)
    b_out = (b1o @ w2o + b2o) @ w3o_p + b3o_p

    wzi_h, wzi_c = w_zi[:LATENT], w_zi[LATENT:]
    w_zd = wzi_h @ w_di                                    # (LATENT, LATENT)
    wc_zd = wzi_c @ w_di                                   # (COND, LATENT)
    b_zd = b_zi @ w_di + b_di

    w_ml = jnp.concatenate([w_mu[:LATENT], w_lv[:LATENT]], axis=1)  # (L, 2L)
    b_ml = jnp.concatenate([b_mu, b_lv], axis=1)
    wc_all = jnp.concatenate([w_mu[LATENT:], w_lv[LATENT:], wc_zd], axis=1)

    # --- transformer layers (encoder 0..L-1, decoder L..2L-1), attention fold ---
    layer_keys = jax.random.split(ks[10], 2 * LAYERS)
    stacks = [[] for _ in range(10)]
    for k in layer_keys:
        lk = jax.random.split(k, 4)
        w_qkv, b_qkv = _dense(lk[0], LATENT, 3 * LATENT)   # in_proj (q|k|v)
        w_o, b_o = _dense(lk[1], LATENT, LATENT)           # out_proj
        w_f1, b_f1 = _dense(lk[2], LATENT, FF)             # linear1
        w_f2, b_f2 = _dense(lk[3], FF, LATENT)             # linear2
        w_v = w_qkv[:, 2 * LATENT:]
        b_v = b_qkv[:, 2 * LATENT:]
        w_vo = w_v @ w_o                                   # S==1 attention fold
        b_vo = b_v @ w_o + b_o
        ones = jnp.ones((1, LATENT), jnp.float32)          # LayerNorm defaults
        zeros = jnp.zeros((1, LATENT), jnp.float32)
        for i, a in enumerate((w_vo, b_vo, ones, zeros,
                               w_f1, b_f1, w_f2, b_f2, ones, zeros)):
            stacks[i].append(a)
    wvo, bvo, g1, be1, wf1, bf1, wf2, bf2, g2, be2 = [jnp.stack(s) for s in stacks]

    bf = lambda a: a.astype(jnp.bfloat16)                  # weight matrices only
    flat = (bf(w_in), b_in,
            bf(wvo), bvo, g1, be1, bf(wf1), bf1, bf(wf2), bf2, g2, be2,
            bf(w_ml), b_ml, wc_all,
            bf(w_zd), b_zd,
            bf(w_out), b_out)
    return {"flat": flat, "pe": positional_encoding(64, LATENT)}


def vae_forward(params, x, c, eps):
    """x: (B, S, HIDDEN), c: (B, COND), eps: (B, S, LATENT) -> (recon, mu, logvar)."""
    b, s, hid = x.shape
    assert s == 1, "kernel specialized to the module's seq_len == 1 forward"
    rows = b * s
    # Pad rows to a full sublane group (8): the path is strictly row-wise, so
    # zero pad rows are inert and sliced off afterwards.  For throughput, batch
    # requests so rows grows toward 128+ (same weight DMA, same matmul count).
    rows_p = max(8, _round_up(rows, 8))
    pad = rows_p - rows

    x2 = x.reshape(rows, hid)
    c2 = jnp.repeat(c, s, axis=0)                       # (rows, COND)
    eps2 = eps.reshape(rows, LATENT)
    pe2 = jnp.tile(params["pe"][:s], (b, 1))            # (rows, LATENT)
    if pad:
        x2 = jnp.pad(x2, ((0, pad), (0, 0)))
        c2 = jnp.pad(c2, ((0, pad), (0, 0)))
        eps2 = jnp.pad(eps2, ((0, pad), (0, 0)))
        pe2 = jnp.pad(pe2, ((0, pad), (0, 0)))

    kernel = functools.partial(_vae_fused_kernel,
                               layers=LAYERS, latent=LATENT, cond=COND)

    recon_p, mu_p, logvar_p = pl.pallas_call(
        kernel,
        out_shape=(
            jax.ShapeDtypeStruct((rows_p, HIDDEN_PAD), jnp.float32),
            jax.ShapeDtypeStruct((rows_p, LATENT), jnp.float32),
            jax.ShapeDtypeStruct((rows_p, LATENT), jnp.float32),
        ),
        compiler_params=pltpu.CompilerParams(
            vmem_limit_bytes=32 * 1024 * 1024),
    )(x2, c2, eps2, pe2, *params["flat"])

    mu = mu_p[:rows].reshape(b, s, LATENT)
    logvar = logvar_p[:rows].reshape(b, s, LATENT)
    recon = recon_p[:rows, :hid].reshape(b, s, hid)[:, 0, :]   # .squeeze(1)
    return recon, mu, logvar


# ------------------------------------ main ------------------------------------
if __name__ == "__main__":
    key = jax.random.PRNGKey(0)
    kp, kx, kc, ke = jax.random.split(key, 4)

    params = init_vae_params(kp)
    x = jax.random.normal(kx, (B, S, HIDDEN), jnp.float32)
    c = jax.random.normal(kc, (B, COND), jnp.float32)
    eps = jax.random.normal(ke, (B, S, LATENT), jnp.float32)

    fwd = jax.jit(vae_forward)
    recon, mu, logvar = fwd(params, x, c, eps)
    jax.block_until_ready((recon, mu, logvar))

    assert recon.shape == (B, HIDDEN)
    assert mu.shape == (B, S, LATENT)
    assert logvar.shape == (B, S, LATENT)
    assert jnp.all(jnp.isfinite(recon)) and jnp.all(jnp.isfinite(mu))
    assert jnp.all(jnp.isfinite(logvar))
    print("KERNEL_OK")
</pallas_src>

<mosaic_0001>
module attributes {stable_mosaic.version = 11 : i64} {
  func.func @_vae_fused_kernel(%arg0: memref<8x64xf32, #tpu.memory_space<vmem>>, %arg1: memref<8x4xf32, #tpu.memory_space<vmem>>, %arg2: memref<8x128xf32, #tpu.memory_space<vmem>>, %arg3: memref<8x128xf32, #tpu.memory_space<vmem>>, %arg4: memref<64x128xbf16, #tpu.memory_space<vmem>>, %arg5: memref<1x128xf32, #tpu.memory_space<vmem>>, %arg6: memref<4x128x128xbf16, #tpu.memory_space<vmem>>, %arg7: memref<4x1x128xf32, #tpu.memory_space<vmem>>, %arg8: memref<4x1x128xf32, #tpu.memory_space<vmem>>, %arg9: memref<4x1x128xf32, #tpu.memory_space<vmem>>, %arg10: memref<4x128x256xbf16, #tpu.memory_space<vmem>>, %arg11: memref<4x1x256xf32, #tpu.memory_space<vmem>>, %arg12: memref<4x256x128xbf16, #tpu.memory_space<vmem>>, %arg13: memref<4x1x128xf32, #tpu.memory_space<vmem>>, %arg14: memref<4x1x128xf32, #tpu.memory_space<vmem>>, %arg15: memref<4x1x128xf32, #tpu.memory_space<vmem>>, %arg16: memref<128x256xbf16, #tpu.memory_space<vmem>>, %arg17: memref<1x256xf32, #tpu.memory_space<vmem>>, %arg18: memref<4x384xf32, #tpu.memory_space<vmem>>, %arg19: memref<128x128xbf16, #tpu.memory_space<vmem>>, %arg20: memref<1x128xf32, #tpu.memory_space<vmem>>, %arg21: memref<128x128xbf16, #tpu.memory_space<vmem>>, %arg22: memref<1x128xf32, #tpu.memory_space<vmem>>, %arg23: memref<8x128xf32, #tpu.memory_space<vmem>>, %arg24: memref<8x128xf32, #tpu.memory_space<vmem>>, %arg25: memref<8x128xf32, #tpu.memory_space<vmem>>) attributes {dimension_semantics = [], scalar_prefetch = 0 : i64, scratch_operands = 0 : i64, tpu.core_type = #tpu.core_type<tc>} {
    %c0 = arith.constant 0 : index
    %c0_0 = arith.constant 0 : index
    %0 = vector.load %arg0[%c0, %c0_0] : memref<8x64xf32, #tpu.memory_space<vmem>>, vector<8x64xf32>
    %c0_1 = arith.constant 0 : index
    %c0_2 = arith.constant 0 : index
    %1 = vector.load %arg1[%c0_1, %c0_2] : memref<8x4xf32, #tpu.memory_space<vmem>>, vector<8x4xf32>
    %c0_3 = arith.constant 0 : index
    %c0_4 = arith.constant 0 : index
    %2 = vector.load %arg3[%c0_3, %c0_4] : memref<8x128xf32, #tpu.memory_space<vmem>>, vector<8x128xf32>
    %c0_5 = arith.constant 0 : index
    %c0_6 = arith.constant 0 : index
    %3 = vector.load %arg18[%c0_5, %c0_6] : memref<4x384xf32, #tpu.memory_space<vmem>>, vector<4x384xf32>
    %4 = vector.extract_strided_slice %1 {offsets = [0, 0], sizes = [8, 1], strides = [1, 1]} : vector<8x4xf32> to vector<8x1xf32>
    %5 = vector.extract_strided_slice %3 {offsets = [0, 0], sizes = [1, 384], strides = [1, 1]} : vector<4x384xf32> to vector<1x384xf32>
    %6 = vector.broadcast %4 : vector<8x1xf32> to vector<8x384xf32>
    %7 = vector.broadcast %5 : vector<1x384xf32> to vector<8x384xf32>
    %8 = arith.mulf %6, %7 : vector<8x384xf32>
    %9 = vector.extract_strided_slice %1 {offsets = [0, 1], sizes = [8, 1], strides = [1, 1]} : vector<8x4xf32> to vector<8x1xf32>
    %10 = vector.extract_strided_slice %3 {offsets = [1, 0], sizes = [1, 384], strides = [1, 1]} : vector<4x384xf32> to vector<1x384xf32>
    %11 = vector.broadcast %9 : vector<8x1xf32> to vector<8x384xf32>
    %12 = vector.broadcast %10 : vector<1x384xf32> to vector<8x384xf32>
    %13 = arith.mulf %11, %12 : vector<8x384xf32>
    %14 = arith.addf %8, %13 : vector<8x384xf32>
    %15 = vector.extract_strided_slice %1 {offsets = [0, 2], sizes = [8, 1], strides = [1, 1]} : vector<8x4xf32> to vector<8x1xf32>
    %16 = vector.extract_strided_slice %3 {offsets = [2, 0], sizes = [1, 384], strides = [1, 1]} : vector<4x384xf32> to vector<1x384xf32>
    %17 = vector.broadcast %15 : vector<8x1xf32> to vector<8x384xf32>
    %18 = vector.broadcast %16 : vector<1x384xf32> to vector<8x384xf32>
    %19 = arith.mulf %17, %18 : vector<8x384xf32>
    %20 = arith.addf %14, %19 : vector<8x384xf32>
    %21 = vector.extract_strided_slice %1 {offsets = [0, 3], sizes = [8, 1], strides = [1, 1]} : vector<8x4xf32> to vector<8x1xf32>
    %22 = vector.extract_strided_slice %3 {offsets = [3, 0], sizes = [1, 384], strides = [1, 1]} : vector<4x384xf32> to vector<1x384xf32>
    %23 = vector.broadcast %21 : vector<8x1xf32> to vector<8x384xf32>
    %24 = vector.broadcast %22 : vector<1x384xf32> to vector<8x384xf32>
    %25 = arith.mulf %23, %24 : vector<8x384xf32>
    %26 = arith.addf %20, %25 : vector<8x384xf32>
    %c0_7 = arith.constant 0 : index
    %c0_8 = arith.constant 0 : index
    %27 = vector.load %arg4[%c0_7, %c0_8] : memref<64x128xbf16, #tpu.memory_space<vmem>>, vector<64x128xbf16>
    %28 = arith.extf %27 : vector<64x128xbf16> to vector<64x128xf32>
    %cst = arith.constant dense<0.000000e+00> : vector<8x128xf32>
    %29 = tpu.matmul %0, %28, %cst {dimension_numbers = #tpu.dot_dimension_numbers<[1], [0], [0], [1], [0, 0, 1, 1], [], []>} : vector<8x64xf32>, vector<64x128xf32>, vector<8x128xf32> -> vector<8x128xf32>
    %c0_9 = arith.constant 0 : index
    %c0_10 = arith.constant 0 : index
    %30 = vector.load %arg5[%c0_9, %c0_10] : memref<1x128xf32, #tpu.memory_space<vmem>>, vector<1x128xf32>
    %31 = vector.broadcast %30 : vector<1x128xf32> to vector<8x128xf32>
    %32 = arith.addf %29, %31 : vector<8x128xf32>
    %33 = arith.addf %32, %2 : vector<8x128xf32>
    %c0_11 = arith.constant 0 : index
    %c0_12 = arith.constant 0 : index
    %c0_13 = arith.constant 0 : index
    %34 = vector.load %arg6[%c0_11, %c0_12, %c0_13] : memref<4x128x128xbf16, #tpu.memory_space<vmem>>, vector<1x128x128xbf16>
    %35 = vector.shape_cast %34 : vector<1x128x128xbf16> to vector<128x128xbf16>
    %36 = arith.extf %35 : vector<128x128xbf16> to vector<128x128xf32>
    %cst_14 = arith.constant dense<0.000000e+00> : vector<8x128xf32>
    %37 = tpu.matmul %33, %36, %cst_14 {dimension_numbers = #tpu.dot_dimension_numbers<[1], [0], [0], [1], [0, 0, 1, 1], [], []>} : vector<8x128xf32>, vector<128x128xf32>, vector<8x128xf32> -> vector<8x128xf32>
    %c0_15 = arith.constant 0 : index
    %c0_16 = arith.constant 0 : index
    %c0_17 = arith.constant 0 : index
    %38 = vector.load %arg7[%c0_15, %c0_16, %c0_17] : memref<4x1x128xf32, #tpu.memory_space<vmem>>, vector<1x1x128xf32>
    %39 = vector.shape_cast %38 : vector<1x1x128xf32> to vector<1x128xf32>
    %40 = vector.broadcast %39 : vector<1x128xf32> to vector<8x128xf32>
    %41 = arith.addf %37, %40 : vector<8x128xf32>
    %42 = arith.addf %33, %41 : vector<8x128xf32>
    %c0_18 = arith.constant 0 : index
    %c0_19 = arith.constant 0 : index
    %c0_20 = arith.constant 0 : index
    %43 = vector.load %arg8[%c0_18, %c0_19, %c0_20] : memref<4x1x128xf32, #tpu.memory_space<vmem>>, vector<1x1x128xf32>
    %44 = vector.shape_cast %43 : vector<1x1x128xf32> to vector<1x128xf32>
    %c0_21 = arith.constant 0 : index
    %c0_22 = arith.constant 0 : index
    %c0_23 = arith.constant 0 : index
    %45 = vector.load %arg9[%c0_21, %c0_22, %c0_23] : memref<4x1x128xf32, #tpu.memory_space<vmem>>, vector<1x1x128xf32>
    %46 = vector.shape_cast %45 : vector<1x1x128xf32> to vector<1x128xf32>
    %cst_24 = arith.constant dense<0.000000e+00> : vector<8xf32>
    %47 = vector.multi_reduction <add>, %42, %cst_24 [1] : vector<8x128xf32> to vector<8xf32>
    %48 = vector.shape_cast %47 : vector<8xf32> to vector<8x1xf32>
    %cst_25 = arith.constant 1.280000e+02 : f32
    %49 = vector.broadcast %cst_25 : f32 to vector<8x1xf32>
    %50 = arith.divf %48, %49 : vector<8x1xf32>
    %51 = arith.mulf %42, %42 : vector<8x128xf32>
    %cst_26 = arith.constant dense<0.000000e+00> : vector<8xf32>
    %52 = vector.multi_reduction <add>, %51, %cst_26 [1] : vector<8x128xf32> to vector<8xf32>
    %53 = vector.shape_cast %52 : vector<8xf32> to vector<8x1xf32>
    %cst_27 = arith.constant 1.280000e+02 : f32
    %54 = vector.broadcast %cst_27 : f32 to vector<8x1xf32>
    %55 = arith.divf %53, %54 : vector<8x1xf32>
    %56 = arith.mulf %50, %50 : vector<8x1xf32>
    %57 = arith.subf %55, %56 : vector<8x1xf32>
    %58 = vector.broadcast %50 : vector<8x1xf32> to vector<8x128xf32>
    %59 = arith.subf %42, %58 : vector<8x128xf32>
    %cst_28 = arith.constant 9.99999974E-6 : f32
    %60 = vector.broadcast %cst_28 : f32 to vector<8x1xf32>
    %61 = arith.addf %57, %60 : vector<8x1xf32>
    %62 = math.rsqrt %61 : vector<8x1xf32>
    %63 = vector.broadcast %62 : vector<8x1xf32> to vector<8x128xf32>
    %64 = arith.mulf %59, %63 : vector<8x128xf32>
    %65 = vector.broadcast %44 : vector<1x128xf32> to vector<8x128xf32>
    %66 = arith.mulf %64, %65 : vector<8x128xf32>
    %67 = vector.broadcast %46 : vector<1x128xf32> to vector<8x128xf32>
    %68 = arith.addf %66, %67 : vector<8x128xf32>
    %c0_29 = arith.constant 0 : index
    %c0_30 = arith.constant 0 : index
    %c0_31 = arith.constant 0 : index
    %69 = vector.load %arg10[%c0_29, %c0_30, %c0_31] : memref<4x128x256xbf16, #tpu.memory_space<vmem>>, vector<1x128x256xbf16>
    %70 = vector.shape_cast %69 : vector<1x128x256xbf16> to vector<128x256xbf16>
    %71 = arith.extf %70 : vector<128x256xbf16> to vector<128x256xf32>
    %cst_32 = arith.constant dense<0.000000e+00> : vector<8x256xf32>
    %72 = tpu.matmul %68, %71, %cst_32 {dimension_numbers = #tpu.dot_dimension_numbers<[1], [0], [0], [1], [0, 0, 1, 1], [], []>} : vector<8x128xf32>, vector<128x256xf32>, vector<8x256xf32> -> vector<8x256xf32>
    %c0_33 = arith.constant 0 : index
    %c0_34 = arith.constant 0 : index
    %c0_35 = arith.constant 0 : index
    %73 = vector.load %arg11[%c0_33, %c0_34, %c0_35] : memref<4x1x256xf32, #tpu.memory_space<vmem>>, vector<1x1x256xf32>
    %74 = vector.shape_cast %73 : vector<1x1x256xf32> to vector<1x256xf32>
    %75 = vector.broadcast %74 : vector<1x256xf32> to vector<8x256xf32>
    %76 = arith.addf %72, %75 : vector<8x256xf32>
    %cst_36 = arith.constant 0.000000e+00 : f32
    %77 = vector.broadcast %cst_36 : f32 to vector<8x256xf32>
    %78 = arith.maximumf %76, %77 : vector<8x256xf32>
    %c0_37 = arith.constant 0 : index
    %c0_38 = arith.constant 0 : index
    %c0_39 = arith.constant 0 : index
    %79 = vector.load %arg12[%c0_37, %c0_38, %c0_39] : memref<4x256x128xbf16, #tpu.memory_space<vmem>>, vector<1x256x128xbf16>
    %80 = vector.shape_cast %79 : vector<1x256x128xbf16> to vector<256x128xbf16>
    %81 = arith.extf %80 : vector<256x128xbf16> to vector<256x128xf32>
    %cst_40 = arith.constant dense<0.000000e+00> : vector<8x128xf32>
    %82 = tpu.matmul %78, %81, %cst_40 {dimension_numbers = #tpu.dot_dimension_numbers<[1], [0], [0], [1], [0, 0, 1, 1], [], []>} : vector<8x256xf32>, vector<256x128xf32>, vector<8x128xf32> -> vector<8x128xf32>
    %c0_41 = arith.constant 0 : index
    %c0_42 = arith.constant 0 : index
    %c0_43 = arith.constant 0 : index
    %83 = vector.load %arg13[%c0_41, %c0_42, %c0_43] : memref<4x1x128xf32, #tpu.memory_space<vmem>>, vector<1x1x128xf32>
    %84 = vector.shape_cast %83 : vector<1x1x128xf32> to vector<1x128xf32>
    %85 = vector.broadcast %84 : vector<1x128xf32> to vector<8x128xf32>
    %86 = arith.addf %82, %85 : vector<8x128xf32>
    %87 = arith.addf %68, %86 : vector<8x128xf32>
    %c0_44 = arith.constant 0 : index
    %c0_45 = arith.constant 0 : index
    %c0_46 = arith.constant 0 : index
    %88 = vector.load %arg14[%c0_44, %c0_45, %c0_46] : memref<4x1x128xf32, #tpu.memory_space<vmem>>, vector<1x1x128xf32>
    %89 = vector.shape_cast %88 : vector<1x1x128xf32> to vector<1x128xf32>
    %c0_47 = arith.constant 0 : index
    %c0_48 = arith.constant 0 : index
    %c0_49 = arith.constant 0 : index
    %90 = vector.load %arg15[%c0_47, %c0_48, %c0_49] : memref<4x1x128xf32, #tpu.memory_space<vmem>>, vector<1x1x128xf32>
    %91 = vector.shape_cast %90 : vector<1x1x128xf32> to vector<1x128xf32>
    %cst_50 = arith.constant dense<0.000000e+00> : vector<8xf32>
    %92 = vector.multi_reduction <add>, %87, %cst_50 [1] : vector<8x128xf32> to vector<8xf32>
    %93 = vector.shape_cast %92 : vector<8xf32> to vector<8x1xf32>
    %cst_51 = arith.constant 1.280000e+02 : f32
    %94 = vector.broadcast %cst_51 : f32 to vector<8x1xf32>
    %95 = arith.divf %93, %94 : vector<8x1xf32>
    %96 = arith.mulf %87, %87 : vector<8x128xf32>
    %cst_52 = arith.constant dense<0.000000e+00> : vector<8xf32>
    %97 = vector.multi_reduction <add>, %96, %cst_52 [1] : vector<8x128xf32> to vector<8xf32>
    %98 = vector.shape_cast %97 : vector<8xf32> to vector<8x1xf32>
    %cst_53 = arith.constant 1.280000e+02 : f32
    %99 = vector.broadcast %cst_53 : f32 to vector<8x1xf32>
    %100 = arith.divf %98, %99 : vector<8x1xf32>
    %101 = arith.mulf %95, %95 : vector<8x1xf32>
    %102 = arith.subf %100, %101 : vector<8x1xf32>
    %103 = vector.broadcast %95 : vector<8x1xf32> to vector<8x128xf32>
    %104 = arith.subf %87, %103 : vector<8x128xf32>
    %cst_54 = arith.constant 9.99999974E-6 : f32
    %105 = vector.broadcast %cst_54 : f32 to vector<8x1xf32>
    %106 = arith.addf %102, %105 : vector<8x1xf32>
    %107 = math.rsqrt %106 : vector<8x1xf32>
    %108 = vector.broadcast %107 : vector<8x1xf32> to vector<8x128xf32>
    %109 = arith.mulf %104, %108 : vector<8x128xf32>
    %110 = vector.broadcast %89 : vector<1x128xf32> to vector<8x128xf32>
    %111 = arith.mulf %109, %110 : vector<8x128xf32>
    %112 = vector.broadcast %91 : vector<1x128xf32> to vector<8x128xf32>
    %113 = arith.addf %111, %112 : vector<8x128xf32>
    %c1 = arith.constant 1 : index
    %c0_55 = arith.constant 0 : index
    %c0_56 = arith.constant 0 : index
    %114 = vector.load %arg6[%c1, %c0_55, %c0_56] : memref<4x128x128xbf16, #tpu.memory_space<vmem>>, vector<1x128x128xbf16>
    %115 = vector.shape_cast %114 : vector<1x128x128xbf16> to vector<128x128xbf16>
    %116 = arith.extf %115 : vector<128x128xbf16> to vector<128x128xf32>
    %cst_57 = arith.constant dense<0.000000e+00> : vector<8x128xf32>
    %117 = tpu.matmul %113, %116, %cst_57 {dimension_numbers = #tpu.dot_dimension_numbers<[1], [0], [0], [1], [0, 0, 1, 1], [], []>} : vector<8x128xf32>, vector<128x128xf32>, vector<8x128xf32> -> vector<8x128xf32>
    %c1_58 = arith.constant 1 : index
    %c0_59 = arith.constant 0 : index
    %c0_60 = arith.constant 0 : index
    %118 = vector.load %arg7[%c1_58, %c0_59, %c0_60] : memref<4x1x128xf32, #tpu.memory_space<vmem>>, vector<1x1x128xf32>
    %119 = vector.shape_cast %118 : vector<1x1x128xf32> to vector<1x128xf32>
    %120 = vector.broadcast %119 : vector<1x128xf32> to vector<8x128xf32>
    %121 = arith.addf %117, %120 : vector<8x128xf32>
    %122 = arith.addf %113, %121 : vector<8x128xf32>
    %c1_61 = arith.constant 1 : index
    %c0_62 = arith.constant 0 : index
    %c0_63 = arith.constant 0 : index
    %123 = vector.load %arg8[%c1_61, %c0_62, %c0_63] : memref<4x1x128xf32, #tpu.memory_space<vmem>>, vector<1x1x128xf32>
    %124 = vector.shape_cast %123 : vector<1x1x128xf32> to vector<1x128xf32>
    %c1_64 = arith.constant 1 : index
    %c0_65 = arith.constant 0 : index
    %c0_66 = arith.constant 0 : index
    %125 = vector.load %arg9[%c1_64, %c0_65, %c0_66] : memref<4x1x128xf32, #tpu.memory_space<vmem>>, vector<1x1x128xf32>
    %126 = vector.shape_cast %125 : vector<1x1x128xf32> to vector<1x128xf32>
    %cst_67 = arith.constant dense<0.000000e+00> : vector<8xf32>
    %127 = vector.multi_reduction <add>, %122, %cst_67 [1] : vector<8x128xf32> to vector<8xf32>
    %128 = vector.shape_cast %127 : vector<8xf32> to vector<8x1xf32>
    %cst_68 = arith.constant 1.280000e+02 : f32
    %129 = vector.broadcast %cst_68 : f32 to vector<8x1xf32>
    %130 = arith.divf %128, %129 : vector<8x1xf32>
    %131 = arith.mulf %122, %122 : vector<8x128xf32>
    %cst_69 = arith.constant dense<0.000000e+00> : vector<8xf32>
    %132 = vector.multi_reduction <add>, %131, %cst_69 [1] : vector<8x128xf32> to vector<8xf32>
    %133 = vector.shape_cast %132 : vector<8xf32> to vector<8x1xf32>
    %cst_70 = arith.constant 1.280000e+02 : f32
    %134 = vector.broadcast %cst_70 : f32 to vector<8x1xf32>
    %135 = arith.divf %133, %134 : vector<8x1xf32>
    %136 = arith.mulf %130, %130 : vector<8x1xf32>
    %137 = arith.subf %135, %136 : vector<8x1xf32>
    %138 = vector.broadcast %130 : vector<8x1xf32> to vector<8x128xf32>
    %139 = arith.subf %122, %138 : vector<8x128xf32>
    %cst_71 = arith.constant 9.99999974E-6 : f32
    %140 = vector.broadcast %cst_71 : f32 to vector<8x1xf32>
    %141 = arith.addf %137, %140 : vector<8x1xf32>
    %142 = math.rsqrt %141 : vector<8x1xf32>
    %143 = vector.broadcast %142 : vector<8x1xf32> to vector<8x128xf32>
    %144 = arith.mulf %139, %143 : vector<8x128xf32>
    %145 = vector.broadcast %124 : vector<1x128xf32> to vector<8x128xf32>
    %146 = arith.mulf %144, %145 : vector<8x128xf32>
    %147 = vector.broadcast %126 : vector<1x128xf32> to vector<8x128xf32>
    %148 = arith.addf %146, %147 : vector<8x128xf32>
    %c1_72 = arith.constant 1 : index
    %c0_73 = arith.constant 0 : index
    %c0_74 = arith.constant 0 : index
    %149 = vector.load %arg10[%c1_72, %c0_73, %c0_74] : memref<4x128x256xbf16, #tpu.memory_space<vmem>>, vector<1x128x256xbf16>
    %150 = vector.shape_cast %149 : vector<1x128x256xbf16> to vector<128x256xbf16>
    %151 = arith.extf %150 : vector<128x256xbf16> to vector<128x256xf32>
    %cst_75 = arith.constant dense<0.000000e+00> : vector<8x256xf32>
    %152 = tpu.matmul %148, %151, %cst_75 {dimension_numbers = #tpu.dot_dimension_numbers<[1], [0], [0], [1], [0, 0, 1, 1], [], []>} : vector<8x128xf32>, vector<128x256xf32>, vector<8x256xf32> -> vector<8x256xf32>
    %c1_76 = arith.constant 1 : index
    %c0_77 = arith.constant 0 : index
    %c0_78 = arith.constant 0 : index
    %153 = vector.load %arg11[%c1_76, %c0_77, %c0_78] : memref<4x1x256xf32, #tpu.memory_space<vmem>>, vector<1x1x256xf32>
    %154 = vector.shape_cast %153 : vector<1x1x256xf32> to vector<1x256xf32>
    %155 = vector.broadcast %154 : vector<1x256xf32> to vector<8x256xf32>
    %156 = arith.addf %152, %155 : vector<8x256xf32>
    %cst_79 = arith.constant 0.000000e+00 : f32
    %157 = vector.broadcast %cst_79 : f32 to vector<8x256xf32>
    %158 = arith.maximumf %156, %157 : vector<8x256xf32>
    %c1_80 = arith.constant 1 : index
    %c0_81 = arith.constant 0 : index
    %c0_82 = arith.constant 0 : index
    %159 = vector.load %arg12[%c1_80, %c0_81, %c0_82] : memref<4x256x128xbf16, #tpu.memory_space<vmem>>, vector<1x256x128xbf16>
    %160 = vector.shape_cast %159 : vector<1x256x128xbf16> to vector<256x128xbf16>
    %161 = arith.extf %160 : vector<256x128xbf16> to vector<256x128xf32>
    %cst_83 = arith.constant dense<0.000000e+00> : vector<8x128xf32>
    %162 = tpu.matmul %158, %161, %cst_83 {dimension_numbers = #tpu.dot_dimension_numbers<[1], [0], [0], [1], [0, 0, 1, 1], [], []>} : vector<8x256xf32>, vector<256x128xf32>, vector<8x128xf32> -> vector<8x128xf32>
    %c1_84 = arith.constant 1 : index
    %c0_85 = arith.constant 0 : index
    %c0_86 = arith.constant 0 : index
    %163 = vector.load %arg13[%c1_84, %c0_85, %c0_86] : memref<4x1x128xf32, #tpu.memory_space<vmem>>, vector<1x1x128xf32>
    %164 = vector.shape_cast %163 : vector<1x1x128xf32> to vector<1x128xf32>
    %165 = vector.broadcast %164 : vector<1x128xf32> to vector<8x128xf32>
    %166 = arith.addf %162, %165 : vector<8x128xf32>
    %167 = arith.addf %148, %166 : vector<8x128xf32>
    %c1_87 = arith.constant 1 : index
    %c0_88 = arith.constant 0 : index
    %c0_89 = arith.constant 0 : index
    %168 = vector.load %arg14[%c1_87, %c0_88, %c0_89] : memref<4x1x128xf32, #tpu.memory_space<vmem>>, vector<1x1x128xf32>
    %169 = vector.shape_cast %168 : vector<1x1x128xf32> to vector<1x128xf32>
    %c1_90 = arith.constant 1 : index
    %c0_91 = arith.constant 0 : index
    %c0_92 = arith.constant 0 : index
    %170 = vector.load %arg15[%c1_90, %c0_91, %c0_92] : memref<4x1x128xf32, #tpu.memory_space<vmem>>, vector<1x1x128xf32>
    %171 = vector.shape_cast %170 : vector<1x1x128xf32> to vector<1x128xf32>
    %cst_93 = arith.constant dense<0.000000e+00> : vector<8xf32>
    %172 = vector.multi_reduction <add>, %167, %cst_93 [1] : vector<8x128xf32> to vector<8xf32>
    %173 = vector.shape_cast %172 : vector<8xf32> to vector<8x1xf32>
    %cst_94 = arith.constant 1.280000e+02 : f32
    %174 = vector.broadcast %cst_94 : f32 to vector<8x1xf32>
    %175 = arith.divf %173, %174 : vector<8x1xf32>
    %176 = arith.mulf %167, %167 : vector<8x128xf32>
    %cst_95 = arith.constant dense<0.000000e+00> : vector<8xf32>
    %177 = vector.multi_reduction <add>, %176, %cst_95 [1] : vector<8x128xf32> to vector<8xf32>
    %178 = vector.shape_cast %177 : vector<8xf32> to vector<8x1xf32>
    %cst_96 = arith.constant 1.280000e+02 : f32
    %179 = vector.broadcast %cst_96 : f32 to vector<8x1xf32>
    %180 = arith.divf %178, %179 : vector<8x1xf32>
    %181 = arith.mulf %175, %175 : vector<8x1xf32>
    %182 = arith.subf %180, %181 : vector<8x1xf32>
    %183 = vector.broadcast %175 : vector<8x1xf32> to vector<8x128xf32>
    %184 = arith.subf %167, %183 : vector<8x128xf32>
    %cst_97 = arith.constant 9.99999974E-6 : f32
    %185 = vector.broadcast %cst_97 : f32 to vector<8x1xf32>
    %186 = arith.addf %182, %185 : vector<8x1xf32>
    %187 = math.rsqrt %186 : vector<8x1xf32>
    %188 = vector.broadcast %187 : vector<8x1xf32> to vector<8x128xf32>
    %189 = arith.mulf %184, %188 : vector<8x128xf32>
    %190 = vector.broadcast %169 : vector<1x128xf32> to vector<8x128xf32>
    %191 = arith.mulf %189, %190 : vector<8x128xf32>
    %192 = vector.broadcast %171 : vector<1x128xf32> to vector<8x128xf32>
    %193 = arith.addf %191, %192 : vector<8x128xf32>
    %c0_98 = arith.constant 0 : index
    %c0_99 = arith.constant 0 : index
    %194 = vector.load %arg16[%c0_98, %c0_99] : memref<128x256xbf16, #tpu.memory_space<vmem>>, vector<128x256xbf16>
    %195 = arith.extf %194 : vector<128x256xbf16> to vector<128x256xf32>
    %cst_100 = arith.constant dense<0.000000e+00> : vector<8x256xf32>
    %196 = tpu.matmul %193, %195, %cst_100 {dimension_numbers = #tpu.dot_dimension_numbers<[1], [0], [0], [1], [0, 0, 1, 1], [], []>} : vector<8x128xf32>, vector<128x256xf32>, vector<8x256xf32> -> vector<8x256xf32>
    %c0_101 = arith.constant 0 : index
    %c0_102 = arith.constant 0 : index
    %197 = vector.load %arg17[%c0_101, %c0_102] : memref<1x256xf32, #tpu.memory_space<vmem>>, vector<1x256xf32>
    %198 = vector.broadcast %197 : vector<1x256xf32> to vector<8x256xf32>
    %199 = arith.addf %196, %198 : vector<8x256xf32>
    %200 = vector.extract_strided_slice %199 {offsets = [0, 0], sizes = [8, 128], strides = [1, 1]} : vector<8x256xf32> to vector<8x128xf32>
    %201 = vector.extract_strided_slice %26 {offsets = [0, 0], sizes = [8, 128], strides = [1, 1]} : vector<8x384xf32> to vector<8x128xf32>
    %202 = arith.addf %200, %201 : vector<8x128xf32>
    %203 = vector.extract_strided_slice %199 {offsets = [0, 128], sizes = [8, 128], strides = [1, 1]} : vector<8x256xf32> to vector<8x128xf32>
    %204 = vector.extract_strided_slice %26 {offsets = [0, 128], sizes = [8, 128], strides = [1, 1]} : vector<8x384xf32> to vector<8x128xf32>
    %205 = arith.addf %203, %204 : vector<8x128xf32>
    %c0_103 = arith.constant 0 : index
    %c0_104 = arith.constant 0 : index
    %206 = vector.load %arg24[%c0_103, %c0_104] : memref<8x128xf32, #tpu.memory_space<vmem>>, vector<8x128xf32>
    tpu.vector_store %arg24[%c0_103, %c0_104], %202 {strides = array<i32>} : memref<8x128xf32, #tpu.memory_space<vmem>>, vector<8x128xf32>,
    %c0_105 = arith.constant 0 : index
    %c0_106 = arith.constant 0 : index
    %207 = vector.load %arg25[%c0_105, %c0_106] : memref<8x128xf32, #tpu.memory_space<vmem>>, vector<8x128xf32>
    tpu.vector_store %arg25[%c0_105, %c0_106], %205 {strides = array<i32>} : memref<8x128xf32, #tpu.memory_space<vmem>>, vector<8x128xf32>,
    %c0_107 = arith.constant 0 : index
    %c0_108 = arith.constant 0 : index
    %208 = vector.load %arg2[%c0_107, %c0_108] : memref<8x128xf32, #tpu.memory_space<vmem>>, vector<8x128xf32>
    %cst_109 = arith.constant 5.000000e-01 : f32
    %209 = vector.broadcast %cst_109 : f32 to vector<8x128xf32>
    %210 = arith.mulf %209, %205 : vector<8x128xf32>
    %211 = math.exp %210 : vector<8x128xf32>
    %212 = arith.mulf %208, %211 : vector<8x128xf32>
    %213 = arith.addf %202, %212 : vector<8x128xf32>
    %c0_110 = arith.constant 0 : index
    %c0_111 = arith.constant 0 : index
    %214 = vector.load %arg19[%c0_110, %c0_111] : memref<128x128xbf16, #tpu.memory_space<vmem>>, vector<128x128xbf16>
    %215 = arith.extf %214 : vector<128x128xbf16> to vector<128x128xf32>
    %cst_112 = arith.constant dense<0.000000e+00> : vector<8x128xf32>
    %216 = tpu.matmul %213, %215, %cst_112 {dimension_numbers = #tpu.dot_dimension_numbers<[1], [0], [0], [1], [0, 0, 1, 1], [], []>} : vector<8x128xf32>, vector<128x128xf32>, vector<8x128xf32> -> vector<8x128xf32>
    %c0_113 = arith.constant 0 : index
    %c0_114 = arith.constant 0 : index
    %217 = vector.load %arg20[%c0_113, %c0_114] : memref<1x128xf32, #tpu.memory_space<vmem>>, vector<1x128xf32>
    %218 = vector.broadcast %217 : vector<1x128xf32> to vector<8x128xf32>
    %219 = arith.addf %216, %218 : vector<8x128xf32>
    %220 = vector.extract_strided_slice %26 {offsets = [0, 256], sizes = [8, 128], strides = [1, 1]} : vector<8x384xf32> to vector<8x128xf32>
    %221 = arith.addf %219, %220 : vector<8x128xf32>
    %222 = arith.addf %221, %2 : vector<8x128xf32>
    %c2 = arith.constant 2 : index
    %c0_115 = arith.constant 0 : index
    %c0_116 = arith.constant 0 : index
    %223 = vector.load %arg6[%c2, %c0_115, %c0_116] : memref<4x128x128xbf16, #tpu.memory_space<vmem>>, vector<1x128x128xbf16>
    %224 = vector.shape_cast %223 : vector<1x128x128xbf16> to vector<128x128xbf16>
    %225 = arith.extf %224 : vector<128x128xbf16> to vector<128x128xf32>
    %cst_117 = arith.constant dense<0.000000e+00> : vector<8x128xf32>
    %226 = tpu.matmul %222, %225, %cst_117 {dimension_numbers = #tpu.dot_dimension_numbers<[1], [0], [0], [1], [0, 0, 1, 1], [], []>} : vector<8x128xf32>, vector<128x128xf32>, vector<8x128xf32> -> vector<8x128xf32>
    %c2_118 = arith.constant 2 : index
    %c0_119 = arith.constant 0 : index
    %c0_120 = arith.constant 0 : index
    %227 = vector.load %arg7[%c2_118, %c0_119, %c0_120] : memref<4x1x128xf32, #tpu.memory_space<vmem>>, vector<1x1x128xf32>
    %228 = vector.shape_cast %227 : vector<1x1x128xf32> to vector<1x128xf32>
    %229 = vector.broadcast %228 : vector<1x128xf32> to vector<8x128xf32>
    %230 = arith.addf %226, %229 : vector<8x128xf32>
    %231 = arith.addf %222, %230 : vector<8x128xf32>
    %c2_121 = arith.constant 2 : index
    %c0_122 = arith.constant 0 : index
    %c0_123 = arith.constant 0 : index
    %232 = vector.load %arg8[%c2_121, %c0_122, %c0_123] : memref<4x1x128xf32, #tpu.memory_space<vmem>>, vector<1x1x128xf32>
    %233 = vector.shape_cast %232 : vector<1x1x128xf32> to vector<1x128xf32>
    %c2_124 = arith.constant 2 : index
    %c0_125 = arith.constant 0 : index
    %c0_126 = arith.constant 0 : index
    %234 = vector.load %arg9[%c2_124, %c0_125, %c0_126] : memref<4x1x128xf32, #tpu.memory_space<vmem>>, vector<1x1x128xf32>
    %235 = vector.shape_cast %234 : vector<1x1x128xf32> to vector<1x128xf32>
    %cst_127 = arith.constant dense<0.000000e+00> : vector<8xf32>
    %236 = vector.multi_reduction <add>, %231, %cst_127 [1] : vector<8x128xf32> to vector<8xf32>
    %237 = vector.shape_cast %236 : vector<8xf32> to vector<8x1xf32>
    %cst_128 = arith.constant 1.280000e+02 : f32
    %238 = vector.broadcast %cst_128 : f32 to vector<8x1xf32>
    %239 = arith.divf %237, %238 : vector<8x1xf32>
    %240 = arith.mulf %231, %231 : vector<8x128xf32>
    %cst_129 = arith.constant dense<0.000000e+00> : vector<8xf32>
    %241 = vector.multi_reduction <add>, %240, %cst_129 [1] : vector<8x128xf32> to vector<8xf32>
    %242 = vector.shape_cast %241 : vector<8xf32> to vector<8x1xf32>
    %cst_130 = arith.constant 1.280000e+02 : f32
    %243 = vector.broadcast %cst_130 : f32 to vector<8x1xf32>
    %244 = arith.divf %242, %243 : vector<8x1xf32>
    %245 = arith.mulf %239, %239 : vector<8x1xf32>
    %246 = arith.subf %244, %245 : vector<8x1xf32>
    %247 = vector.broadcast %239 : vector<8x1xf32> to vector<8x128xf32>
    %248 = arith.subf %231, %247 : vector<8x128xf32>
    %cst_131 = arith.constant 9.99999974E-6 : f32
    %249 = vector.broadcast %cst_131 : f32 to vector<8x1xf32>
    %250 = arith.addf %246, %249 : vector<8x1xf32>
    %251 = math.rsqrt %250 : vector<8x1xf32>
    %252 = vector.broadcast %251 : vector<8x1xf32> to vector<8x128xf32>
    %253 = arith.mulf %248, %252 : vector<8x128xf32>
    %254 = vector.broadcast %233 : vector<1x128xf32> to vector<8x128xf32>
    %255 = arith.mulf %253, %254 : vector<8x128xf32>
    %256 = vector.broadcast %235 : vector<1x128xf32> to vector<8x128xf32>
    %257 = arith.addf %255, %256 : vector<8x128xf32>
    %c2_132 = arith.constant 2 : index
    %c0_133 = arith.constant 0 : index
    %c0_134 = arith.constant 0 : index
    %258 = vector.load %arg10[%c2_132, %c0_133, %c0_134] : memref<4x128x256xbf16, #tpu.memory_space<vmem>>, vector<1x128x256xbf16>
    %259 = vector.shape_cast %258 : vector<1x128x256xbf16> to vector<128x256xbf16>
    %260 = arith.extf %259 : vector<128x256xbf16> to vector<128x256xf32>
    %cst_135 = arith.constant dense<0.000000e+00> : vector<8x256xf32>
    %261 = tpu.matmul %257, %260, %cst_135 {dimension_numbers = #tpu.dot_dimension_numbers<[1], [0], [0], [1], [0, 0, 1, 1], [], []>} : vector<8x128xf32>, vector<128x256xf32>, vector<8x256xf32> -> vector<8x256xf32>
    %c2_136 = arith.constant 2 : index
    %c0_137 = arith.constant 0 : index
    %c0_138 = arith.constant 0 : index
    %262 = vector.load %arg11[%c2_136, %c0_137, %c0_138] : memref<4x1x256xf32, #tpu.memory_space<vmem>>, vector<1x1x256xf32>
    %263 = vector.shape_cast %262 : vector<1x1x256xf32> to vector<1x256xf32>
    %264 = vector.broadcast %263 : vector<1x256xf32> to vector<8x256xf32>
    %265 = arith.addf %261, %264 : vector<8x256xf32>
    %cst_139 = arith.constant 0.000000e+00 : f32
    %266 = vector.broadcast %cst_139 : f32 to vector<8x256xf32>
    %267 = arith.maximumf %265, %266 : vector<8x256xf32>
    %c2_140 = arith.constant 2 : index
    %c0_141 = arith.constant 0 : index
    %c0_142 = arith.constant 0 : index
    %268 = vector.load %arg12[%c2_140, %c0_141, %c0_142] : memref<4x256x128xbf16, #tpu.memory_space<vmem>>, vector<1x256x128xbf16>
    %269 = vector.shape_cast %268 : vector<1x256x128xbf16> to vector<256x128xbf16>
    %270 = arith.extf %269 : vector<256x128xbf16> to vector<256x128xf32>
    %cst_143 = arith.constant dense<0.000000e+00> : vector<8x128xf32>
    %271 = tpu.matmul %267, %270, %cst_143 {dimension_numbers = #tpu.dot_dimension_numbers<[1], [0], [0], [1], [0, 0, 1, 1], [], []>} : vector<8x256xf32>, vector<256x128xf32>, vector<8x128xf32> -> vector<8x128xf32>
    %c2_144 = arith.constant 2 : index
    %c0_145 = arith.constant 0 : index
    %c0_146 = arith.constant 0 : index
    %272 = vector.load %arg13[%c2_144, %c0_145, %c0_146] : memref<4x1x128xf32, #tpu.memory_space<vmem>>, vector<1x1x128xf32>
    %273 = vector.shape_cast %272 : vector<1x1x128xf32> to vector<1x128xf32>
    %274 = vector.broadcast %273 : vector<1x128xf32> to vector<8x128xf32>
    %275 = arith.addf %271, %274 : vector<8x128xf32>
    %276 = arith.addf %257, %275 : vector<8x128xf32>
    %c2_147 = arith.constant 2 : index
    %c0_148 = arith.constant 0 : index
    %c0_149 = arith.constant 0 : index
    %277 = vector.load %arg14[%c2_147, %c0_148, %c0_149] : memref<4x1x128xf32, #tpu.memory_space<vmem>>, vector<1x1x128xf32>
    %278 = vector.shape_cast %277 : vector<1x1x128xf32> to vector<1x128xf32>
    %c2_150 = arith.constant 2 : index
    %c0_151 = arith.constant 0 : index
    %c0_152 = arith.constant 0 : index
    %279 = vector.load %arg15[%c2_150, %c0_151, %c0_152] : memref<4x1x128xf32, #tpu.memory_space<vmem>>, vector<1x1x128xf32>
    %280 = vector.shape_cast %279 : vector<1x1x128xf32> to vector<1x128xf32>
    %cst_153 = arith.constant dense<0.000000e+00> : vector<8xf32>
    %281 = vector.multi_reduction <add>, %276, %cst_153 [1] : vector<8x128xf32> to vector<8xf32>
    %282 = vector.shape_cast %281 : vector<8xf32> to vector<8x1xf32>
    %cst_154 = arith.constant 1.280000e+02 : f32
    %283 = vector.broadcast %cst_154 : f32 to vector<8x1xf32>
    %284 = arith.divf %282, %283 : vector<8x1xf32>
    %285 = arith.mulf %276, %276 : vector<8x128xf32>
    %cst_155 = arith.constant dense<0.000000e+00> : vector<8xf32>
    %286 = vector.multi_reduction <add>, %285, %cst_155 [1] : vector<8x128xf32> to vector<8xf32>
    %287 = vector.shape_cast %286 : vector<8xf32> to vector<8x1xf32>
    %cst_156 = arith.constant 1.280000e+02 : f32
    %288 = vector.broadcast %cst_156 : f32 to vector<8x1xf32>
    %289 = arith.divf %287, %288 : vector<8x1xf32>
    %290 = arith.mulf %284, %284 : vector<8x1xf32>
    %291 = arith.subf %289, %290 : vector<8x1xf32>
    %292 = vector.broadcast %284 : vector<8x1xf32> to vector<8x128xf32>
    %293 = arith.subf %276, %292 : vector<8x128xf32>
    %cst_157 = arith.constant 9.99999974E-6 : f32
    %294 = vector.broadcast %cst_157 : f32 to vector<8x1xf32>
    %295 = arith.addf %291, %294 : vector<8x1xf32>
    %296 = math.rsqrt %295 : vector<8x1xf32>
    %297 = vector.broadcast %296 : vector<8x1xf32> to vector<8x128xf32>
    %298 = arith.mulf %293, %297 : vector<8x128xf32>
    %299 = vector.broadcast %278 : vector<1x128xf32> to vector<8x128xf32>
    %300 = arith.mulf %298, %299 : vector<8x128xf32>
    %301 = vector.broadcast %280 : vector<1x128xf32> to vector<8x128xf32>
    %302 = arith.addf %300, %301 : vector<8x128xf32>
    %c3 = arith.constant 3 : index
    %c0_158 = arith.constant 0 : index
    %c0_159 = arith.constant 0 : index
    %303 = vector.load %arg6[%c3, %c0_158, %c0_159] : memref<4x128x128xbf16, #tpu.memory_space<vmem>>, vector<1x128x128xbf16>
    %304 = vector.shape_cast %303 : vector<1x128x128xbf16> to vector<128x128xbf16>
    %305 = arith.extf %304 : vector<128x128xbf16> to vector<128x128xf32>
    %cst_160 = arith.constant dense<0.000000e+00> : vector<8x128xf32>
    %306 = tpu.matmul %302, %305, %cst_160 {dimension_numbers = #tpu.dot_dimension_numbers<[1], [0], [0], [1], [0, 0, 1, 1], [], []>} : vector<8x128xf32>, vector<128x128xf32>, vector<8x128xf32> -> vector<8x128xf32>
    %c3_161 = arith.constant 3 : index
    %c0_162 = arith.constant 0 : index
    %c0_163 = arith.constant 0 : index
    %307 = vector.load %arg7[%c3_161, %c0_162, %c0_163] : memref<4x1x128xf32, #tpu.memory_space<vmem>>, vector<1x1x128xf32>
    %308 = vector.shape_cast %307 : vector<1x1x128xf32> to vector<1x128xf32>
    %309 = vector.broadcast %308 : vector<1x128xf32> to vector<8x128xf32>
    %310 = arith.addf %306, %309 : vector<8x128xf32>
    %311 = arith.addf %302, %310 : vector<8x128xf32>
    %c3_164 = arith.constant 3 : index
    %c0_165 = arith.constant 0 : index
    %c0_166 = arith.constant 0 : index
    %312 = vector.load %arg8[%c3_164, %c0_165, %c0_166] : memref<4x1x128xf32, #tpu.memory_space<vmem>>, vector<1x1x128xf32>
    %313 = vector.shape_cast %312 : vector<1x1x128xf32> to vector<1x128xf32>
    %c3_167 = arith.constant 3 : index
    %c0_168 = arith.constant 0 : index
    %c0_169 = arith.constant 0 : index
    %314 = vector.load %arg9[%c3_167, %c0_168, %c0_169] : memref<4x1x128xf32, #tpu.memory_space<vmem>>, vector<1x1x128xf32>
    %315 = vector.shape_cast %314 : vector<1x1x128xf32> to vector<1x128xf32>
    %cst_170 = arith.constant dense<0.000000e+00> : vector<8xf32>
    %316 = vector.multi_reduction <add>, %311, %cst_170 [1] : vector<8x128xf32> to vector<8xf32>
    %317 = vector.shape_cast %316 : vector<8xf32> to vector<8x1xf32>
    %cst_171 = arith.constant 1.280000e+02 : f32
    %318 = vector.broadcast %cst_171 : f32 to vector<8x1xf32>
    %319 = arith.divf %317, %318 : vector<8x1xf32>
    %320 = arith.mulf %311, %311 : vector<8x128xf32>
    %cst_172 = arith.constant dense<0.000000e+00> : vector<8xf32>
    %321 = vector.multi_reduction <add>, %320, %cst_172 [1] : vector<8x128xf32> to vector<8xf32>
    %322 = vector.shape_cast %321 : vector<8xf32> to vector<8x1xf32>
    %cst_173 = arith.constant 1.280000e+02 : f32
    %323 = vector.broadcast %cst_173 : f32 to vector<8x1xf32>
    %324 = arith.divf %322, %323 : vector<8x1xf32>
    %325 = arith.mulf %319, %319 : vector<8x1xf32>
    %326 = arith.subf %324, %325 : vector<8x1xf32>
    %327 = vector.broadcast %319 : vector<8x1xf32> to vector<8x128xf32>
    %328 = arith.subf %311, %327 : vector<8x128xf32>
    %cst_174 = arith.constant 9.99999974E-6 : f32
    %329 = vector.broadcast %cst_174 : f32 to vector<8x1xf32>
    %330 = arith.addf %326, %329 : vector<8x1xf32>
    %331 = math.rsqrt %330 : vector<8x1xf32>
    %332 = vector.broadcast %331 : vector<8x1xf32> to vector<8x128xf32>
    %333 = arith.mulf %328, %332 : vector<8x128xf32>
    %334 = vector.broadcast %313 : vector<1x128xf32> to vector<8x128xf32>
    %335 = arith.mulf %333, %334 : vector<8x128xf32>
    %336 = vector.broadcast %315 : vector<1x128xf32> to vector<8x128xf32>
    %337 = arith.addf %335, %336 : vector<8x128xf32>
    %c3_175 = arith.constant 3 : index
    %c0_176 = arith.constant 0 : index
    %c0_177 = arith.constant 0 : index
    %338 = vector.load %arg10[%c3_175, %c0_176, %c0_177] : memref<4x128x256xbf16, #tpu.memory_space<vmem>>, vector<1x128x256xbf16>
    %339 = vector.shape_cast %338 : vector<1x128x256xbf16> to vector<128x256xbf16>
    %340 = arith.extf %339 : vector<128x256xbf16> to vector<128x256xf32>
    %cst_178 = arith.constant dense<0.000000e+00> : vector<8x256xf32>
    %341 = tpu.matmul %337, %340, %cst_178 {dimension_numbers = #tpu.dot_dimension_numbers<[1], [0], [0], [1], [0, 0, 1, 1], [], []>} : vector<8x128xf32>, vector<128x256xf32>, vector<8x256xf32> -> vector<8x256xf32>
    %c3_179 = arith.constant 3 : index
    %c0_180 = arith.constant 0 : index
    %c0_181 = arith.constant 0 : index
    %342 = vector.load %arg11[%c3_179, %c0_180, %c0_181] : memref<4x1x256xf32, #tpu.memory_space<vmem>>, vector<1x1x256xf32>
    %343 = vector.shape_cast %342 : vector<1x1x256xf32> to vector<1x256xf32>
    %344 = vector.broadcast %343 : vector<1x256xf32> to vector<8x256xf32>
    %345 = arith.addf %341, %344 : vector<8x256xf32>
    %cst_182 = arith.constant 0.000000e+00 : f32
    %346 = vector.broadcast %cst_182 : f32 to vector<8x256xf32>
    %347 = arith.maximumf %345, %346 : vector<8x256xf32>
    %c3_183 = arith.constant 3 : index
    %c0_184 = arith.constant 0 : index
    %c0_185 = arith.constant 0 : index
    %348 = vector.load %arg12[%c3_183, %c0_184, %c0_185] : memref<4x256x128xbf16, #tpu.memory_space<vmem>>, vector<1x256x128xbf16>
    %349 = vector.shape_cast %348 : vector<1x256x128xbf16> to vector<256x128xbf16>
    %350 = arith.extf %349 : vector<256x128xbf16> to vector<256x128xf32>
    %cst_186 = arith.constant dense<0.000000e+00> : vector<8x128xf32>
    %351 = tpu.matmul %347, %350, %cst_186 {dimension_numbers = #tpu.dot_dimension_numbers<[1], [0], [0], [1], [0, 0, 1, 1], [], []>} : vector<8x256xf32>, vector<256x128xf32>, vector<8x128xf32> -> vector<8x128xf32>
    %c3_187 = arith.constant 3 : index
    %c0_188 = arith.constant 0 : index
    %c0_189 = arith.constant 0 : index
    %352 = vector.load %arg13[%c3_187, %c0_188, %c0_189] : memref<4x1x128xf32, #tpu.memory_space<vmem>>, vector<1x1x128xf32>
    %353 = vector.shape_cast %352 : vector<1x1x128xf32> to vector<1x128xf32>
    %354 = vector.broadcast %353 : vector<1x128xf32> to vector<8x128xf32>
    %355 = arith.addf %351, %354 : vector<8x128xf32>
    %356 = arith.addf %337, %355 : vector<8x128xf32>
    %c3_190 = arith.constant 3 : index
    %c0_191 = arith.constant 0 : index
    %c0_192 = arith.constant 0 : index
    %357 = vector.load %arg14[%c3_190, %c0_191, %c0_192] : memref<4x1x128xf32, #tpu.memory_space<vmem>>, vector<1x1x128xf32>
    %358 = vector.shape_cast %357 : vector<1x1x128xf32> to vector<1x128xf32>
    %c3_193 = arith.constant 3 : index
    %c0_194 = arith.constant 0 : index
    %c0_195 = arith.constant 0 : index
    %359 = vector.load %arg15[%c3_193, %c0_194, %c0_195] : memref<4x1x128xf32, #tpu.memory_space<vmem>>, vector<1x1x128xf32>
    %360 = vector.shape_cast %359 : vector<1x1x128xf32> to vector<1x128xf32>
    %cst_196 = arith.constant dense<0.000000e+00> : vector<8xf32>
    %361 = vector.multi_reduction <add>, %356, %cst_196 [1] : vector<8x128xf32> to vector<8xf32>
    %362 = vector.shape_cast %361 : vector<8xf32> to vector<8x1xf32>
    %cst_197 = arith.constant 1.280000e+02 : f32
    %363 = vector.broadcast %cst_197 : f32 to vector<8x1xf32>
    %364 = arith.divf %362, %363 : vector<8x1xf32>
    %365 = arith.mulf %356, %356 : vector<8x128xf32>
    %cst_198 = arith.constant dense<0.000000e+00> : vector<8xf32>
    %366 = vector.multi_reduction <add>, %365, %cst_198 [1] : vector<8x128xf32> to vector<8xf32>
    %367 = vector.shape_cast %366 : vector<8xf32> to vector<8x1xf32>
    %cst_199 = arith.constant 1.280000e+02 : f32
    %368 = vector.broadcast %cst_199 : f32 to vector<8x1xf32>
    %369 = arith.divf %367, %368 : vector<8x1xf32>
    %370 = arith.mulf %364, %364 : vector<8x1xf32>
    %371 = arith.subf %369, %370 : vector<8x1xf32>
    %372 = vector.broadcast %364 : vector<8x1xf32> to vector<8x128xf32>
    %373 = arith.subf %356, %372 : vector<8x128xf32>
    %cst_200 = arith.constant 9.99999974E-6 : f32
    %374 = vector.broadcast %cst_200 : f32 to vector<8x1xf32>
    %375 = arith.addf %371, %374 : vector<8x1xf32>
    %376 = math.rsqrt %375 : vector<8x1xf32>
    %377 = vector.broadcast %376 : vector<8x1xf32> to vector<8x128xf32>
    %378 = arith.mulf %373, %377 : vector<8x128xf32>
    %379 = vector.broadcast %358 : vector<1x128xf32> to vector<8x128xf32>
    %380 = arith.mulf %378, %379 : vector<8x128xf32>
    %381 = vector.broadcast %360 : vector<1x128xf32> to vector<8x128xf32>
    %382 = arith.addf %380, %381 : vector<8x128xf32>
    %c0_201 = arith.constant 0 : index
    %c0_202 = arith.constant 0 : index
    %383 = vector.load %arg21[%c0_201, %c0_202] : memref<128x128xbf16, #tpu.memory_space<vmem>>, vector<128x128xbf16>
    %384 = arith.extf %383 : vector<128x128xbf16> to vector<128x128xf32>
    %cst_203 = arith.constant dense<0.000000e+00> : vector<8x128xf32>
    %385 = tpu.matmul %382, %384, %cst_203 {dimension_numbers = #tpu.dot_dimension_numbers<[1], [0], [0], [1], [0, 0, 1, 1], [], []>} : vector<8x128xf32>, vector<128x128xf32>, vector<8x128xf32> -> vector<8x128xf32>
    %c0_204 = arith.constant 0 : index
    %c0_205 = arith.constant 0 : index
    %386 = vector.load %arg22[%c0_204, %c0_205] : memref<1x128xf32, #tpu.memory_space<vmem>>, vector<1x128xf32>
    %387 = vector.broadcast %386 : vector<1x128xf32> to vector<8x128xf32>
    %388 = arith.addf %385, %387 : vector<8x128xf32>
    %c0_206 = arith.constant 0 : index
    %c0_207 = arith.constant 0 : index
    %389 = vector.load %arg23[%c0_206, %c0_207] : memref<8x128xf32, #tpu.memory_space<vmem>>, vector<8x128xf32>
    tpu.vector_store %arg23[%c0_206, %c0_207], %388 {strides = array<i32>} : memref<8x128xf32, #tpu.memory_space<vmem>>, vector<8x128xf32>,
    return
  }
}

</mosaic_0001>

<llo_original>
// kernel: vae_forward.1
$region0: #{vae_forward.1}
  #allocation0 [shape = 'u32[]', space=smem, size = 0x4, offset = 0x4, fixed_abs, tag = 'smem constant byte address 0x4 - core index']
  #allocation1 [shape = 'u32[144,128]{1,0:T(1,128)}', space=vmem, size = 0x12000, scoped, tag = 'internal scratch']
  %s0 = inlined_call_operand.vmem [shape: f32[8,64], index: 0, kind: input, shape index: {}]
  %s1 = inlined_call_operand.vmem [shape: f32[8,4], index: 1, kind: input, shape index: {}]
  %s2 = inlined_call_operand.vmem [shape: f32[8,128], index: 2, kind: input, shape index: {}]
  %s3 = inlined_call_operand.vmem [shape: f32[8,128], index: 3, kind: input, shape index: {}]
  %s4 = inlined_call_operand.vmem [shape: bf16[64,128], index: 4, kind: input, shape index: {}]
  %s5 = inlined_call_operand.vmem [shape: f32[1,128], index: 5, kind: input, shape index: {}]
  %s6 = inlined_call_operand.hbm [shape: bf16[4,128,128], index: 6, kind: input, shape index: {}]
  %s7 = inlined_call_operand.vmem [shape: f32[4,1,128], index: 7, kind: input, shape index: {}]
  %s8 = inlined_call_operand.hbm [shape: f32[4,1,128], index: 8, kind: input, shape index: {}]
  %s9 = inlined_call_operand.hbm [shape: f32[4,1,128], index: 9, kind: input, shape index: {}]
  %s10 = inlined_call_operand.hbm [shape: bf16[4,128,256], index: 10, kind: input, shape index: {}]
  %s11 = inlined_call_operand.hbm [shape: f32[4,1,256], index: 11, kind: input, shape index: {}]
  %s12 = inlined_call_operand.hbm [shape: bf16[4,256,128], index: 12, kind: input, shape index: {}]
  %s13 = inlined_call_operand.hbm [shape: f32[4,1,128], index: 13, kind: input, shape index: {}]
  %s14 = inlined_call_operand.hbm [shape: f32[4,1,128], index: 14, kind: input, shape index: {}]
  %s15 = inlined_call_operand.hbm [shape: f32[4,1,128], index: 15, kind: input, shape index: {}]
  %s16 = inlined_call_operand.hbm [shape: bf16[128,256], index: 16, kind: input, shape index: {}]
  %s17 = inlined_call_operand.vmem [shape: f32[1,256], index: 17, kind: input, shape index: {}]
  %s18 = inlined_call_operand.vmem [shape: f32[4,384], index: 18, kind: input, shape index: {}]
  %s19 = inlined_call_operand.vmem [shape: bf16[128,128], index: 19, kind: input, shape index: {}]
  %s20 = inlined_call_operand.hbm [shape: f32[1,128], index: 20, kind: input, shape index: {}]
  %s21 = inlined_call_operand.hbm [shape: bf16[128,128], index: 21, kind: input, shape index: {}]
  %s22 = inlined_call_operand.vmem [shape: f32[1,128], index: 22, kind: input, shape index: {}]
  %s23 = inlined_call_operand.vmem [shape: f32[8,128], index: 23, kind: output, shape index: {0}]
  %s24 = inlined_call_operand.vmem [shape: f32[8,128], index: 24, kind: output, shape index: {1}]
  %s25 = inlined_call_operand.vmem [shape: f32[8,128], index: 25, kind: output, shape index: {2}]
  %26 = xla_tuple %s23, %s24, %s25
  %s27 = sld [smem:[#allocation0]]
  $region166: #{vae_forward.1} parent=0
    _
  %s29 = ssub.s32 1, %s27
  %s30 = scalar_select 0, %s29, %s27
  $region1: #{vae_forward.1} parent=0
    #allocation2 [shape = 'u8[131072]{0}', space=vmem, size = 0x20000, scoped, tag = 'input window, operand 6, single buffered']
    #allocation3 [shape = 's32[1]{0}', space=sflag, size = 0x4, scoped, tag = 'scoped memory for vae_forward.1']
    #allocation4 [shape = 'u8[2048]{0}', space=vmem, size = 0x800, scoped, tag = 'input window, operand 8, single buffered']
    #allocation5 [shape = 's32[1]{0}', space=sflag, size = 0x4, scoped, tag = 'scoped memory for vae_forward.1']
    #allocation6 [shape = 'u8[2048]{0}', space=vmem, size = 0x800, scoped, tag = 'input window, operand 9, single buffered']
    #allocation7 [shape = 'u8[262144]{0}', space=vmem, size = 0x40000, scoped, tag = 'input window, operand 10, single buffered']
    #allocation8 [shape = 's32[1]{0}', space=sflag, size = 0x4, scoped, tag = 'scoped memory for vae_forward.1']
    #allocation9 [shape = 'u8[4096]{0}', space=vmem, size = 0x1000, scoped, tag = 'input window, operand 11, single buffered']
    #allocation10 [shape = 'u8[262144]{0}', space=vmem, size = 0x40000, scoped, tag = 'input window, operand 12, single buffered']
    #allocation11 [shape = 's32[1]{0}', space=sflag, size = 0x4, scoped, tag = 'scoped memory for vae_forward.1']
    #allocation12 [shape = 'u8[2048]{0}', space=vmem, size = 0x800, scoped, tag = 'input window, operand 13, single buffered']
    #allocation13 [shape = 'u8[2048]{0}', space=vmem, size = 0x800, scoped, tag = 'input window, operand 14, single buffered']
    #allocation14 [shape = 's32[1]{0}', space=sflag, size = 0x4, scoped, tag = 'scoped memory for vae_forward.1']
    #allocation15 [shape = 'u8[2048]{0}', space=vmem, size = 0x800, scoped, tag = 'input window, operand 15, single buffered']
    #allocation16 [shape = 'u8[65536]{0}', space=vmem, size = 0x10000, scoped, tag = 'input window, operand 16, single buffered']
    #allocation17 [shape = 's32[1]{0}', space=sflag, size = 0x4, scoped, tag = 'scoped memory for vae_forward.1']
    #allocation18 [shape = 'u8[512]{0}', space=vmem, size = 0x400, scoped, tag = 'input window, operand 20, single buffered']
    #allocation19 [shape = 'u8[32768]{0}', space=vmem, size = 0x8000, scoped, tag = 'input window, operand 21, single buffered']
    #allocation20 [shape = 's32[1]{0}', space=sflag, size = 0x4, scoped, tag = 'scoped memory for vae_forward.1']
    %31 = vsyncpa [#allocation3], 0
    %32 = vsyncpa [#allocation5], 0
    %33 = vsyncpa [#allocation8], 0
    %34 = vsyncpa [#allocation11], 0
    %35 = vsyncpa [#allocation14], 0
    %36 = vsyncpa [#allocation17], 0
    %37 = vsyncpa [#allocation20], 0
    // Predicated region
    $region2: #{vae_forward.1} parent=1 // pred_check
      _
    $region3: #{vae_forward.1} parent=1 // pred_check_branch
      %39 = sbr.rel (0) target = $region5
    $region4: #{vae_forward.1} parent=1 // pred_region
      _
    $region5: #{vae_forward.1} parent=1 // pred_fallthru
      _
    // Predicated region
    $region6: #{vae_forward.1} parent=1 // pred_check
      _
    $region7: #{vae_forward.1} parent=1 // pred_check_branch
      %41 = sbr.rel (0) target = $region9
    $region8: #{vae_forward.1} parent=1 // pred_region
      _
    $region9: #{vae_forward.1} parent=1 // pred_fallthru
      _
    // Predicated region
    $region10: #{vae_forward.1} parent=1 // pred_check
      _
    $region11: #{vae_forward.1} parent=1 // pred_check_branch
      %43 = sbr.rel (0) target = $region13
    $region12: #{vae_forward.1} parent=1 // pred_region
      _
    $region13: #{vae_forward.1} parent=1 // pred_fallthru
      _
    // Predicated region
    $region14: #{vae_forward.1} parent=1 // pred_check
      _
    $region15: #{vae_forward.1} parent=1 // pred_check_branch
      %45 = sbr.rel (0) target = $region17
    $region16: #{vae_forward.1} parent=1 // pred_region
      _
    $region17: #{vae_forward.1} parent=1 // pred_fallthru
      _
    // Predicated region
    $region18: #{vae_forward.1} parent=1 // pred_check
      _
    $region19: #{vae_forward.1} parent=1 // pred_check_branch
      %47 = sbr.rel (0) target = $region21
    $region20: #{vae_forward.1} parent=1 // pred_region
      _
    $region21: #{vae_forward.1} parent=1 // pred_fallthru
      _
    // Predicated region
    $region22: #{vae_forward.1} parent=1 // pred_check
      _
    $region23: #{vae_forward.1} parent=1 // pred_check_branch
      %49 = sbr.rel (0) target = $region25
    $region24: #{vae_forward.1} parent=1 // pred_region
      _
    $region25: #{vae_forward.1} parent=1 // pred_fallthru
      _
    // Predicated region
    $region26: #{vae_forward.1} parent=1 // pred_check
      _
    $region27: #{vae_forward.1} parent=1 // pred_check_branch
      %51 = sbr.rel (0) target = $region29
    $region28: #{vae_forward.1} parent=1 // pred_region
      %s53 = ssub.s32 4096, 4096
      %54 = vsyncadd [#allocation3], %s53
      %s55 = sshll.u32 [#allocation2], 4
      %s56 = int_to_ptr.vmem [resolvable:$true] %s55
      %61 = dma.hbm_to_vmem [thread:$0]  %s6, 4096, %s56, [#allocation3], 64, 64, 4
    $region29: #{vae_forward.1} parent=1 // pred_fallthru
      _
    // Predicated region
    $region30: #{vae_forward.1} parent=1 // pred_check
      _
    $region31: #{vae_forward.1} parent=1 // pred_check_branch
      %63 = sbr.rel (0) target = $region33
    $region32: #{vae_forward.1} parent=1 // pred_region
      _
    $region33: #{vae_forward.1} parent=1 // pred_fallthru
      _
    // Predicated region
    $region34: #{vae_forward.1} parent=1 // pred_check
      _
    $region35: #{vae_forward.1} parent=1 // pred_check_branch
      %65 = sbr.rel (0) target = $region37
    $region36: #{vae_forward.1} parent=1 // pred_region
      %s67 = ssub.s32 64, 64
      %68 = vsyncadd [#allocation5], %s67
      %s69 = sshll.u32 [#allocation4], 4
      %s70 = int_to_ptr.vmem [resolvable:$true] %s69
      %75 = dma.hbm_to_vmem [thread:$0]  %s8, 64, %s70, [#allocation5], 16, 16, 1
    $region37: #{vae_forward.1} parent=1 // pred_fallthru
      _
    // Predicated region
    $region38: #{vae_forward.1} parent=1 // pred_check
      _
    $region39: #{vae_forward.1} parent=1 // pred_check_branch
      %77 = sbr.rel (0) target = $region41
    $region40: #{vae_forward.1} parent=1 // pred_region
      %s79 = ssub.s32 64, 64
      %80 = vsyncadd [#allocation5], %s79
      %s81 = sshll.u32 [#allocation6], 4
      %s82 = int_to_ptr.vmem [resolvable:$true] %s81
      %87 = dma.hbm_to_vmem [thread:$0]  %s9, 64, %s82, [#allocation5], 16, 16, 1
    $region41: #{vae_forward.1} parent=1 // pred_fallthru
      _
    // Predicated region
    $region42: #{vae_forward.1} parent=1 // pred_check
      _
    $region43: #{vae_forward.1} parent=1 // pred_check_branch
      %89 = sbr.rel (0) target = $region45
    $region44: #{vae_forward.1} parent=1 // pred_region
      %s91 = ssub.s32 8192, 8192
      %92 = vsyncadd [#allocation8], %s91
      %s93 = sshll.u32 [#allocation7], 4
      %s94 = int_to_ptr.vmem [resolvable:$true] %s93
      %99 = dma.hbm_to_vmem [thread:$0]  %s10, 8192, %s94, [#allocation8], 128, 128, 8
    $region45: #{vae_forward.1} parent=1 // pred_fallthru
      _
    // Predicated region
    $region46: #{vae_forward.1} parent=1 // pred_check
      _
    $region47: #{vae_forward.1} parent=1 // pred_check_branch
      %101 = sbr.rel (0) target = $region49
    $region48: #{vae_forward.1} parent=1 // pred_region
      %s103 = ssub.s32 128, 128
      %104 = vsyncadd [#allocation8], %s103
      %s105 = sshll.u32 [#allocation9], 4
      %s106 = int_to_ptr.vmem [resolvable:$true] %s105
      %111 = dma.hbm_to_vmem [thread:$0]  %s11, 128, %s106, [#allocation8], 32, 32, 2
    $region49: #{vae_forward.1} parent=1 // pred_fallthru
      _
    // Predicated region
    $region50: #{vae_forward.1} parent=1 // pred_check
      _
    $region51: #{vae_forward.1} parent=1 // pred_check_branch
      %113 = sbr.rel (0) target = $region53
    $region52: #{vae_forward.1} parent=1 // pred_region
      %s115 = ssub.s32 8192, 8192
      %116 = vsyncadd [#allocation11], %s115
      %s117 = sshll.u32 [#allocation10], 4
      %s118 = int_to_ptr.vmem [resolvable:$true] %s117
      %123 = dma.hbm_to_vmem [thread:$0]  %s12, 8192, %s118, [#allocation11], 64, 64, 4
    $region53: #{vae_forward.1} parent=1 // pred_fallthru
      _
    // Predicated region
    $region54: #{vae_forward.1} parent=1 // pred_check
      _
    $region55: #{vae_forward.1} parent=1 // pred_check_branch
      %125 = sbr.rel (0) target = $region57
    $region56: #{vae_forward.1} parent=1 // pred_region
      %s127 = ssub.s32 64, 64
      %128 = vsyncadd [#allocation11], %s127
      %s129 = sshll.u32 [#allocation12], 4
      %s130 = int_to_ptr.vmem [resolvable:$true] %s129
      %135 = dma.hbm_to_vmem [thread:$0]  %s13, 64, %s130, [#allocation11], 16, 16, 1
    $region57: #{vae_forward.1} parent=1 // pred_fallthru
      _
    // Predicated region
    $region58: #{vae_forward.1} parent=1 // pred_check
      _
    $region59: #{vae_forward.1} parent=1 // pred_check_branch
      %137 = sbr.rel (0) target = $region61
    $region60: #{vae_forward.1} parent=1 // pred_region
      %s139 = ssub.s32 64, 64
      %140 = vsyncadd [#allocation14], %s139
      %s141 = sshll.u32 [#allocation13], 4
      %s142 = int_to_ptr.vmem [resolvable:$true] %s141
      %147 = dma.hbm_to_vmem [thread:$0]  %s14, 64, %s142, [#allocation14], 16, 16, 1
    $region61: #{vae_forward.1} parent=1 // pred_fallthru
      _
    // Predicated region
    $region62: #{vae_forward.1} parent=1 // pred_check
      _
    $region63: #{vae_forward.1} parent=1 // pred_check_branch
      %149 = sbr.rel (0) target = $region65
    $region64: #{vae_forward.1} parent=1 // pred_region
      %s151 = ssub.s32 64, 64
      %152 = vsyncadd [#allocation14], %s151
      %s153 = sshll.u32 [#allocation15], 4
      %s154 = int_to_ptr.vmem [resolvable:$true] %s153
      %159 = dma.hbm_to_vmem [thread:$0]  %s15, 64, %s154, [#allocation14], 16, 16, 1
    $region65: #{vae_forward.1} parent=1 // pred_fallthru
      _
    // Predicated region
    $region66: #{vae_forward.1} parent=1 // pred_check
      _
    $region67: #{vae_forward.1} parent=1 // pred_check_branch
      %161 = sbr.rel (0) target = $region69
    $region68: #{vae_forward.1} parent=1 // pred_region
      %s163 = ssub.s32 2048, 2048
      %164 = vsyncadd [#allocation17], %s163
      %s165 = sshll.u32 [#allocation16], 4
      %s166 = int_to_ptr.vmem [resolvable:$true] %s165
      %171 = dma.hbm_to_vmem [thread:$0]  %s16, 2048, %s166, [#allocation17], 128, 128, 8
    $region69: #{vae_forward.1} parent=1 // pred_fallthru
      _
    // Predicated region
    $region70: #{vae_forward.1} parent=1 // pred_check
      _
    $region71: #{vae_forward.1} parent=1 // pred_check_branch
      %173 = sbr.rel (0) target = $region73
    $region72: #{vae_forward.1} parent=1 // pred_region
      _
    $region73: #{vae_forward.1} parent=1 // pred_fallthru
      _
    // Predicated region
    $region74: #{vae_forward.1} parent=1 // pred_check
      _
    $region75: #{vae_forward.1} parent=1 // pred_check_branch
      %175 = sbr.rel (0) target = $region77
    $region76: #{vae_forward.1} parent=1 // pred_region
      _
    $region77: #{vae_forward.1} parent=1 // pred_fallthru
      _
    // Predicated region
    $region78: #{vae_forward.1} parent=1 // pred_check
      _
    $region79: #{vae_forward.1} parent=1 // pred_check_branch
      %177 = sbr.rel (0) target = $region81
    $region80: #{vae_forward.1} parent=1 // pred_region
      _
    $region81: #{vae_forward.1} parent=1 // pred_fallthru
      _
    // Predicated region
    $region82: #{vae_forward.1} parent=1 // pred_check
      _
    $region83: #{vae_forward.1} parent=1 // pred_check_branch
      %179 = sbr.rel (0) target = $region85
    $region84: #{vae_forward.1} parent=1 // pred_region
      %s181 = ssub.s32 16, 16
      %182 = vsyncadd [#allocation17], %s181
      %s184 = sshll.u32 [#allocation18], 4
      %s185 = int_to_ptr.vmem [resolvable:$true] %s184
      %187 = dma.hbm_to_vmem [thread:$0]  %s20, 16, %s185, [#allocation17]
    $region85: #{vae_forward.1} parent=1 // pred_fallthru
      _
    // Predicated region
    $region86: #{vae_forward.1} parent=1 // pred_check
      _
    $region87: #{vae_forward.1} parent=1 // pred_check_branch
      %189 = sbr.rel (0) target = $region89
    $region88: #{vae_forward.1} parent=1 // pred_region
      %s191 = ssub.s32 1024, 1024
      %192 = vsyncadd [#allocation20], %s191
      %s193 = sshll.u32 [#allocation19], 4
      %s194 = int_to_ptr.vmem [resolvable:$true] %s193
      %199 = dma.hbm_to_vmem [thread:$0]  %s21, 1024, %s194, [#allocation20], 64, 64, 4
    $region89: #{vae_forward.1} parent=1 // pred_fallthru
      _
    // Predicated region
    $region90: #{vae_forward.1} parent=1 // pred_check
      _
    $region91: #{vae_forward.1} parent=1 // pred_check_branch
      %201 = sbr.rel (0) target = $region93
    $region92: #{vae_forward.1} parent=1 // pred_region
      _
    $region93: #{vae_forward.1} parent=1 // pred_fallthru
      _
    // Predicated region
    $region94: #{vae_forward.1} parent=1 // pred_check
      _
    $region95: #{vae_forward.1} parent=1 // pred_check_branch
      %203 = sbr.rel (0) target = $region97
    $region96: #{vae_forward.1} parent=1 // pred_region
      %204 = dma.done [#allocation3], 4096
    $region97: #{vae_forward.1} parent=1 // pred_fallthru
      _
    // Predicated region
    $region98: #{vae_forward.1} parent=1 // pred_check
      _
    $region99: #{vae_forward.1} parent=1 // pred_check_branch
      %206 = sbr.rel (0) target = $region101
    $region100: #{vae_forward.1} parent=1 // pred_region
      %207 = dma.done [#allocation5], 64
    $region101: #{vae_forward.1} parent=1 // pred_fallthru
      _
    // Predicated region
    $region102: #{vae_forward.1} parent=1 // pred_check
      _
    $region103: #{vae_forward.1} parent=1 // pred_check_branch
      %209 = sbr.rel (0) target = $region105
    $region104: #{vae_forward.1} parent=1 // pred_region
      %210 = dma.done [#allocation5], 64
    $region105: #{vae_forward.1} parent=1 // pred_fallthru
      _
    // Predicated region
    $region106: #{vae_forward.1} parent=1 // pred_check
      _
    $region107: #{vae_forward.1} parent=1 // pred_check_branch
      %212 = sbr.rel (0) target = $region109
    $region108: #{vae_forward.1} parent=1 // pred_region
      %213 = dma.done [#allocation8], 8192
    $region109: #{vae_forward.1} parent=1 // pred_fallthru
      _
    // Predicated region
    $region110: #{vae_forward.1} parent=1 // pred_check
      _
    $region111: #{vae_forward.1} parent=1 // pred_check_branch
      %215 = sbr.rel (0) target = $region113
    $region112: #{vae_forward.1} parent=1 // pred_region
      %216 = dma.done [#allocation8], 128
    $region113: #{vae_forward.1} parent=1 // pred_fallthru
      _
    // Predicated region
    $region114: #{vae_forward.1} parent=1 // pred_check
      _
    $region115: #{vae_forward.1} parent=1 // pred_check_branch
      %218 = sbr.rel (0) target = $region117
    $region116: #{vae_forward.1} parent=1 // pred_region
      %219 = dma.done [#allocation11], 8192
    $region117: #{vae_forward.1} parent=1 // pred_fallthru
      _
    // Predicated region
    $region118: #{vae_forward.1} parent=1 // pred_check
      _
    $region119: #{vae_forward.1} parent=1 // pred_check_branch
      %221 = sbr.rel (0) target = $region121
    $region120: #{vae_forward.1} parent=1 // pred_region
      %222 = dma.done [#allocation11], 64
    $region121: #{vae_forward.1} parent=1 // pred_fallthru
      _
    // Predicated region
    $region122: #{vae_forward.1} parent=1 // pred_check
      _
    $region123: #{vae_forward.1} parent=1 // pred_check_branch
      %224 = sbr.rel (0) target = $region125
    $region124: #{vae_forward.1} parent=1 // pred_region
      %225 = dma.done [#allocation14], 64
    $region125: #{vae_forward.1} parent=1 // pred_fallthru
      _
    // Predicated region
    $region126: #{vae_forward.1} parent=1 // pred_check
      _
    $region127: #{vae_forward.1} parent=1 // pred_check_branch
      %227 = sbr.rel (0) target = $region129
    $region128: #{vae_forward.1} parent=1 // pred_region
      %228 = dma.done [#allocation14], 64
    $region129: #{vae_forward.1} parent=1 // pred_fallthru
      _
    // Predicated region
    $region130: #{vae_forward.1} parent=1 // pred_check
      _
    $region131: #{vae_forward.1} parent=1 // pred_check_branch
      %230 = sbr.rel (0) target = $region133
    $region132: #{vae_forward.1} parent=1 // pred_region
      %231 = dma.done [#allocation17], 2048
    $region133: #{vae_forward.1} parent=1 // pred_fallthru
      _
    // Predicated region
    $region134: #{vae_forward.1} parent=1 // pred_check
      _
    $region135: #{vae_forward.1} parent=1 // pred_check_branch
      %233 = sbr.rel (0) target = $region137
    $region136: #{vae_forward.1} parent=1 // pred_region
      %234 = dma.done [#allocation17], 16
    $region137: #{vae_forward.1} parent=1 // pred_fallthru
      _
    // Predicated region
    $region138: #{vae_forward.1} parent=1 // pred_check
      _
    $region139: #{vae_forward.1} parent=1 // pred_check_branch
      %236 = sbr.rel (0) target = $region141
    $region140: #{vae_forward.1} parent=1 // pred_region
      %237 = dma.done [#allocation20], 1024
    $region141: #{vae_forward.1} parent=1 // pred_fallthru
      _
    %v238 = vld [vmem:[%s0] sm:$0xff]
    %v239 = vld [vmem:[%s1] sm:$0xff]
    %v240 = vld [vmem:[%s3] sm:$0xff]
    %v241 = vld [vmem:[%s18] sm:$0xff]
    %v242 = vld [vmem:[%s18 + $0x8] sm:$0xf]
    %244 = vset.pattern.permute.xlu0 0
    %245 = vperm.xlu0 %244, %v239
    %v246 = vpop.permute.xlu0 %245
    %v250 = vlaneseq
    %v251 = vshrl.u32 %v250, 7
    %v252 = vsub.s32 0, %v251
    %v253 = vrot.slane %v241, %v252
    %v254 = vlaneseq
    %v255 = vshrl.u32 %v254, 7
    %v256 = vsub.s32 4, %v255
    %v257 = vrot.slane %v241, %v256
    %v258 = vlaneseq
    %v259 = vshrl.u32 %v258, 7
    %v260 = vsub.s32 0, %v259
    %v261 = vrot.slane %v242, %v260
    %v265 = vlaneseq
    %v266 = vshrl.u32 %v265, 7
    %v267 = vsub.s32 0, %v266
    %v268 = vrot.slane %v253, %v267
    %v269 = vlaneseq
    %v270 = vshrl.u32 %v269, 7
    %v271 = vsub.s32 0, %v270
    %v272 = vrot.slane %v257, %v271
    %v273 = vlaneseq
    %v274 = vshrl.u32 %v273, 7
    %v275 = vsub.s32 0, %v274
    %v276 = vrot.slane %v261, %v275
    %v277 = vmul.f32 %v246, %v268
    %v278 = vmul.f32 %v246, %v272
    %v279 = vmul.f32 %v246, %v276
    %280 = vset.pattern.permute.xlu0 1
    %281 = vperm.xlu0 %280, %v239
    %v282 = vpop.permute.xlu0 %281
    %v284 = vlaneseq
    %v285 = vshrl.u32 %v284, 7
    %v286 = vsub.s32 1, %v285
    %v287 = vrot.slane %v241, %v286
    %v288 = vlaneseq
    %v289 = vshrl.u32 %v288, 7
    %v290 = vsub.s32 5, %v289
    %v291 = vrot.slane %v241, %v290
    %v292 = vlaneseq
    %v293 = vshrl.u32 %v292, 7
    %v294 = vsub.s32 1, %v293
    %v295 = vrot.slane %v242, %v294
    %v299 = vlaneseq
    %v300 = vshrl.u32 %v299, 7
    %v301 = vsub.s32 1, %v300
    %v302 = vrot.slane %v287, %v301
    %v303 = vlaneseq
    %v304 = vshrl.u32 %v303, 7
    %v305 = vsub.s32 1, %v304
    %v306 = vrot.slane %v291, %v305
    %v307 = vlaneseq
    %v308 = vshrl.u32 %v307, 7
    %v309 = vsub.s32 1, %v308
    %v310 = vrot.slane %v295, %v309
    %v311 = vmul.f32 %v282, %v302
    %v312 = vmul.f32 %v282, %v306
    %v313 = vmul.f32 %v282, %v310
    %v314 = vadd.f32 %v277, %v311
    %v315 = vadd.f32 %v278, %v312
    %v316 = vadd.f32 %v279, %v313
    %317 = vset.pattern.permute.xlu0 2
    %318 = vperm.xlu0 %317, %v239
    %v319 = vpop.permute.xlu0 %318
    %v321 = vlaneseq
    %v322 = vshrl.u32 %v321, 7
    %v323 = vsub.s32 2, %v322
    %v324 = vrot.slane %v241, %v323
    %v325 = vlaneseq
    %v326 = vshrl.u32 %v325, 7
    %v327 = vsub.s32 6, %v326
    %v328 = vrot.slane %v241, %v327
    %v329 = vlaneseq
    %v330 = vshrl.u32 %v329, 7
    %v331 = vsub.s32 2, %v330
    %v332 = vrot.slane %v242, %v331
    %v336 = vlaneseq
    %v337 = vshrl.u32 %v336, 7
    %v338 = vsub.s32 2, %v337
    %v339 = vrot.slane %v324, %v338
    %v340 = vlaneseq
    %v341 = vshrl.u32 %v340, 7
    %v342 = vsub.s32 2, %v341
    %v343 = vrot.slane %v328, %v342
    %v344 = vlaneseq
    %v345 = vshrl.u32 %v344, 7
    %v346 = vsub.s32 2, %v345
    %v347 = vrot.slane %v332, %v346
    %v348 = vmul.f32 %v319, %v339
    %v349 = vmul.f32 %v319, %v343
    %v350 = vmul.f32 %v319, %v347
    %v351 = vadd.f32 %v314, %v348
    %v352 = vadd.f32 %v315, %v349
    %v353 = vadd.f32 %v316, %v350
    %354 = vset.pattern.permute.xlu0 3
    %355 = vperm.xlu0 %354, %v239
    %v356 = vpop.permute.xlu0 %355
    %v358 = vlaneseq
    %v359 = vshrl.u32 %v358, 7
    %v360 = vsub.s32 3, %v359
    %v361 = vrot.slane %v241, %v360
    %v362 = vlaneseq
    %v363 = vshrl.u32 %v362, 7
    %v364 = vsub.s32 7, %v363
    %v365 = vrot.slane %v241, %v364
    %v366 = vlaneseq
    %v367 = vshrl.u32 %v366, 7
    %v368 = vsub.s32 3, %v367
    %v369 = vrot.slane %v242, %v368
    %v373 = vlaneseq
    %v374 = vshrl.u32 %v373, 7
    %v375 = vsub.s32 3, %v374
    %v376 = vrot.slane %v361, %v375
    %v377 = vlaneseq
    %v378 = vshrl.u32 %v377, 7
    %v379 = vsub.s32 3, %v378
    %v380 = vrot.slane %v365, %v379
    %v381 = vlaneseq
    %v382 = vshrl.u32 %v381, 7
    %v383 = vsub.s32 3, %v382
    %v384 = vrot.slane %v369, %v383
    %v385 = vmul.f32 %v356, %v376
    %v386 = vmul.f32 %v356, %v380
    %v387 = vmul.f32 %v356, %v384
    %v388 = vadd.f32 %v351, %v385
    %v389 = vadd.f32 %v352, %v386
    %v390 = vadd.f32 %v353, %v387
    %v391 = vld [vmem:[%s4] sm:$0xf]
    %v392 = vld [vmem:[%s4 + $0x4] sm:$0xf]
    %v393 = vld [vmem:[%s4 + $0x8] sm:$0xf]
    %v394 = vld [vmem:[%s4 + $0xc] sm:$0xf]
    %v395 = vld [vmem:[%s4 + $0x10] sm:$0xf]
    %v396 = vld [vmem:[%s4 + $0x14] sm:$0xf]
    %v397 = vld [vmem:[%s4 + $0x18] sm:$0xf]
    %v398 = vld [vmem:[%s4 + $0x1c] sm:$0xf]
    %v399 = vunpack.c.l.bf16 %v391
    %v400 = vunpack.c.l.bf16 %v392
    %v401 = vunpack.c.l.bf16 %v393
    %v402 = vunpack.c.l.bf16 %v394
    %v403 = vunpack.c.l.bf16 %v395
    %v404 = vunpack.c.l.bf16 %v396
    %v405 = vunpack.c.l.bf16 %v397
    %v406 = vunpack.c.l.bf16 %v398
    %v407 = vld [vmem:[%s5] sm:$0x1]
    %v409 = vlaneseq
    %v410 = vshrl.u32 %v409, 7
    %v411 = vsub.s32 0, %v410
    %v412 = vrot.slane %v407, %v411
    %vm414 = vcmask 523264
    %v416 = vsel %vm414, %v238, 0
    %418 = vmatprep.subr.mxu0 0.0
    %419 = vmatpush1.msra.mxu0 %v399
    %420 = vmatprep.subr.mxu0 0.0
    %421 = vmatpush1.msra.mxu0 %v400
    %422 = vmatprep.subr.mxu0 0.0
    %423 = vmatpush1.msra.mxu0 %v401
    %424 = vmatprep.subr.mxu0 0.0
    %425 = vmatpush1.msra.mxu0 %v402
    %426 = vmatprep.subr.mxu0 0.0
    %427 = vmatpush1.msra.mxu0 %v403
    %428 = vmatprep.subr.mxu0 0.0
    %429 = vmatpush1.msra.mxu0 %v404
    %430 = vmatprep.subr.mxu0 0.0
    %431 = vmatpush1.msra.mxu0 %v405
    %432 = vmatprep.subr.mxu0 0.0
    %433 = vmatpush1.msra.mxu0 %v406
    %434 = vmatprep.subr.mxu0 0.0
    %435 = vmatpush1.msra.mxu0 0.0
    %436 = vmatprep.subr.mxu0 0.0
    %437 = vmatpush1.msra.mxu0 0.0
    %438 = vmatprep.subr.mxu0 0.0
    %439 = vmatpush1.msra.mxu0 0.0
    %440 = vmatprep.subr.mxu0 0.0
    %441 = vmatpush1.msra.mxu0 0.0
    %442 = vmatprep.subr.mxu0 0.0
    %443 = vmatpush1.msra.mxu0 0.0
    %444 = vmatprep.subr.mxu0 0.0
    %445 = vmatpush1.msra.mxu0 0.0
    %446 = vmatprep.subr.mxu0 0.0
    %447 = vmatpush1.msra.mxu0 0.0
    %448 = vmatprep.subr.mxu0 0.0
    %449 = vmatpush1.msra.mxu0 0.0
    %450 = vmatprep.subr.mxu0 0.0
    %451 = vmatpush1.msra.mxu0 0.0
    %452 = vmatprep.subr.mxu0 0.0
    %453 = vmatpush1.msra.mxu0 0.0
    %454 = vmatprep.subr.mxu0 0.0
    %455 = vmatpush1.msra.mxu0 0.0
    %456 = vmatprep.subr.mxu0 0.0
    %457 = vmatpush1.msra.mxu0 0.0
    %458 = vmatprep.subr.mxu0 0.0
    %459 = vmatpush1.msra.mxu0 0.0
    %460 = vmatprep.subr.mxu0 0.0
    %461 = vmatpush1.msra.mxu0 0.0
    %462 = vmatprep.subr.mxu0 0.0
    %463 = vmatpush1.msra.mxu0 0.0
    %464 = vmatprep.subr.mxu0 0.0
    %465 = vmatpush1.msra.mxu0 0.0
    %466 = vmatprep.subr.mxu0 0.0
    %467 = vmatpush1.msra.mxu0 0.0
    %468 = vmatprep.subr.mxu0 0.0
    %469 = vmatpush1.msra.mxu0 0.0
    %470 = vmatprep.subr.mxu0 0.0
    %471 = vmatpush1.msra.mxu0 0.0
    %472 = vmatprep.subr.mxu0 0.0
    %473 = vmatpush1.msra.mxu0 0.0
    %474 = vmatprep.subr.mxu0 0.0
    %475 = vmatpush1.msra.mxu0 0.0
    %476 = vmatprep.subr.mxu0 0.0
    %477 = vmatpush1.msra.mxu0 0.0
    %478 = vmatprep.subr.mxu0 0.0
    %479 = vmatpush1.msra.mxu0 0.0
    %480 = vmatprep.subr.mxu0 0.0
    %481 = vmatpush1.msra.mxu0 0.0
    %482 = vmatprep.mubr.f32.mxu0 0.0
    %483 = vmatmul.mubr.f32.gmra.mrb[0].mxu0 %v416
    %v484 = vpop.f32.mrb[0].mxu0
    %v485 = vadd.f32 %v412, %v484
    %v486 = vpop.f32.mrb[0].mxu0
    %487 = vdwg.mxu0
    %v488 = vadd.f32 %v485, %v240
    %v489 = vld [vmem:[#allocation2] sm:$0xf]
    %v490 = vld [vmem:[#allocation2 + $0x4] sm:$0xf]
    %v491 = vld [vmem:[#allocation2 + $0x8] sm:$0xf]
    %v492 = vld [vmem:[#allocation2 + $0xc] sm:$0xf]
    %v493 = vld [vmem:[#allocation2 + $0x10] sm:$0xf]
    %v494 = vld [vmem:[#allocation2 + $0x14] sm:$0xf]
    %v495 = vld [vmem:[#allocation2 + $0x18] sm:$0xf]
    %v496 = vld [vmem:[#allocation2 + $0x1c] sm:$0xf]
    %v497 = vld [vmem:[#allocation2 + $0x20] sm:$0xf]
    %v498 = vld [vmem:[#allocation2 + $0x24] sm:$0xf]
    %v499 = vld [vmem:[#allocation2 + $0x28] sm:$0xf]
    %v500 = vld [vmem:[#allocation2 + $0x2c] sm:$0xf]
    %v501 = vld [vmem:[#allocation2 + $0x30] sm:$0xf]
    %v502 = vld [vmem:[#allocation2 + $0x34] sm:$0xf]
    %v503 = vld [vmem:[#allocation2 + $0x38] sm:$0xf]
    %v504 = vld [vmem:[#allocation2 + $0x3c] sm:$0xf]
    %v505 = vunpack.c.l.bf16 %v489
    %v506 = vunpack.c.l.bf16 %v490
    %v507 = vunpack.c.l.bf16 %v491
    %v508 = vunpack.c.l.bf16 %v492
    %v509 = vunpack.c.l.bf16 %v493
    %v510 = vunpack.c.l.bf16 %v494
    %v511 = vunpack.c.l.bf16 %v495
    %v512 = vunpack.c.l.bf16 %v496
    %v513 = vunpack.c.l.bf16 %v497
    %v514 = vunpack.c.l.bf16 %v498
    %v515 = vunpack.c.l.bf16 %v499
    %v516 = vunpack.c.l.bf16 %v500
    %v517 = vunpack.c.l.bf16 %v501
    %v518 = vunpack.c.l.bf16 %v502
    %v519 = vunpack.c.l.bf16 %v503
    %v520 = vunpack.c.l.bf16 %v504
    %v521 = vld [vmem:[%s7] sm:$0x1]
    %v523 = vlaneseq
    %v524 = vshrl.u32 %v523, 7
    %v525 = vsub.s32 0, %v524
    %v526 = vrot.slane %v521, %v525
    %528 = vmatprep.subr.mxu0 0.0
    %529 = vmatpush1.msra.mxu0 %v505
    %530 = vmatprep.subr.mxu0 0.0
    %531 = vmatpush1.msra.mxu0 %v506
    %532 = vmatprep.subr.mxu0 0.0
    %533 = vmatpush1.msra.mxu0 %v507
    %534 = vmatprep.subr.mxu0 0.0
    %535 = vmatpush1.msra.mxu0 %v508
    %536 = vmatprep.subr.mxu0 0.0
    %537 = vmatpush1.msra.mxu0 %v509
    %538 = vmatprep.subr.mxu0 0.0
    %539 = vmatpush1.msra.mxu0 %v510
    %540 = vmatprep.subr.mxu0 0.0
    %541 = vmatpush1.msra.mxu0 %v511
    %542 = vmatprep.subr.mxu0 0.0
    %543 = vmatpush1.msra.mxu0 %v512
    %544 = vmatprep.subr.mxu0 0.0
    %545 = vmatpush1.msra.mxu0 %v513
    %546 = vmatprep.subr.mxu0 0.0
    %547 = vmatpush1.msra.mxu0 %v514
    %548 = vmatprep.subr.mxu0 0.0
    %549 = vmatpush1.msra.mxu0 %v515
    %550 = vmatprep.subr.mxu0 0.0
    %551 = vmatpush1.msra.mxu0 %v516
    %552 = vmatprep.subr.mxu0 0.0
    %553 = vmatpush1.msra.mxu0 %v517
    %554 = vmatprep.subr.mxu0 0.0
    %555 = vmatpush1.msra.mxu0 %v518
    %556 = vmatprep.subr.mxu0 0.0
    %557 = vmatpush1.msra.mxu0 %v519
    %558 = vmatprep.subr.mxu0 0.0
    %559 = vmatpush1.msra.mxu0 %v520
    %560 = vmatprep.subr.mxu0 0.0
    %561 = vmatpush1.msra.mxu0 0.0
    %562 = vmatprep.subr.mxu0 0.0
    %563 = vmatpush1.msra.mxu0 0.0
    %564 = vmatprep.subr.mxu0 0.0
    %565 = vmatpush1.msra.mxu0 0.0
    %566 = vmatprep.subr.mxu0 0.0
    %567 = vmatpush1.msra.mxu0 0.0
    %568 = vmatprep.subr.mxu0 0.0
    %569 = vmatpush1.msra.mxu0 0.0
    %570 = vmatprep.subr.mxu0 0.0
    %571 = vmatpush1.msra.mxu0 0.0
    %572 = vmatprep.subr.mxu0 0.0
    %573 = vmatpush1.msra.mxu0 0.0
    %574 = vmatprep.subr.mxu0 0.0
    %575 = vmatpush1.msra.mxu0 0.0
    %576 = vmatprep.subr.mxu0 0.0
    %577 = vmatpush1.msra.mxu0 0.0
    %578 = vmatprep.subr.mxu0 0.0
    %579 = vmatpush1.msra.mxu0 0.0
    %580 = vmatprep.subr.mxu0 0.0
    %581 = vmatpush1.msra.mxu0 0.0
    %582 = vmatprep.subr.mxu0 0.0
    %583 = vmatpush1.msra.mxu0 0.0
    %584 = vmatprep.subr.mxu0 0.0
    %585 = vmatpush1.msra.mxu0 0.0
    %586 = vmatprep.subr.mxu0 0.0
    %587 = vmatpush1.msra.mxu0 0.0
    %588 = vmatprep.subr.mxu0 0.0
    %589 = vmatpush1.msra.mxu0 0.0
    %590 = vmatprep.subr.mxu0 0.0
    %591 = vmatpush1.msra.mxu0 0.0
    %592 = vmatprep.mubr.f32.mxu0 0.0
    %593 = vmatmul.mubr.f32.gmra.mrb[0].mxu0 %v488
    %v594 = vpop.f32.mrb[0].mxu0
    %v595 = vadd.f32 %v526, %v594
    %v596 = vpop.f32.mrb[0].mxu0
    %597 = vdwg.mxu0
    %v598 = vadd.f32 %v488, %v595
    %v599 = vld [vmem:[#allocation4] sm:$0x1]
    %v600 = vld [vmem:[#allocation6] sm:$0x1]
    %601 = vadd.xlane.f32.xlu0 %v598
    %v602 = vpop.xlane.xlu0 %601
    %v603 = vrcp.pop 128.0
    %v604 = vmul.f32 %v602, %v603
    %v605 = vmul.f32 %v598, %v598
    %606 = vadd.xlane.f32.xlu0 %v605
    %v607 = vpop.xlane.xlu0 %606
    %v608 = vmul.f32 %v607, %v603
    %v609 = vmul.f32 %v604, %v604
    %v610 = vsub.f32 %v608, %v609
    %v611 = vsub.f32 %v598, %v604
    %v612 = vadd.f32 %v610, 1e-05
    %v613 = vrsqrt.pop %v612
    %v614 = vmul.f32 %v611, %v613
    %v616 = vlaneseq
    %v617 = vshrl.u32 %v616, 7
    %v618 = vsub.s32 0, %v617
    %v619 = vrot.slane %v599, %v618
    %v621 = vmul.f32 %v614, %v619
    %v623 = vlaneseq
    %v624 = vshrl.u32 %v623, 7
    %v625 = vsub.s32 0, %v624
    %v626 = vrot.slane %v600, %v625
    %v628 = vadd.f32 %v621, %v626
    %v629 = vld [vmem:[#allocation7] sm:$0xff]
    %v630 = vld [vmem:[#allocation7 + $0x8] sm:$0xff]
    %v631 = vld [vmem:[#allocation7 + $0x10] sm:$0xff]
    %v632 = vld [vmem:[#allocation7 + $0x18] sm:$0xff]
    %v633 = vld [vmem:[#allocation7 + $0x20] sm:$0xff]
    %v634 = vld [vmem:[#allocation7 + $0x28] sm:$0xff]
    %v635 = vld [vmem:[#allocation7 + $0x30] sm:$0xff]
    %v636 = vld [vmem:[#allocation7 + $0x38] sm:$0xff]
    %v637 = vld [vmem:[#allocation7 + $0x40] sm:$0xff]
    %v638 = vld [vmem:[#allocation7 + $0x48] sm:$0xff]
    %v639 = vld [vmem:[#allocation7 + $0x50] sm:$0xff]
    %v640 = vld [vmem:[#allocation7 + $0x58] sm:$0xff]
    %v641 = vld [vmem:[#allocation7 + $0x60] sm:$0xff]
    %v642 = vld [vmem:[#allocation7 + $0x68] sm:$0xff]
    %v643 = vld [vmem:[#allocation7 + $0x70] sm:$0xff]
    %v644 = vld [vmem:[#allocation7 + $0x78] sm:$0xff]
    %v645 = vunpack.c.l.bf16 %v629
    %v646 = vunpack.c.h.bf16 %v629
    %v647 = vunpack.c.l.bf16 %v630
    %v648 = vunpack.c.h.bf16 %v630
    %v649 = vunpack.c.l.bf16 %v631
    %v650 = vunpack.c.h.bf16 %v631
    %v651 = vunpack.c.l.bf16 %v632
    %v652 = vunpack.c.h.bf16 %v632
    %v653 = vunpack.c.l.bf16 %v633
    %v654 = vunpack.c.h.bf16 %v633
    %v655 = vunpack.c.l.bf16 %v634
    %v656 = vunpack.c.h.bf16 %v634
    %v657 = vunpack.c.l.bf16 %v635
    %v658 = vunpack.c.h.bf16 %v635
    %v659 = vunpack.c.l.bf16 %v636
    %v660 = vunpack.c.h.bf16 %v636
    %v661 = vunpack.c.l.bf16 %v637
    %v662 = vunpack.c.h.bf16 %v637
    %v663 = vunpack.c.l.bf16 %v638
    %v664 = vunpack.c.h.bf16 %v638
    %v665 = vunpack.c.l.bf16 %v639
    %v666 = vunpack.c.h.bf16 %v639
    %v667 = vunpack.c.l.bf16 %v640
    %v668 = vunpack.c.h.bf16 %v640
    %v669 = vunpack.c.l.bf16 %v641
    %v670 = vunpack.c.h.bf16 %v641
    %v671 = vunpack.c.l.bf16 %v642
    %v672 = vunpack.c.h.bf16 %v642
    %v673 = vunpack.c.l.bf16 %v643
    %v674 = vunpack.c.h.bf16 %v643
    %v675 = vunpack.c.l.bf16 %v644
    %v676 = vunpack.c.h.bf16 %v644
    %v677 = vld [vmem:[#allocation9] sm:$0x3]
    %v679 = vlaneseq
    %v680 = vshrl.u32 %v679, 7
    %v681 = vsub.s32 0, %v680
    %v682 = vrot.slane %v677, %v681
    %v683 = vlaneseq
    %v684 = vshrl.u32 %v683, 7
    %v685 = vsub.s32 1, %v684
    %v686 = vrot.slane %v677, %v685
    %689 = vmatprep.subr.mxu0 %v646
    %690 = vmatpush1.msra.mxu0 %v645
    %691 = vmatprep.subr.mxu0 %v648
    %692 = vmatpush1.msra.mxu0 %v647
    %693 = vmatprep.subr.mxu0 %v650
    %694 = vmatpush1.msra.mxu0 %v649
    %695 = vmatprep.subr.mxu0 %v652
    %696 = vmatpush1.msra.mxu0 %v651
    %697 = vmatprep.subr.mxu0 %v654
    %698 = vmatpush1.msra.mxu0 %v653
    %699 = vmatprep.subr.mxu0 %v656
    %700 = vmatpush1.msra.mxu0 %v655
    %701 = vmatprep.subr.mxu0 %v658
    %702 = vmatpush1.msra.mxu0 %v657
    %703 = vmatprep.subr.mxu0 %v660
    %704 = vmatpush1.msra.mxu0 %v659
    %705 = vmatprep.subr.mxu0 %v662
    %706 = vmatpush1.msra.mxu0 %v661
    %707 = vmatprep.subr.mxu0 %v664
    %708 = vmatpush1.msra.mxu0 %v663
    %709 = vmatprep.subr.mxu0 %v666
    %710 = vmatpush1.msra.mxu0 %v665
    %711 = vmatprep.subr.mxu0 %v668
    %712 = vmatpush1.msra.mxu0 %v667
    %713 = vmatprep.subr.mxu0 %v670
    %714 = vmatpush1.msra.mxu0 %v669
    %715 = vmatprep.subr.mxu0 %v672
    %716 = vmatpush1.msra.mxu0 %v671
    %717 = vmatprep.subr.mxu0 %v674
    %718 = vmatpush1.msra.mxu0 %v673
    %719 = vmatprep.subr.mxu0 %v676
    %720 = vmatpush1.msra.mxu0 %v675
    %721 = vmatprep.subr.mxu0 0.0
    %722 = vmatpush1.msra.mxu0 0.0
    %723 = vmatprep.subr.mxu0 0.0
    %724 = vmatpush1.msra.mxu0 0.0
    %725 = vmatprep.subr.mxu0 0.0
    %726 = vmatpush1.msra.mxu0 0.0
    %727 = vmatprep.subr.mxu0 0.0
    %728 = vmatpush1.msra.mxu0 0.0
    %729 = vmatprep.subr.mxu0 0.0
    %730 = vmatpush1.msra.mxu0 0.0
    %731 = vmatprep.subr.mxu0 0.0
    %732 = vmatpush1.msra.mxu0 0.0
    %733 = vmatprep.subr.mxu0 0.0
    %734 = vmatpush1.msra.mxu0 0.0
    %735 = vmatprep.subr.mxu0 0.0
    %736 = vmatpush1.msra.mxu0 0.0
    %737 = vmatprep.subr.mxu0 0.0
    %738 = vmatpush1.msra.mxu0 0.0
    %739 = vmatprep.subr.mxu0 0.0
    %740 = vmatpush1.msra.mxu0 0.0
    %741 = vmatprep.subr.mxu0 0.0
    %742 = vmatpush1.msra.mxu0 0.0
    %743 = vmatprep.subr.mxu0 0.0
    %744 = vmatpush1.msra.mxu0 0.0
    %745 = vmatprep.subr.mxu0 0.0
    %746 = vmatpush1.msra.mxu0 0.0
    %747 = vmatprep.subr.mxu0 0.0
    %748 = vmatpush1.msra.mxu0 0.0
    %749 = vmatprep.subr.mxu0 0.0
    %750 = vmatpush1.msra.mxu0 0.0
    %751 = vmatprep.subr.mxu0 0.0
    %752 = vmatpush1.msra.mxu0 0.0
    %753 = vmatprep.mubr.f32.mxu0 0.0
    %754 = vmatmul.mubr.f32.gmra.mrb[0].mxu0 %v628
    %v755 = vpop.f32.mrb[0].mxu0
    %v756 = vadd.f32 %v682, %v755
    %v757 = vpop.f32.mrb[0].mxu0
    %v758 = vadd.f32 %v686, %v757
    %759 = vdwg.mxu0
    %v760 = vmax.f32 %v756, 0.0
    %v761 = vmax.f32 %v758, 0.0
    %v762 = vld [vmem:[#allocation10] sm:$0xf]
    %v763 = vld [vmem:[#allocation10 + $0x4] sm:$0xf]
    %v764 = vld [vmem:[#allocation10 + $0x8] sm:$0xf]
    %v765 = vld [vmem:[#allocation10 + $0xc] sm:$0xf]
    %v766 = vld [vmem:[#allocation10 + $0x10] sm:$0xf]
    %v767 = vld [vmem:[#allocation10 + $0x14] sm:$0xf]
    %v768 = vld [vmem:[#allocation10 + $0x18] sm:$0xf]
    %v769 = vld [vmem:[#allocation10 + $0x1c] sm:$0xf]
    %v770 = vld [vmem:[#allocation10 + $0x20] sm:$0xf]
    %v771 = vld [vmem:[#allocation10 + $0x24] sm:$0xf]
    %v772 = vld [vmem:[#allocation10 + $0x28] sm:$0xf]
    %v773 = vld [vmem:[#allocation10 + $0x2c] sm:$0xf]
    %v774 = vld [vmem:[#allocation10 + $0x30] sm:$0xf]
    %v775 = vld [vmem:[#allocation10 + $0x34] sm:$0xf]
    %v776 = vld [vmem:[#allocation10 + $0x38] sm:$0xf]
    %v777 = vld [vmem:[#allocation10 + $0x3c] sm:$0xf]
    %v778 = vld [vmem:[#allocation10 + $0x40] sm:$0xf]
    %v779 = vld [vmem:[#allocation10 + $0x44] sm:$0xf]
    %v780 = vld [vmem:[#allocation10 + $0x48] sm:$0xf]
    %v781 = vld [vmem:[#allocation10 + $0x4c] sm:$0xf]
    %v782 = vld [vmem:[#allocation10 + $0x50] sm:$0xf]
    %v783 = vld [vmem:[#allocation10 + $0x54] sm:$0xf]
    %v784 = vld [vmem:[#allocation10 + $0x58] sm:$0xf]
    %v785 = vld [vmem:[#allocation10 + $0x5c] sm:$0xf]
    %v786 = vld [vmem:[#allocation10 + $0x60] sm:$0xf]
    %v787 = vld [vmem:[#allocation10 + $0x64] sm:$0xf]
    %v788 = vld [vmem:[#allocation10 + $0x68] sm:$0xf]
    %v789 = vld [vmem:[#allocation10 + $0x6c] sm:$0xf]
    %v790 = vld [vmem:[#allocation10 + $0x70] sm:$0xf]
    %v791 = vld [vmem:[#allocation10 + $0x74] sm:$0xf]
    %v792 = vld [vmem:[#allocation10 + $0x78] sm:$0xf]
    %v793 = vld [vmem:[#allocation10 + $0x7c] sm:$0xf]
    %v794 = vunpack.c.l.bf16 %v762
    %v795 = vunpack.c.l.bf16 %v763
    %v796 = vunpack.c.l.bf16 %v764
    %v797 = vunpack.c.l.bf16 %v765
    %v798 = vunpack.c.l.bf16 %v766
    %v799 = vunpack.c.l.bf16 %v767
    %v800 = vunpack.c.l.bf16 %v768
    %v801 = vunpack.c.l.bf16 %v769
    %v802 = vunpack.c.l.bf16 %v770
    %v803 = vunpack.c.l.bf16 %v771
    %v804 = vunpack.c.l.bf16 %v772
    %v805 = vunpack.c.l.bf16 %v773
    %v806 = vunpack.c.l.bf16 %v774
    %v807 = vunpack.c.l.bf16 %v775
    %v808 = vunpack.c.l.bf16 %v776
    %v809 = vunpack.c.l.bf16 %v777
    %v810 = vunpack.c.l.bf16 %v778
    %v811 = vunpack.c.l.bf16 %v779
    %v812 = vunpack.c.l.bf16 %v780
    %v813 = vunpack.c.l.bf16 %v781
    %v814 = vunpack.c.l.bf16 %v782
    %v815 = vunpack.c.l.bf16 %v783
    %v816 = vunpack.c.l.bf16 %v784
    %v817 = vunpack.c.l.bf16 %v785
    %v818 = vunpack.c.l.bf16 %v786
    %v819 = vunpack.c.l.bf16 %v787
    %v820 = vunpack.c.l.bf16 %v788
    %v821 = vunpack.c.l.bf16 %v789
    %v822 = vunpack.c.l.bf16 %v790
    %v823 = vunpack.c.l.bf16 %v791
    %v824 = vunpack.c.l.bf16 %v792
    %v825 = vunpack.c.l.bf16 %v793
    %v826 = vld [vmem:[#allocation12] sm:$0x1]
    %v828 = vlaneseq
    %v829 = vshrl.u32 %v828, 7
    %v830 = vsub.s32 0, %v829
    %v831 = vrot.slane %v826, %v830
    %833 = vmatprep.subr.mxu0 0.0
    %834 = vmatpush1.msra.mxu0 %v794
    %835 = vmatprep.subr.mxu0 0.0
    %836 = vmatpush1.msra.mxu0 %v795
    %837 = vmatprep.subr.mxu0 0.0
    %838 = vmatpush1.msra.mxu0 %v796
    %839 = vmatprep.subr.mxu0 0.0
    %840 = vmatpush1.msra.mxu0 %v797
    %841 = vmatprep.subr.mxu0 0.0
    %842 = vmatpush1.msra.mxu0 %v798
    %843 = vmatprep.subr.mxu0 0.0
    %844 = vmatpush1.msra.mxu0 %v799
    %845 = vmatprep.subr.mxu0 0.0
    %846 = vmatpush1.msra.mxu0 %v800
    %847 = vmatprep.subr.mxu0 0.0
    %848 = vmatpush1.msra.mxu0 %v801
    %849 = vmatprep.subr.mxu0 0.0
    %850 = vmatpush1.msra.mxu0 %v802
    %851 = vmatprep.subr.mxu0 0.0
    %852 = vmatpush1.msra.mxu0 %v803
    %853 = vmatprep.subr.mxu0 0.0
    %854 = vmatpush1.msra.mxu0 %v804
    %855 = vmatprep.subr.mxu0 0.0
    %856 = vmatpush1.msra.mxu0 %v805
    %857 = vmatprep.subr.mxu0 0.0
    %858 = vmatpush1.msra.mxu0 %v806
    %859 = vmatprep.subr.mxu0 0.0
    %860 = vmatpush1.msra.mxu0 %v807
    %861 = vmatprep.subr.mxu0 0.0
    %862 = vmatpush1.msra.mxu0 %v808
    %863 = vmatprep.subr.mxu0 0.0
    %864 = vmatpush1.msra.mxu0 %v809
    %865 = vmatprep.subr.mxu0 0.0
    %866 = vmatpush1.msra.mxu0 %v810
    %867 = vmatprep.subr.mxu0 0.0
    %868 = vmatpush1.msra.mxu0 %v811
    %869 = vmatprep.subr.mxu0 0.0
    %870 = vmatpush1.msra.mxu0 %v812
    %871 = vmatprep.subr.mxu0 0.0
    %872 = vmatpush1.msra.mxu0 %v813
    %873 = vmatprep.subr.mxu0 0.0
    %874 = vmatpush1.msra.mxu0 %v814
    %875 = vmatprep.subr.mxu0 0.0
    %876 = vmatpush1.msra.mxu0 %v815
    %877 = vmatprep.subr.mxu0 0.0
    %878 = vmatpush1.msra.mxu0 %v816
    %879 = vmatprep.subr.mxu0 0.0
    %880 = vmatpush1.msra.mxu0 %v817
    %881 = vmatprep.subr.mxu0 0.0
    %882 = vmatpush1.msra.mxu0 %v818
    %883 = vmatprep.subr.mxu0 0.0
    %884 = vmatpush1.msra.mxu0 %v819
    %885 = vmatprep.subr.mxu0 0.0
    %886 = vmatpush1.msra.mxu0 %v820
    %887 = vmatprep.subr.mxu0 0.0
    %888 = vmatpush1.msra.mxu0 %v821
    %889 = vmatprep.subr.mxu0 0.0
    %890 = vmatpush1.msra.mxu0 %v822
    %891 = vmatprep.subr.mxu0 0.0
    %892 = vmatpush1.msra.mxu0 %v823
    %893 = vmatprep.subr.mxu0 0.0
    %894 = vmatpush1.msra.mxu0 %v824
    %895 = vmatprep.subr.mxu0 0.0
    %896 = vmatpush1.msra.mxu0 %v825
    %897 = vmatprep.mubr.f32.mxu0 %v761
    %898 = vmatmul.mubr.f32.gmra.mrb[0].mxu0 %v760
    %v899 = vpop.f32.mrb[0].mxu0
    %v900 = vadd.f32 %v831, %v899
    %v901 = vpop.f32.mrb[0].mxu0
    %902 = vdwg.mxu0
    %v903 = vadd.f32 %v628, %v900
    %v904 = vld [vmem:[#allocation13] sm:$0x1]
    %v905 = vld [vmem:[#allocation15] sm:$0x1]
    %906 = vadd.xlane.f32.xlu0 %v903
    %v907 = vpop.xlane.xlu0 %906
    %v908 = vmul.f32 %v907, %v603
    %v909 = vmul.f32 %v903, %v903
    %910 = vadd.xlane.f32.xlu0 %v909
    %v911 = vpop.xlane.xlu0 %910
    %v912 = vmul.f32 %v911, %v603
    %v913 = vmul.f32 %v908, %v908
    %v914 = vsub.f32 %v912, %v913
    %v915 = vsub.f32 %v903, %v908
    %v916 = vadd.f32 %v914, 1e-05
    %v917 = vrsqrt.pop %v916
    %v918 = vmul.f32 %v915, %v917
    %v920 = vlaneseq
    %v921 = vshrl.u32 %v920, 7
    %v922 = vsub.s32 0, %v921
    %v923 = vrot.slane %v904, %v922
    %v925 = vmul.f32 %v918, %v923
    %v927 = vlaneseq
    %v928 = vshrl.u32 %v927, 7
    %v929 = vsub.s32 0, %v928
    %v930 = vrot.slane %v905, %v929
    %v932 = vadd.f32 %v925, %v930
    %s933 = scalar_lea.vmem [#allocation2], 64
    %v934 = vld [vmem:[%s933] sm:$0xf]
    %v935 = vld [vmem:[%s933 + $0x4] sm:$0xf]
    %v936 = vld [vmem:[%s933 + $0x8] sm:$0xf]
    %v937 = vld [vmem:[%s933 + $0xc] sm:$0xf]
    %v938 = vld [vmem:[%s933 + $0x10] sm:$0xf]
    %v939 = vld [vmem:[%s933 + $0x14] sm:$0xf]
    %v940 = vld [vmem:[%s933 + $0x18] sm:$0xf]
    %v941 = vld [vmem:[%s933 + $0x1c] sm:$0xf]
    %v942 = vld [vmem:[%s933 + $0x20] sm:$0xf]
    %v943 = vld [vmem:[%s933 + $0x24] sm:$0xf]
    %v944 = vld [vmem:[%s933 + $0x28] sm:$0xf]
    %v945 = vld [vmem:[%s933 + $0x2c] sm:$0xf]
    %v946 = vld [vmem:[%s933 + $0x30] sm:$0xf]
    %v947 = vld [vmem:[%s933 + $0x34] sm:$0xf]
    %v948 = vld [vmem:[%s933 + $0x38] sm:$0xf]
    %v949 = vld [vmem:[%s933 + $0x3c] sm:$0xf]
    %v950 = vunpack.c.l.bf16 %v934
    %v951 = vunpack.c.l.bf16 %v935
    %v952 = vunpack.c.l.bf16 %v936
    %v953 = vunpack.c.l.bf16 %v937
    %v954 = vunpack.c.l.bf16 %v938
    %v955 = vunpack.c.l.bf16 %v939
    %v956 = vunpack.c.l.bf16 %v940
    %v957 = vunpack.c.l.bf16 %v941
    %v958 = vunpack.c.l.bf16 %v942
    %v959 = vunpack.c.l.bf16 %v943
    %v960 = vunpack.c.l.bf16 %v944
    %v961 = vunpack.c.l.bf16 %v945
    %v962 = vunpack.c.l.bf16 %v946
    %v963 = vunpack.c.l.bf16 %v947
    %v964 = vunpack.c.l.bf16 %v948
    %v965 = vunpack.c.l.bf16 %v949
    %s966 = scalar_lea.vmem %s7, 1
    %v967 = vld [vmem:[%s966] sm:$0x1]
    %v969 = vlaneseq
    %v970 = vshrl.u32 %v969, 7
    %v971 = vsub.s32 0, %v970
    %v972 = vrot.slane %v967, %v971
    %974 = vmatprep.subr.mxu0 0.0
    %975 = vmatpush1.msra.mxu0 %v950
    %976 = vmatprep.subr.mxu0 0.0
    %977 = vmatpush1.msra.mxu0 %v951
    %978 = vmatprep.subr.mxu0 0.0
    %979 = vmatpush1.msra.mxu0 %v952
    %980 = vmatprep.subr.mxu0 0.0
    %981 = vmatpush1.msra.mxu0 %v953
    %982 = vmatprep.subr.mxu0 0.0
    %983 = vmatpush1.msra.mxu0 %v954
    %984 = vmatprep.subr.mxu0 0.0
    %985 = vmatpush1.msra.mxu0 %v955
    %986 = vmatprep.subr.mxu0 0.0
    %987 = vmatpush1.msra.mxu0 %v956
    %988 = vmatprep.subr.mxu0 0.0
    %989 = vmatpush1.msra.mxu0 %v957
    %990 = vmatprep.subr.mxu0 0.0
    %991 = vmatpush1.msra.mxu0 %v958
    %992 = vmatprep.subr.mxu0 0.0
    %993 = vmatpush1.msra.mxu0 %v959
    %994 = vmatprep.subr.mxu0 0.0
    %995 = vmatpush1.msra.mxu0 %v960
    %996 = vmatprep.subr.mxu0 0.0
    %997 = vmatpush1.msra.mxu0 %v961
    %998 = vmatprep.subr.mxu0 0.0
    %999 = vmatpush1.msra.mxu0 %v962
    %1000 = vmatprep.subr.mxu0 0.0
    %1001 = vmatpush1.msra.mxu0 %v963
    %1002 = vmatprep.subr.mxu0 0.0
    %1003 = vmatpush1.msra.mxu0 %v964
    %1004 = vmatprep.subr.mxu0 0.0
    %1005 = vmatpush1.msra.mxu0 %v965
    %1006 = vmatprep.subr.mxu0 0.0
    %1007 = vmatpush1.msra.mxu0 0.0
    %1008 = vmatprep.subr.mxu0 0.0
    %1009 = vmatpush1.msra.mxu0 0.0
    %1010 = vmatprep.subr.mxu0 0.0
    %1011 = vmatpush1.msra.mxu0 0.0
    %1012 = vmatprep.subr.mxu0 0.0
    %1013 = vmatpush1.msra.mxu0 0.0
    %1014 = vmatprep.subr.mxu0 0.0
    %1015 = vmatpush1.msra.mxu0 0.0
    %1016 = vmatprep.subr.mxu0 0.0
    %1017 = vmatpush1.msra.mxu0 0.0
    %1018 = vmatprep.subr.mxu0 0.0
    %1019 = vmatpush1.msra.mxu0 0.0
    %1020 = vmatprep.subr.mxu0 0.0
    %1021 = vmatpush1.msra.mxu0 0.0
    %1022 = vmatprep.subr.mxu0 0.0
    %1023 = vmatpush1.msra.mxu0 0.0
    %1024 = vmatprep.subr.mxu0 0.0
    %1025 = vmatpush1.msra.mxu0 0.0
    %1026 = vmatprep.subr.mxu0 0.0
    %1027 = vmatpush1.msra.mxu0 0.0
    %1028 = vmatprep.subr.mxu0 0.0
    %1029 = vmatpush1.msra.mxu0 0.0
    %1030 = vmatprep.subr.mxu0 0.0
    %1031 = vmatpush1.msra.mxu0 0.0
    %1032 = vmatprep.subr.mxu0 0.0
    %1033 = vmatpush1.msra.mxu0 0.0
    %1034 = vmatprep.subr.mxu0 0.0
    %1035 = vmatpush1.msra.mxu0 0.0
    %1036 = vmatprep.subr.mxu0 0.0
    %1037 = vmatpush1.msra.mxu0 0.0
    %1038 = vmatprep.mubr.f32.mxu0 0.0
    %1039 = vmatmul.mubr.f32.gmra.mrb[0].mxu0 %v932
    %v1040 = vpop.f32.mrb[0].mxu0
    %v1041 = vadd.f32 %v972, %v1040
    %v1042 = vpop.f32.mrb[0].mxu0
    %1043 = vdwg.mxu0
    %v1044 = vadd.f32 %v932, %v1041
    %s1045 = scalar_lea.vmem [#allocation4], 1
    %v1046 = vld [vmem:[%s1045] sm:$0x1]
    %s1047 = scalar_lea.vmem [#allocation6], 1
    %v1048 = vld [vmem:[%s1047] sm:$0x1]
    %1049 = vadd.xlane.f32.xlu0 %v1044
    %v1050 = vpop.xlane.xlu0 %1049
    %v1051 = vmul.f32 %v1050, %v603
    %v1052 = vmul.f32 %v1044, %v1044
    %1053 = vadd.xlane.f32.xlu0 %v1052
    %v1054 = vpop.xlane.xlu0 %1053
    %v1055 = vmul.f32 %v1054, %v603
    %v1056 = vmul.f32 %v1051, %v1051
    %v1057 = vsub.f32 %v1055, %v1056
    %v1058 = vsub.f32 %v1044, %v1051
    %v1059 = vadd.f32 %v1057, 1e-05
    %v1060 = vrsqrt.pop %v1059
    %v1061 = vmul.f32 %v1058, %v1060
    %v1063 = vlaneseq
    %v1064 = vshrl.u32 %v1063, 7
    %v1065 = vsub.s32 0, %v1064
    %v1066 = vrot.slane %v1046, %v1065
    %v1068 = vmul.f32 %v1061, %v1066
    %v1070 = vlaneseq
    %v1071 = vshrl.u32 %v1070, 7
    %v1072 = vsub.s32 0, %v1071
    %v1073 = vrot.slane %v1048, %v1072
    %v1075 = vadd.f32 %v1068, %v1073
    %s1076 = scalar_lea.vmem [#allocation7], 128
    %v1077 = vld [vmem:[%s1076] sm:$0xff]
    %v1078 = vld [vmem:[%s1076 + $0x8] sm:$0xff]
    %v1079 = vld [vmem:[%s1076 + $0x10] sm:$0xff]
    %v1080 = vld [vmem:[%s1076 + $0x18] sm:$0xff]
    %v1081 = vld [vmem:[%s1076 + $0x20] sm:$0xff]
    %v1082 = vld [vmem:[%s1076 + $0x28] sm:$0xff]
    %v1083 = vld [vmem:[%s1076 + $0x30] sm:$0xff]
    %v1084 = vld [vmem:[%s1076 + $0x38] sm:$0xff]
    %v1085 = vld [vmem:[%s1076 + $0x40] sm:$0xff]
    %v1086 = vld [vmem:[%s1076 + $0x48] sm:$0xff]
    %v1087 = vld [vmem:[%s1076 + $0x50] sm:$0xff]
    %v1088 = vld [vmem:[%s1076 + $0x58] sm:$0xff]
    %v1089 = vld [vmem:[%s1076 + $0x60] sm:$0xff]
    %v1090 = vld [vmem:[%s1076 + $0x68] sm:$0xff]
    %v1091 = vld [vmem:[%s1076 + $0x70] sm:$0xff]
    %v1092 = vld [vmem:[%s1076 + $0x78] sm:$0xff]
    %v1093 = vunpack.c.l.bf16 %v1077
    %v1094 = vunpack.c.h.bf16 %v1077
    %v1095 = vunpack.c.l.bf16 %v1078
    %v1096 = vunpack.c.h.bf16 %v1078
    %v1097 = vunpack.c.l.bf16 %v1079
    %v1098 = vunpack.c.h.bf16 %v1079
    %v1099 = vunpack.c.l.bf16 %v1080
    %v1100 = vunpack.c.h.bf16 %v1080
    %v1101 = vunpack.c.l.bf16 %v1081
    %v1102 = vunpack.c.h.bf16 %v1081
    %v1103 = vunpack.c.l.bf16 %v1082
    %v1104 = vunpack.c.h.bf16 %v1082
    %v1105 = vunpack.c.l.bf16 %v1083
    %v1106 = vunpack.c.h.bf16 %v1083
    %v1107 = vunpack.c.l.bf16 %v1084
    %v1108 = vunpack.c.h.bf16 %v1084
    %v1109 = vunpack.c.l.bf16 %v1085
    %v1110 = vunpack.c.h.bf16 %v1085
    %v1111 = vunpack.c.l.bf16 %v1086
    %v1112 = vunpack.c.h.bf16 %v1086
    %v1113 = vunpack.c.l.bf16 %v1087
    %v1114 = vunpack.c.h.bf16 %v1087
    %v1115 = vunpack.c.l.bf16 %v1088
    %v1116 = vunpack.c.h.bf16 %v1088
    %v1117 = vunpack.c.l.bf16 %v1089
    %v1118 = vunpack.c.h.bf16 %v1089
    %v1119 = vunpack.c.l.bf16 %v1090
    %v1120 = vunpack.c.h.bf16 %v1090
    %v1121 = vunpack.c.l.bf16 %v1091
    %v1122 = vunpack.c.h.bf16 %v1091
    %v1123 = vunpack.c.l.bf16 %v1092
    %v1124 = vunpack.c.h.bf16 %v1092
    %s1125 = scalar_lea.vmem [#allocation9], 2
    %v1126 = vld [vmem:[%s1125] sm:$0x3]
    %v1128 = vlaneseq
    %v1129 = vshrl.u32 %v1128, 7
    %v1130 = vsub.s32 0, %v1129
    %v1131 = vrot.slane %v1126, %v1130
    %v1132 = vlaneseq
    %v1133 = vshrl.u32 %v1132, 7
    %v1134 = vsub.s32 1, %v1133
    %v1135 = vrot.slane %v1126, %v1134
    %1138 = vmatprep.subr.mxu0 %v1094
    %1139 = vmatpush1.msra.mxu0 %v1093
    %1140 = vmatprep.subr.mxu0 %v1096
    %1141 = vmatpush1.msra.mxu0 %v1095
    %1142 = vmatprep.subr.mxu0 %v1098
    %1143 = vmatpush1.msra.mxu0 %v1097
    %1144 = vmatprep.subr.mxu0 %v1100
    %1145 = vmatpush1.msra.mxu0 %v1099
    %1146 = vmatprep.subr.mxu0 %v1102
    %1147 = vmatpush1.msra.mxu0 %v1101
    %1148 = vmatprep.subr.mxu0 %v1104
    %1149 = vmatpush1.msra.mxu0 %v1103
    %1150 = vmatprep.subr.mxu0 %v1106
    %1151 = vmatpush1.msra.mxu0 %v1105
    %1152 = vmatprep.subr.mxu0 %v1108
    %1153 = vmatpush1.msra.mxu0 %v1107
    %1154 = vmatprep.subr.mxu0 %v1110
    %1155 = vmatpush1.msra.mxu0 %v1109
    %1156 = vmatprep.subr.mxu0 %v1112
    %1157 = vmatpush1.msra.mxu0 %v1111
    %1158 = vmatprep.subr.mxu0 %v1114
    %1159 = vmatpush1.msra.mxu0 %v1113
    %1160 = vmatprep.subr.mxu0 %v1116
    %1161 = vmatpush1.msra.mxu0 %v1115
    %1162 = vmatprep.subr.mxu0 %v1118
    %1163 = vmatpush1.msra.mxu0 %v1117
    %1164 = vmatprep.subr.mxu0 %v1120
    %1165 = vmatpush1.msra.mxu0 %v1119
    %1166 = vmatprep.subr.mxu0 %v1122
    %1167 = vmatpush1.msra.mxu0 %v1121
    %1168 = vmatprep.subr.mxu0 %v1124
    %1169 = vmatpush1.msra.mxu0 %v1123
    %1170 = vmatprep.subr.mxu0 0.0
    %1171 = vmatpush1.msra.mxu0 0.0
    %1172 = vmatprep.subr.mxu0 0.0
    %1173 = vmatpush1.msra.mxu0 0.0
    %1174 = vmatprep.subr.mxu0 0.0
    %1175 = vmatpush1.msra.mxu0 0.0
    %1176 = vmatprep.subr.mxu0 0.0
    %1177 = vmatpush1.msra.mxu0 0.0
    %1178 = vmatprep.subr.mxu0 0.0
    %1179 = vmatpush1.msra.mxu0 0.0
    %1180 = vmatprep.subr.mxu0 0.0
    %1181 = vmatpush1.msra.mxu0 0.0
    %1182 = vmatprep.subr.mxu0 0.0
    %1183 = vmatpush1.msra.mxu0 0.0
    %1184 = vmatprep.subr.mxu0 0.0
    %1185 = vmatpush1.msra.mxu0 0.0
    %1186 = vmatprep.subr.mxu0 0.0
    %1187 = vmatpush1.msra.mxu0 0.0
    %1188 = vmatprep.subr.mxu0 0.0
    %1189 = vmatpush1.msra.mxu0 0.0
    %1190 = vmatprep.subr.mxu0 0.0
    %1191 = vmatpush1.msra.mxu0 0.0
    %1192 = vmatprep.subr.mxu0 0.0
    %1193 = vmatpush1.msra.mxu0 0.0
    %1194 = vmatprep.subr.mxu0 0.0
    %1195 = vmatpush1.msra.mxu0 0.0
    %1196 = vmatprep.subr.mxu0 0.0
    %1197 = vmatpush1.msra.mxu0 0.0
    %1198 = vmatprep.subr.mxu0 0.0
    %1199 = vmatpush1.msra.mxu0 0.0
    %1200 = vmatprep.subr.mxu0 0.0
    %1201 = vmatpush1.msra.mxu0 0.0
    %1202 = vmatprep.mubr.f32.mxu0 0.0
    %1203 = vmatmul.mubr.f32.gmra.mrb[0].mxu0 %v1075
    %v1204 = vpop.f32.mrb[0].mxu0
    %v1205 = vadd.f32 %v1131, %v1204
    %v1206 = vpop.f32.mrb[0].mxu0
    %v1207 = vadd.f32 %v1135, %v1206
    %1208 = vdwg.mxu0
    %v1209 = vmax.f32 %v1205, 0.0
    %v1210 = vmax.f32 %v1207, 0.0
    %s1211 = scalar_lea.vmem [#allocation10], 128
    %v1212 = vld [vmem:[%s1211] sm:$0xf]
    %v1213 = vld [vmem:[%s1211 + $0x4] sm:$0xf]
    %v1214 = vld [vmem:[%s1211 + $0x8] sm:$0xf]
    %v1215 = vld [vmem:[%s1211 + $0xc] sm:$0xf]
    %v1216 = vld [vmem:[%s1211 + $0x10] sm:$0xf]
    %v1217 = vld [vmem:[%s1211 + $0x14] sm:$0xf]
    %v1218 = vld [vmem:[%s1211 + $0x18] sm:$0xf]
    %v1219 = vld [vmem:[%s1211 + $0x1c] sm:$0xf]
    %v1220 = vld [vmem:[%s1211 + $0x20] sm:$0xf]
    %v1221 = vld [vmem:[%s1211 + $0x24] sm:$0xf]
    %v1222 = vld [vmem:[%s1211 + $0x28] sm:$0xf]
    %v1223 = vld [vmem:[%s1211 + $0x2c] sm:$0xf]
    %v1224 = vld [vmem:[%s1211 + $0x30] sm:$0xf]
    %v1225 = vld [vmem:[%s1211 + $0x34] sm:$0xf]
    %v1226 = vld [vmem:[%s1211 + $0x38] sm:$0xf]
    %v1227 = vld [vmem:[%s1211 + $0x3c] sm:$0xf]
    %v1228 = vld [vmem:[%s1211 + $0x40] sm:$0xf]
    %v1229 = vld [vmem:[%s1211 + $0x44] sm:$0xf]
    %v1230 = vld [vmem:[%s1211 + $0x48] sm:$0xf]
    %v1231 = vld [vmem:[%s1211 + $0x4c] sm:$0xf]
    %v1232 = vld [vmem:[%s1211 + $0x50] sm:$0xf]
    %v1233 = vld [vmem:[%s1211 + $0x54] sm:$0xf]
    %v1234 = vld [vmem:[%s1211 + $0x58] sm:$0xf]
    %v1235 = vld [vmem:[%s1211 + $0x5c] sm:$0xf]
    %v1236 = vld [vmem:[%s1211 + $0x60] sm:$0xf]
    %v1237 = vld [vmem:[%s1211 + $0x64] sm:$0xf]
    %v1238 = vld [vmem:[%s1211 + $0x68] sm:$0xf]
    %v1239 = vld [vmem:[%s1211 + $0x6c] sm:$0xf]
    %v1240 = vld [vmem:[%s1211 + $0x70] sm:$0xf]
    %v1241 = vld [vmem:[%s1211 + $0x74] sm:$0xf]
    %v1242 = vld [vmem:[%s1211 + $0x78] sm:$0xf]
    %v1243 = vld [vmem:[%s1211 + $0x7c] sm:$0xf]
    %v1244 = vunpack.c.l.bf16 %v1212
    %v1245 = vunpack.c.l.bf16 %v1213
    %v1246 = vunpack.c.l.bf16 %v1214
    %v1247 = vunpack.c.l.bf16 %v1215
    %v1248 = vunpack.c.l.bf16 %v1216
    %v1249 = vunpack.c.l.bf16 %v1217
    %v1250 = vunpack.c.l.bf16 %v1218
    %v1251 = vunpack.c.l.bf16 %v1219
    %v1252 = vunpack.c.l.bf16 %v1220
    %v1253 = vunpack.c.l.bf16 %v1221
    %v1254 = vunpack.c.l.bf16 %v1222
    %v1255 = vunpack.c.l.bf16 %v1223
    %v1256 = vunpack.c.l.bf16 %v1224
    %v1257 = vunpack.c.l.bf16 %v1225
    %v1258 = vunpack.c.l.bf16 %v1226
    %v1259 = vunpack.c.l.bf16 %v1227
    %v1260 = vunpack.c.l.bf16 %v1228
    %v1261 = vunpack.c.l.bf16 %v1229
    %v1262 = vunpack.c.l.bf16 %v1230
    %v1263 = vunpack.c.l.bf16 %v1231
    %v1264 = vunpack.c.l.bf16 %v1232
    %v1265 = vunpack.c.l.bf16 %v1233
    %v1266 = vunpack.c.l.bf16 %v1234
    %v1267 = vunpack.c.l.bf16 %v1235
    %v1268 = vunpack.c.l.bf16 %v1236
    %v1269 = vunpack.c.l.bf16 %v1237
    %v1270 = vunpack.c.l.bf16 %v1238
    %v1271 = vunpack.c.l.bf16 %v1239
    %v1272 = vunpack.c.l.bf16 %v1240
    %v1273 = vunpack.c.l.bf16 %v1241
    %v1274 = vunpack.c.l.bf16 %v1242
    %v1275 = vunpack.c.l.bf16 %v1243
    %s1276 = scalar_lea.vmem [#allocation12], 1
    %v1277 = vld [vmem:[%s1276] sm:$0x1]
    %v1279 = vlaneseq
    %v1280 = vshrl.u32 %v1279, 7
    %v1281 = vsub.s32 0, %v1280
    %v1282 = vrot.slane %v1277, %v1281
    %1284 = vmatprep.subr.mxu0 0.0
    %1285 = vmatpush1.msra.mxu0 %v1244
    %1286 = vmatprep.subr.mxu0 0.0
    %1287 = vmatpush1.msra.mxu0 %v1245
    %1288 = vmatprep.subr.mxu0 0.0
    %1289 = vmatpush1.msra.mxu0 %v1246
    %1290 = vmatprep.subr.mxu0 0.0
    %1291 = vmatpush1.msra.mxu0 %v1247
    %1292 = vmatprep.subr.mxu0 0.0
    %1293 = vmatpush1.msra.mxu0 %v1248
    %1294 = vmatprep.subr.mxu0 0.0
    %1295 = vmatpush1.msra.mxu0 %v1249
    %1296 = vmatprep.subr.mxu0 0.0
    %1297 = vmatpush1.msra.mxu0 %v1250
    %1298 = vmatprep.subr.mxu0 0.0
    %1299 = vmatpush1.msra.mxu0 %v1251
    %1300 = vmatprep.subr.mxu0 0.0
    %1301 = vmatpush1.msra.mxu0 %v1252
    %1302 = vmatprep.subr.mxu0 0.0
    %1303 = vmatpush1.msra.mxu0 %v1253
    %1304 = vmatprep.subr.mxu0 0.0
    %1305 = vmatpush1.msra.mxu0 %v1254
    %1306 = vmatprep.subr.mxu0 0.0
    %1307 = vmatpush1.msra.mxu0 %v1255
    %1308 = vmatprep.subr.mxu0 0.0
    %1309 = vmatpush1.msra.mxu0 %v1256
    %1310 = vmatprep.subr.mxu0 0.0
    %1311 = vmatpush1.msra.mxu0 %v1257
    %1312 = vmatprep.subr.mxu0 0.0
    %1313 = vmatpush1.msra.mxu0 %v1258
    %1314 = vmatprep.subr.mxu0 0.0
    %1315 = vmatpush1.msra.mxu0 %v1259
    %1316 = vmatprep.subr.mxu0 0.0
    %1317 = vmatpush1.msra.mxu0 %v1260
    %1318 = vmatprep.subr.mxu0 0.0
    %1319 = vmatpush1.msra.mxu0 %v1261
    %1320 = vmatprep.subr.mxu0 0.0
    %1321 = vmatpush1.msra.mxu0 %v1262
    %1322 = vmatprep.subr.mxu0 0.0
    %1323 = vmatpush1.msra.mxu0 %v1263
    %1324 = vmatprep.subr.mxu0 0.0
    %1325 = vmatpush1.msra.mxu0 %v1264
    %1326 = vmatprep.subr.mxu0 0.0
    %1327 = vmatpush1.msra.mxu0 %v1265
    %1328 = vmatprep.subr.mxu0 0.0
    %1329 = vmatpush1.msra.mxu0 %v1266
    %1330 = vmatprep.subr.mxu0 0.0
    %1331 = vmatpush1.msra.mxu0 %v1267
    %1332 = vmatprep.subr.mxu0 0.0
    %1333 = vmatpush1.msra.mxu0 %v1268
    %1334 = vmatprep.subr.mxu0 0.0
    %1335 = vmatpush1.msra.mxu0 %v1269
    %1336 = vmatprep.subr.mxu0 0.0
    %1337 = vmatpush1.msra.mxu0 %v1270
    %1338 = vmatprep.subr.mxu0 0.0
    %1339 = vmatpush1.msra.mxu0 %v1271
    %1340 = vmatprep.subr.mxu0 0.0
    %1341 = vmatpush1.msra.mxu0 %v1272
    %1342 = vmatprep.subr.mxu0 0.0
    %1343 = vmatpush1.msra.mxu0 %v1273
    %1344 = vmatprep.subr.mxu0 0.0
    %1345 = vmatpush1.msra.mxu0 %v1274
    %1346 = vmatprep.subr.mxu0 0.0
    %1347 = vmatpush1.msra.mxu0 %v1275
    %1348 = vmatprep.mubr.f32.mxu0 %v1210
    %1349 = vmatmul.mubr.f32.gmra.mrb[0].mxu0 %v1209
    %v1350 = vpop.f32.mrb[0].mxu0
    %v1351 = vadd.f32 %v1282, %v1350
    %v1352 = vpop.f32.mrb[0].mxu0
    %1353 = vdwg.mxu0
    %v1354 = vadd.f32 %v1075, %v1351
    %s1355 = scalar_lea.vmem [#allocation13], 1
    %v1356 = vld [vmem:[%s1355] sm:$0x1]
    %s1357 = scalar_lea.vmem [#allocation15], 1
    %v1358 = vld [vmem:[%s1357] sm:$0x1]
    %1359 = vadd.xlane.f32.xlu0 %v1354
    %v1360 = vpop.xlane.xlu0 %1359
    %v1361 = vmul.f32 %v1360, %v603
    %v1362 = vmul.f32 %v1354, %v1354
    %1363 = vadd.xlane.f32.xlu0 %v1362
    %v1364 = vpop.xlane.xlu0 %1363
    %v1365 = vmul.f32 %v1364, %v603
    %v1366 = vmul.f32 %v1361, %v1361
    %v1367 = vsub.f32 %v1365, %v1366
    %v1368 = vsub.f32 %v1354, %v1361
    %v1369 = vadd.f32 %v1367, 1e-05
    %v1370 = vrsqrt.pop %v1369
    %v1371 = vmul.f32 %v1368, %v1370
    %v1373 = vlaneseq
    %v1374 = vshrl.u32 %v1373, 7
    %v1375 = vsub.s32 0, %v1374
    %v1376 = vrot.slane %v1356, %v1375
    %v1378 = vmul.f32 %v1371, %v1376
    %v1380 = vlaneseq
    %v1381 = vshrl.u32 %v1380, 7
    %v1382 = vsub.s32 0, %v1381
    %v1383 = vrot.slane %v1358, %v1382
    %v1385 = vadd.f32 %v1378, %v1383
    %v1386 = vld [vmem:[#allocation16] sm:$0xff]
    %v1387 = vld [vmem:[#allocation16 + $0x8] sm:$0xff]
    %v1388 = vld [vmem:[#allocation16 + $0x10] sm:$0xff]
    %v1389 = vld [vmem:[#allocation16 + $0x18] sm:$0xff]
    %v1390 = vld [vmem:[#allocation16 + $0x20] sm:$0xff]
    %v1391 = vld [vmem:[#allocation16 + $0x28] sm:$0xff]
    %v1392 = vld [vmem:[#allocation16 + $0x30] sm:$0xff]
    %v1393 = vld [vmem:[#allocation16 + $0x38] sm:$0xff]
    %v1394 = vld [vmem:[#allocation16 + $0x40] sm:$0xff]
    %v1395 = vld [vmem:[#allocation16 + $0x48] sm:$0xff]
    %v1396 = vld [vmem:[#allocation16 + $0x50] sm:$0xff]
    %v1397 = vld [vmem:[#allocation16 + $0x58] sm:$0xff]
    %v1398 = vld [vmem:[#allocation16 + $0x60] sm:$0xff]
    %v1399 = vld [vmem:[#allocation16 + $0x68] sm:$0xff]
    %v1400 = vld [vmem:[#allocation16 + $0x70] sm:$0xff]
    %v1401 = vld [vmem:[#allocation16 + $0x78] sm:$0xff]
    %v1402 = vunpack.c.l.bf16 %v1386
    %v1403 = vunpack.c.h.bf16 %v1386
    %v1404 = vunpack.c.l.bf16 %v1387
    %v1405 = vunpack.c.h.bf16 %v1387
    %v1406 = vunpack.c.l.bf16 %v1388
    %v1407 = vunpack.c.h.bf16 %v1388
    %v1408 = vunpack.c.l.bf16 %v1389
    %v1409 = vunpack.c.h.bf16 %v1389
    %v1410 = vunpack.c.l.bf16 %v1390
    %v1411 = vunpack.c.h.bf16 %v1390
    %v1412 = vunpack.c.l.bf16 %v1391
    %v1413 = vunpack.c.h.bf16 %v1391
    %v1414 = vunpack.c.l.bf16 %v1392
    %v1415 = vunpack.c.h.bf16 %v1392
    %v1416 = vunpack.c.l.bf16 %v1393
    %v1417 = vunpack.c.h.bf16 %v1393
    %v1418 = vunpack.c.l.bf16 %v1394
    %v1419 = vunpack.c.h.bf16 %v1394
    %v1420 = vunpack.c.l.bf16 %v1395
    %v1421 = vunpack.c.h.bf16 %v1395
    %v1422 = vunpack.c.l.bf16 %v1396
    %v1423 = vunpack.c.h.bf16 %v1396
    %v1424 = vunpack.c.l.bf16 %v1397
    %v1425 = vunpack.c.h.bf16 %v1397
    %v1426 = vunpack.c.l.bf16 %v1398
    %v1427 = vunpack.c.h.bf16 %v1398
    %v1428 = vunpack.c.l.bf16 %v1399
    %v1429 = vunpack.c.h.bf16 %v1399
    %v1430 = vunpack.c.l.bf16 %v1400
    %v1431 = vunpack.c.h.bf16 %v1400
    %v1432 = vunpack.c.l.bf16 %v1401
    %v1433 = vunpack.c.h.bf16 %v1401
    %v1434 = vld [vmem:[%s17] sm:$0x3]
    %v1436 = vlaneseq
    %v1437 = vshrl.u32 %v1436, 7
    %v1438 = vsub.s32 0, %v1437
    %v1439 = vrot.slane %v1434, %v1438
    %v1440 = vlaneseq
    %v1441 = vshrl.u32 %v1440, 7
    %v1442 = vsub.s32 1, %v1441
    %v1443 = vrot.slane %v1434, %v1442
    %1446 = vmatprep.subr.mxu0 %v1403
    %1447 = vmatpush1.msra.mxu0 %v1402
    %1448 = vmatprep.subr.mxu0 %v1405
    %1449 = vmatpush1.msra.mxu0 %v1404
    %1450 = vmatprep.subr.mxu0 %v1407
    %1451 = vmatpush1.msra.mxu0 %v1406
    %1452 = vmatprep.subr.mxu0 %v1409
    %1453 = vmatpush1.msra.mxu0 %v1408
    %1454 = vmatprep.subr.mxu0 %v1411
    %1455 = vmatpush1.msra.mxu0 %v1410
    %1456 = vmatprep.subr.mxu0 %v1413
    %1457 = vmatpush1.msra.mxu0 %v1412
    %1458 = vmatprep.subr.mxu0 %v1415
    %1459 = vmatpush1.msra.mxu0 %v1414
    %1460 = vmatprep.subr.mxu0 %v1417
    %1461 = vmatpush1.msra.mxu0 %v1416
    %1462 = vmatprep.subr.mxu0 %v1419
    %1463 = vmatpush1.msra.mxu0 %v1418
    %1464 = vmatprep.subr.mxu0 %v1421
    %1465 = vmatpush1.msra.mxu0 %v1420
    %1466 = vmatprep.subr.mxu0 %v1423
    %1467 = vmatpush1.msra.mxu0 %v1422
    %1468 = vmatprep.subr.mxu0 %v1425
    %1469 = vmatpush1.msra.mxu0 %v1424
    %1470 = vmatprep.subr.mxu0 %v1427
    %1471 = vmatpush1.msra.mxu0 %v1426
    %1472 = vmatprep.subr.mxu0 %v1429
    %1473 = vmatpush1.msra.mxu0 %v1428
    %1474 = vmatprep.subr.mxu0 %v1431
    %1475 = vmatpush1.msra.mxu0 %v1430
    %1476 = vmatprep.subr.mxu0 %v1433
    %1477 = vmatpush1.msra.mxu0 %v1432
    %1478 = vmatprep.subr.mxu0 0.0
    %1479 = vmatpush1.msra.mxu0 0.0
    %1480 = vmatprep.subr.mxu0 0.0
    %1481 = vmatpush1.msra.mxu0 0.0
    %1482 = vmatprep.subr.mxu0 0.0
    %1483 = vmatpush1.msra.mxu0 0.0
    %1484 = vmatprep.subr.mxu0 0.0
    %1485 = vmatpush1.msra.mxu0 0.0
    %1486 = vmatprep.subr.mxu0 0.0
    %1487 = vmatpush1.msra.mxu0 0.0
    %1488 = vmatprep.subr.mxu0 0.0
    %1489 = vmatpush1.msra.mxu0 0.0
    %1490 = vmatprep.subr.mxu0 0.0
    %1491 = vmatpush1.msra.mxu0 0.0
    %1492 = vmatprep.subr.mxu0 0.0
    %1493 = vmatpush1.msra.mxu0 0.0
    %1494 = vmatprep.subr.mxu0 0.0
    %1495 = vmatpush1.msra.mxu0 0.0
    %1496 = vmatprep.subr.mxu0 0.0
    %1497 = vmatpush1.msra.mxu0 0.0
    %1498 = vmatprep.subr.mxu0 0.0
    %1499 = vmatpush1.msra.mxu0 0.0
    %1500 = vmatprep.subr.mxu0 0.0
    %1501 = vmatpush1.msra.mxu0 0.0
    %1502 = vmatprep.subr.mxu0 0.0
    %1503 = vmatpush1.msra.mxu0 0.0
    %1504 = vmatprep.subr.mxu0 0.0
    %1505 = vmatpush1.msra.mxu0 0.0
    %1506 = vmatprep.subr.mxu0 0.0
    %1507 = vmatpush1.msra.mxu0 0.0
    %1508 = vmatprep.subr.mxu0 0.0
    %1509 = vmatpush1.msra.mxu0 0.0
    %1510 = vmatprep.mubr.f32.mxu0 0.0
    %1511 = vmatmul.mubr.f32.gmra.mrb[0].mxu0 %v1385
    %v1512 = vpop.f32.mrb[0].mxu0
    %v1513 = vadd.f32 %v1439, %v1512
    %v1514 = vpop.f32.mrb[0].mxu0
    %v1515 = vadd.f32 %v1443, %v1514
    %1516 = vdwg.mxu0
    %v1517 = vadd.f32 %v1513, %v388
    %v1518 = vadd.f32 %v1515, %v389
    %1519 = vst [vmem:[%s24] sm:$0xff] %v1517
    %1520 = vst [vmem:[%s25] sm:$0xff] %v1518
    %v1521 = vld [vmem:[%s2] sm:$0xff]
    %v1522 = vmul.f32 %v1518, 0.5
    %v1523 = vmul.f32 %v1522, 1.442695
    %v1524 = vpow.pop %v1523
    %v1525 = vmul.f32 %v1521, %v1524
    %v1526 = vadd.f32 %v1517, %v1525
    %v1527 = vld [vmem:[%s19] sm:$0xf]
    %v1528 = vld [vmem:[%s19 + $0x4] sm:$0xf]
    %v1529 = vld [vmem:[%s19 + $0x8] sm:$0xf]
    %v1530 = vld [vmem:[%s19 + $0xc] sm:$0xf]
    %v1531 = vld [vmem:[%s19 + $0x10] sm:$0xf]
    %v1532 = vld [vmem:[%s19 + $0x14] sm:$0xf]
    %v1533 = vld [vmem:[%s19 + $0x18] sm:$0xf]
    %v1534 = vld [vmem:[%s19 + $0x1c] sm:$0xf]
    %v1535 = vld [vmem:[%s19 + $0x20] sm:$0xf]
    %v1536 = vld [vmem:[%s19 + $0x24] sm:$0xf]
    %v1537 = vld [vmem:[%s19 + $0x28] sm:$0xf]
    %v1538 = vld [vmem:[%s19 + $0x2c] sm:$0xf]
    %v1539 = vld [vmem:[%s19 + $0x30] sm:$0xf]
    %v1540 = vld [vmem:[%s19 + $0x34] sm:$0xf]
    %v1541 = vld [vmem:[%s19 + $0x38] sm:$0xf]
    %v1542 = vld [vmem:[%s19 + $0x3c] sm:$0xf]
    %v1543 = vunpack.c.l.bf16 %v1527
    %v1544 = vunpack.c.l.bf16 %v1528
    %v1545 = vunpack.c.l.bf16 %v1529
    %v1546 = vunpack.c.l.bf16 %v1530
    %v1547 = vunpack.c.l.bf16 %v1531
    %v1548 = vunpack.c.l.bf16 %v1532
    %v1549 = vunpack.c.l.bf16 %v1533
    %v1550 = vunpack.c.l.bf16 %v1534
    %v1551 = vunpack.c.l.bf16 %v1535
    %v1552 = vunpack.c.l.bf16 %v1536
    %v1553 = vunpack.c.l.bf16 %v1537
    %v1554 = vunpack.c.l.bf16 %v1538
    %v1555 = vunpack.c.l.bf16 %v1539
    %v1556 = vunpack.c.l.bf16 %v1540
    %v1557 = vunpack.c.l.bf16 %v1541
    %v1558 = vunpack.c.l.bf16 %v1542
    %v1559 = vld [vmem:[#allocation18] sm:$0x1]
    %v1561 = vlaneseq
    %v1562 = vshrl.u32 %v1561, 7
    %v1563 = vsub.s32 0, %v1562
    %v1564 = vrot.slane %v1559, %v1563
    %1566 = vmatprep.subr.mxu0 0.0
    %1567 = vmatpush1.msra.mxu0 %v1543
    %1568 = vmatprep.subr.mxu0 0.0
    %1569 = vmatpush1.msra.mxu0 %v1544
    %1570 = vmatprep.subr.mxu0 0.0
    %1571 = vmatpush1.msra.mxu0 %v1545
    %1572 = vmatprep.subr.mxu0 0.0
    %1573 = vmatpush1.msra.mxu0 %v1546
    %1574 = vmatprep.subr.mxu0 0.0
    %1575 = vmatpush1.msra.mxu0 %v1547
    %1576 = vmatprep.subr.mxu0 0.0
    %1577 = vmatpush1.msra.mxu0 %v1548
    %1578 = vmatprep.subr.mxu0 0.0
    %1579 = vmatpush1.msra.mxu0 %v1549
    %1580 = vmatprep.subr.mxu0 0.0
    %1581 = vmatpush1.msra.mxu0 %v1550
    %1582 = vmatprep.subr.mxu0 0.0
    %1583 = vmatpush1.msra.mxu0 %v1551
    %1584 = vmatprep.subr.mxu0 0.0
    %1585 = vmatpush1.msra.mxu0 %v1552
    %1586 = vmatprep.subr.mxu0 0.0
    %1587 = vmatpush1.msra.mxu0 %v1553
    %1588 = vmatprep.subr.mxu0 0.0
    %1589 = vmatpush1.msra.mxu0 %v1554
    %1590 = vmatprep.subr.mxu0 0.0
    %1591 = vmatpush1.msra.mxu0 %v1555
    %1592 = vmatprep.subr.mxu0 0.0
    %1593 = vmatpush1.msra.mxu0 %v1556
    %1594 = vmatprep.subr.mxu0 0.0
    %1595 = vmatpush1.msra.mxu0 %v1557
    %1596 = vmatprep.subr.mxu0 0.0
    %1597 = vmatpush1.msra.mxu0 %v1558
    %1598 = vmatprep.subr.mxu0 0.0
    %1599 = vmatpush1.msra.mxu0 0.0
    %1600 = vmatprep.subr.mxu0 0.0
    %1601 = vmatpush1.msra.mxu0 0.0
    %1602 = vmatprep.subr.mxu0 0.0
    %1603 = vmatpush1.msra.mxu0 0.0
    %1604 = vmatprep.subr.mxu0 0.0
    %1605 = vmatpush1.msra.mxu0 0.0
    %1606 = vmatprep.subr.mxu0 0.0
    %1607 = vmatpush1.msra.mxu0 0.0
    %1608 = vmatprep.subr.mxu0 0.0
    %1609 = vmatpush1.msra.mxu0 0.0
    %1610 = vmatprep.subr.mxu0 0.0
    %1611 = vmatpush1.msra.mxu0 0.0
    %1612 = vmatprep.subr.mxu0 0.0
    %1613 = vmatpush1.msra.mxu0 0.0
    %1614 = vmatprep.subr.mxu0 0.0
    %1615 = vmatpush1.msra.mxu0 0.0
    %1616 = vmatprep.subr.mxu0 0.0
    %1617 = vmatpush1.msra.mxu0 0.0
    %1618 = vmatprep.subr.mxu0 0.0
    %1619 = vmatpush1.msra.mxu0 0.0
    %1620 = vmatprep.subr.mxu0 0.0
    %1621 = vmatpush1.msra.mxu0 0.0
    %1622 = vmatprep.subr.mxu0 0.0
    %1623 = vmatpush1.msra.mxu0 0.0
    %1624 = vmatprep.subr.mxu0 0.0
    %1625 = vmatpush1.msra.mxu0 0.0
    %1626 = vmatprep.subr.mxu0 0.0
    %1627 = vmatpush1.msra.mxu0 0.0
    %1628 = vmatprep.subr.mxu0 0.0
    %1629 = vmatpush1.msra.mxu0 0.0
    %1630 = vmatprep.mubr.f32.mxu0 0.0
    %1631 = vmatmul.mubr.f32.gmra.mrb[0].mxu0 %v1526
    %v1632 = vpop.f32.mrb[0].mxu0
    %v1633 = vadd.f32 %v1564, %v1632
    %v1634 = vpop.f32.mrb[0].mxu0
    %1635 = vdwg.mxu0
    %v1636 = vadd.f32 %v1633, %v390
    %v1637 = vadd.f32 %v1636, %v240
    %s1638 = scalar_lea.vmem [#allocation2], 128
    %v1639 = vld [vmem:[%s1638] sm:$0xf]
    %v1640 = vld [vmem:[%s1638 + $0x4] sm:$0xf]
    %v1641 = vld [vmem:[%s1638 + $0x8] sm:$0xf]
    %v1642 = vld [vmem:[%s1638 + $0xc] sm:$0xf]
    %v1643 = vld [vmem:[%s1638 + $0x10] sm:$0xf]
    %v1644 = vld [vmem:[%s1638 + $0x14] sm:$0xf]
    %v1645 = vld [vmem:[%s1638 + $0x18] sm:$0xf]
    %v1646 = vld [vmem:[%s1638 + $0x1c] sm:$0xf]
    %v1647 = vld [vmem:[%s1638 + $0x20] sm:$0xf]
    %v1648 = vld [vmem:[%s1638 + $0x24] sm:$0xf]
    %v1649 = vld [vmem:[%s1638 + $0x28] sm:$0xf]
    %v1650 = vld [vmem:[%s1638 + $0x2c] sm:$0xf]
    %v1651 = vld [vmem:[%s1638 + $0x30] sm:$0xf]
    %v1652 = vld [vmem:[%s1638 + $0x34] sm:$0xf]
    %v1653 = vld [vmem:[%s1638 + $0x38] sm:$0xf]
    %v1654 = vld [vmem:[%s1638 + $0x3c] sm:$0xf]
    %v1655 = vunpack.c.l.bf16 %v1639
    %v1656 = vunpack.c.l.bf16 %v1640
    %v1657 = vunpack.c.l.bf16 %v1641
    %v1658 = vunpack.c.l.bf16 %v1642
    %v1659 = vunpack.c.l.bf16 %v1643
    %v1660 = vunpack.c.l.bf16 %v1644
    %v1661 = vunpack.c.l.bf16 %v1645
    %v1662 = vunpack.c.l.bf16 %v1646
    %v1663 = vunpack.c.l.bf16 %v1647
    %v1664 = vunpack.c.l.bf16 %v1648
    %v1665 = vunpack.c.l.bf16 %v1649
    %v1666 = vunpack.c.l.bf16 %v1650
    %v1667 = vunpack.c.l.bf16 %v1651
    %v1668 = vunpack.c.l.bf16 %v1652
    %v1669 = vunpack.c.l.bf16 %v1653
    %v1670 = vunpack.c.l.bf16 %v1654
    %s1671 = scalar_lea.vmem %s7, 2
    %v1672 = vld [vmem:[%s1671] sm:$0x1]
    %v1674 = vlaneseq
    %v1675 = vshrl.u32 %v1674, 7
    %v1676 = vsub.s32 0, %v1675
    %v1677 = vrot.slane %v1672, %v1676
    %1679 = vmatprep.subr.mxu0 0.0
    %1680 = vmatpush1.msra.mxu0 %v1655
    %1681 = vmatprep.subr.mxu0 0.0
    %1682 = vmatpush1.msra.mxu0 %v1656
    %1683 = vmatprep.subr.mxu0 0.0
    %1684 = vmatpush1.msra.mxu0 %v1657
    %1685 = vmatprep.subr.mxu0 0.0
    %1686 = vmatpush1.msra.mxu0 %v1658
    %1687 = vmatprep.subr.mxu0 0.0
    %1688 = vmatpush1.msra.mxu0 %v1659
    %1689 = vmatprep.subr.mxu0 0.0
    %1690 = vmatpush1.msra.mxu0 %v1660
    %1691 = vmatprep.subr.mxu0 0.0
    %1692 = vmatpush1.msra.mxu0 %v1661
    %1693 = vmatprep.subr.mxu0 0.0
    %1694 = vmatpush1.msra.mxu0 %v1662
    %1695 = vmatprep.subr.mxu0 0.0
    %1696 = vmatpush1.msra.mxu0 %v1663
    %1697 = vmatprep.subr.mxu0 0.0
    %1698 = vmatpush1.msra.mxu0 %v1664
    %1699 = vmatprep.subr.mxu0 0.0
    %1700 = vmatpush1.msra.mxu0 %v1665
    %1701 = vmatprep.subr.mxu0 0.0
    %1702 = vmatpush1.msra.mxu0 %v1666
    %1703 = vmatprep.subr.mxu0 0.0
    %1704 = vmatpush1.msra.mxu0 %v1667
    %1705 = vmatprep.subr.mxu0 0.0
    %1706 = vmatpush1.msra.mxu0 %v1668
    %1707 = vmatprep.subr.mxu0 0.0
    %1708 = vmatpush1.msra.mxu0 %v1669
    %1709 = vmatprep.subr.mxu0 0.0
    %1710 = vmatpush1.msra.mxu0 %v1670
    %1711 = vmatprep.subr.mxu0 0.0
    %1712 = vmatpush1.msra.mxu0 0.0
    %1713 = vmatprep.subr.mxu0 0.0
    %1714 = vmatpush1.msra.mxu0 0.0
    %1715 = vmatprep.subr.mxu0 0.0
    %1716 = vmatpush1.msra.mxu0 0.0
    %1717 = vmatprep.subr.mxu0 0.0
    %1718 = vmatpush1.msra.mxu0 0.0
    %1719 = vmatprep.subr.mxu0 0.0
    %1720 = vmatpush1.msra.mxu0 0.0
    %1721 = vmatprep.subr.mxu0 0.0
    %1722 = vmatpush1.msra.mxu0 0.0
    %1723 = vmatprep.subr.mxu0 0.0
    %1724 = vmatpush1.msra.mxu0 0.0
    %1725 = vmatprep.subr.mxu0 0.0
    %1726 = vmatpush1.msra.mxu0 0.0
    %1727 = vmatprep.subr.mxu0 0.0
    %1728 = vmatpush1.msra.mxu0 0.0
    %1729 = vmatprep.subr.mxu0 0.0
    %1730 = vmatpush1.msra.mxu0 0.0
    %1731 = vmatprep.subr.mxu0 0.0
    %1732 = vmatpush1.msra.mxu0 0.0
    %1733 = vmatprep.subr.mxu0 0.0
    %1734 = vmatpush1.msra.mxu0 0.0
    %1735 = vmatprep.subr.mxu0 0.0
    %1736 = vmatpush1.msra.mxu0 0.0
    %1737 = vmatprep.subr.mxu0 0.0
    %1738 = vmatpush1.msra.mxu0 0.0
    %1739 = vmatprep.subr.mxu0 0.0
    %1740 = vmatpush1.msra.mxu0 0.0
    %1741 = vmatprep.subr.mxu0 0.0
    %1742 = vmatpush1.msra.mxu0 0.0
    %1743 = vmatprep.mubr.f32.mxu0 0.0
    %1744 = vmatmul.mubr.f32.gmra.mrb[0].mxu0 %v1637
    %v1745 = vpop.f32.mrb[0].mxu0
    %v1746 = vadd.f32 %v1677, %v1745
    %v1747 = vpop.f32.mrb[0].mxu0
    %1748 = vdwg.mxu0
    %v1749 = vadd.f32 %v1637, %v1746
    %s1750 = scalar_lea.vmem [#allocation4], 2
    %v1751 = vld [vmem:[%s1750] sm:$0x1]
    %s1752 = scalar_lea.vmem [#allocation6], 2
    %v1753 = vld [vmem:[%s1752] sm:$0x1]
    %1754 = vadd.xlane.f32.xlu0 %v1749
    %v1755 = vpop.xlane.xlu0 %1754
    %v1756 = vmul.f32 %v1755, %v603
    %v1757 = vmul.f32 %v1749, %v1749
    %1758 = vadd.xlane.f32.xlu0 %v1757
    %v1759 = vpop.xlane.xlu0 %1758
    %v1760 = vmul.f32 %v1759, %v603
    %v1761 = vmul.f32 %v1756, %v1756
    %v1762 = vsub.f32 %v1760, %v1761
    %v1763 = vsub.f32 %v1749, %v1756
    %v1764 = vadd.f32 %v1762, 1e-05
    %v1765 = vrsqrt.pop %v1764
    %v1766 = vmul.f32 %v1763, %v1765
    %v1768 = vlaneseq
    %v1769 = vshrl.u32 %v1768, 7
    %v1770 = vsub.s32 0, %v1769
    %v1771 = vrot.slane %v1751, %v1770
    %v1773 = vmul.f32 %v1766, %v1771
    %v1775 = vlaneseq
    %v1776 = vshrl.u32 %v1775, 7
    %v1777 = vsub.s32 0, %v1776
    %v1778 = vrot.slane %v1753, %v1777
    %v1780 = vadd.f32 %v1773, %v1778
    %s1781 = scalar_lea.vmem [#allocation7], 256
    %v1782 = vld [vmem:[%s1781] sm:$0xff]
    %v1783 = vld [vmem:[%s1781 + $0x8] sm:$0xff]
    %v1784 = vld [vmem:[%s1781 + $0x10] sm:$0xff]
    %v1785 = vld [vmem:[%s1781 + $0x18] sm:$0xff]
    %v1786 = vld [vmem:[%s1781 + $0x20] sm:$0xff]
    %v1787 = vld [vmem:[%s1781 + $0x28] sm:$0xff]
    %v1788 = vld [vmem:[%s1781 + $0x30] sm:$0xff]
    %v1789 = vld [vmem:[%s1781 + $0x38] sm:$0xff]
    %v1790 = vld [vmem:[%s1781 + $0x40] sm:$0xff]
    %v1791 = vld [vmem:[%s1781 + $0x48] sm:$0xff]
    %v1792 = vld [vmem:[%s1781 + $0x50] sm:$0xff]
    %v1793 = vld [vmem:[%s1781 + $0x58] sm:$0xff]
    %v1794 = vld [vmem:[%s1781 + $0x60] sm:$0xff]
    %v1795 = vld [vmem:[%s1781 + $0x68] sm:$0xff]
    %v1796 = vld [vmem:[%s1781 + $0x70] sm:$0xff]
    %v1797 = vld [vmem:[%s1781 + $0x78] sm:$0xff]
    %v1798 = vunpack.c.l.bf16 %v1782
    %v1799 = vunpack.c.h.bf16 %v1782
    %v1800 = vunpack.c.l.bf16 %v1783
    %v1801 = vunpack.c.h.bf16 %v1783
    %v1802 = vunpack.c.l.bf16 %v1784
    %v1803 = vunpack.c.h.bf16 %v1784
    %v1804 = vunpack.c.l.bf16 %v1785
    %v1805 = vunpack.c.h.bf16 %v1785
    %v1806 = vunpack.c.l.bf16 %v1786
    %v1807 = vunpack.c.h.bf16 %v1786
    %v1808 = vunpack.c.l.bf16 %v1787
    %v1809 = vunpack.c.h.bf16 %v1787
    %v1810 = vunpack.c.l.bf16 %v1788
    %v1811 = vunpack.c.h.bf16 %v1788
    %v1812 = vunpack.c.l.bf16 %v1789
    %v1813 = vunpack.c.h.bf16 %v1789
    %v1814 = vunpack.c.l.bf16 %v1790
    %v1815 = vunpack.c.h.bf16 %v1790
    %v1816 = vunpack.c.l.bf16 %v1791
    %v1817 = vunpack.c.h.bf16 %v1791
    %v1818 = vunpack.c.l.bf16 %v1792
    %v1819 = vunpack.c.h.bf16 %v1792
    %v1820 = vunpack.c.l.bf16 %v1793
    %v1821 = vunpack.c.h.bf16 %v1793
    %v1822 = vunpack.c.l.bf16 %v1794
    %v1823 = vunpack.c.h.bf16 %v1794
    %v1824 = vunpack.c.l.bf16 %v1795
    %v1825 = vunpack.c.h.bf16 %v1795
    %v1826 = vunpack.c.l.bf16 %v1796
    %v1827 = vunpack.c.h.bf16 %v1796
    %v1828 = vunpack.c.l.bf16 %v1797
    %v1829 = vunpack.c.h.bf16 %v1797
    %s1830 = scalar_lea.vmem [#allocation9], 4
    %v1831 = vld [vmem:[%s1830] sm:$0x3]
    %v1833 = vlaneseq
    %v1834 = vshrl.u32 %v1833, 7
    %v1835 = vsub.s32 0, %v1834
    %v1836 = vrot.slane %v1831, %v1835
    %v1837 = vlaneseq
    %v1838 = vshrl.u32 %v1837, 7
    %v1839 = vsub.s32 1, %v1838
    %v1840 = vrot.slane %v1831, %v1839
    %1843 = vmatprep.subr.mxu0 %v1799
    %1844 = vmatpush1.msra.mxu0 %v1798
    %1845 = vmatprep.subr.mxu0 %v1801
    %1846 = vmatpush1.msra.mxu0 %v1800
    %1847 = vmatprep.subr.mxu0 %v1803
    %1848 = vmatpush1.msra.mxu0 %v1802
    %1849 = vmatprep.subr.mxu0 %v1805
    %1850 = vmatpush1.msra.mxu0 %v1804
    %1851 = vmatprep.subr.mxu0 %v1807
    %1852 = vmatpush1.msra.mxu0 %v1806
    %1853 = vmatprep.subr.mxu0 %v1809
    %1854 = vmatpush1.msra.mxu0 %v1808
    %1855 = vmatprep.subr.mxu0 %v1811
    %1856 = vmatpush1.msra.mxu0 %v1810
    %1857 = vmatprep.subr.mxu0 %v1813
    %1858 = vmatpush1.msra.mxu0 %v1812
    %1859 = vmatprep.subr.mxu0 %v1815
    %1860 = vmatpush1.msra.mxu0 %v1814
    %1861 = vmatprep.subr.mxu0 %v1817
    %1862 = vmatpush1.msra.mxu0 %v1816
    %1863 = vmatprep.subr.mxu0 %v1819
    %1864 = vmatpush1.msra.mxu0 %v1818
    %1865 = vmatprep.subr.mxu0 %v1821
    %1866 = vmatpush1.msra.mxu0 %v1820
    %1867 = vmatprep.subr.mxu0 %v1823
    %1868 = vmatpush1.msra.mxu0 %v1822
    %1869 = vmatprep.subr.mxu0 %v1825
    %1870 = vmatpush1.msra.mxu0 %v1824
    %1871 = vmatprep.subr.mxu0 %v1827
    %1872 = vmatpush1.msra.mxu0 %v1826
    %1873 = vmatprep.subr.mxu0 %v1829
    %1874 = vmatpush1.msra.mxu0 %v1828
    %1875 = vmatprep.subr.mxu0 0.0
    %1876 = vmatpush1.msra.mxu0 0.0
    %1877 = vmatprep.subr.mxu0 0.0
    %1878 = vmatpush1.msra.mxu0 0.0
    %1879 = vmatprep.subr.mxu0 0.0
    %1880 = vmatpush1.msra.mxu0 0.0
    %1881 = vmatprep.subr.mxu0 0.0
    %1882 = vmatpush1.msra.mxu0 0.0
    %1883 = vmatprep.subr.mxu0 0.0
    %1884 = vmatpush1.msra.mxu0 0.0
    %1885 = vmatprep.subr.mxu0 0.0
    %1886 = vmatpush1.msra.mxu0 0.0
    %1887 = vmatprep.subr.mxu0 0.0
    %1888 = vmatpush1.msra.mxu0 0.0
    %1889 = vmatprep.subr.mxu0 0.0
    %1890 = vmatpush1.msra.mxu0 0.0
    %1891 = vmatprep.subr.mxu0 0.0
    %1892 = vmatpush1.msra.mxu0 0.0
    %1893 = vmatprep.subr.mxu0 0.0
    %1894 = vmatpush1.msra.mxu0 0.0
    %1895 = vmatprep.subr.mxu0 0.0
    %1896 = vmatpush1.msra.mxu0 0.0
    %1897 = vmatprep.subr.mxu0 0.0
    %1898 = vmatpush1.msra.mxu0 0.0
    %1899 = vmatprep.subr.mxu0 0.0
    %1900 = vmatpush1.msra.mxu0 0.0
    %1901 = vmatprep.subr.mxu0 0.0
    %1902 = vmatpush1.msra.mxu0 0.0
    %1903 = vmatprep.subr.mxu0 0.0
    %1904 = vmatpush1.msra.mxu0 0.0
    %1905 = vmatprep.subr.mxu0 0.0
    %1906 = vmatpush1.msra.mxu0 0.0
    %1907 = vmatprep.mubr.f32.mxu0 0.0
    %1908 = vmatmul.mubr.f32.gmra.mrb[0].mxu0 %v1780
    %v1909 = vpop.f32.mrb[0].mxu0
    %v1910 = vadd.f32 %v1836, %v1909
    %v1911 = vpop.f32.mrb[0].mxu0
    %v1912 = vadd.f32 %v1840, %v1911
    %1913 = vdwg.mxu0
    %v1914 = vmax.f32 %v1910, 0.0
    %v1915 = vmax.f32 %v1912, 0.0
    %s1916 = scalar_lea.vmem [#allocation10], 256
    %v1917 = vld [vmem:[%s1916] sm:$0xf]
    %v1918 = vld [vmem:[%s1916 + $0x4] sm:$0xf]
    %v1919 = vld [vmem:[%s1916 + $0x8] sm:$0xf]
    %v1920 = vld [vmem:[%s1916 + $0xc] sm:$0xf]
    %v1921 = vld [vmem:[%s1916 + $0x10] sm:$0xf]
    %v1922 = vld [vmem:[%s1916 + $0x14] sm:$0xf]
    %v1923 = vld [vmem:[%s1916 + $0x18] sm:$0xf]
    %v1924 = vld [vmem:[%s1916 + $0x1c] sm:$0xf]
    %v1925 = vld [vmem:[%s1916 + $0x20] sm:$0xf]
    %v1926 = vld [vmem:[%s1916 + $0x24] sm:$0xf]
    %v1927 = vld [vmem:[%s1916 + $0x28] sm:$0xf]
    %v1928 = vld [vmem:[%s1916 + $0x2c] sm:$0xf]
    %v1929 = vld [vmem:[%s1916 + $0x30] sm:$0xf]
    %v1930 = vld [vmem:[%s1916 + $0x34] sm:$0xf]
    %v1931 = vld [vmem:[%s1916 + $0x38] sm:$0xf]
    %v1932 = vld [vmem:[%s1916 + $0x3c] sm:$0xf]
    %v1933 = vld [vmem:[%s1916 + $0x40] sm:$0xf]
    %v1934 = vld [vmem:[%s1916 + $0x44] sm:$0xf]
    %v1935 = vld [vmem:[%s1916 + $0x48] sm:$0xf]
    %v1936 = vld [vmem:[%s1916 + $0x4c] sm:$0xf]
    %v1937 = vld [vmem:[%s1916 + $0x50] sm:$0xf]
    %v1938 = vld [vmem:[%s1916 + $0x54] sm:$0xf]
    %v1939 = vld [vmem:[%s1916 + $0x58] sm:$0xf]
    %v1940 = vld [vmem:[%s1916 + $0x5c] sm:$0xf]
    %v1941 = vld [vmem:[%s1916 + $0x60] sm:$0xf]
    %v1942 = vld [vmem:[%s1916 + $0x64] sm:$0xf]
    %v1943 = vld [vmem:[%s1916 + $0x68] sm:$0xf]
    %v1944 = vld [vmem:[%s1916 + $0x6c] sm:$0xf]
    %v1945 = vld [vmem:[%s1916 + $0x70] sm:$0xf]
    %v1946 = vld [vmem:[%s1916 + $0x74] sm:$0xf]
    %v1947 = vld [vmem:[%s1916 + $0x78] sm:$0xf]
    %v1948 = vld [vmem:[%s1916 + $0x7c] sm:$0xf]
    %v1949 = vunpack.c.l.bf16 %v1917
    %v1950 = vunpack.c.l.bf16 %v1918
    %v1951 = vunpack.c.l.bf16 %v1919
    %v1952 = vunpack.c.l.bf16 %v1920
    %v1953 = vunpack.c.l.bf16 %v1921
    %v1954 = vunpack.c.l.bf16 %v1922
    %v1955 = vunpack.c.l.bf16 %v1923
    %v1956 = vunpack.c.l.bf16 %v1924
    %v1957 = vunpack.c.l.bf16 %v1925
    %v1958 = vunpack.c.l.bf16 %v1926
    %v1959 = vunpack.c.l.bf16 %v1927
    %v1960 = vunpack.c.l.bf16 %v1928
    %v1961 = vunpack.c.l.bf16 %v1929
    %v1962 = vunpack.c.l.bf16 %v1930
    %v1963 = vunpack.c.l.bf16 %v1931
    %v1964 = vunpack.c.l.bf16 %v1932
    %v1965 = vunpack.c.l.bf16 %v1933
    %v1966 = vunpack.c.l.bf16 %v1934
    %v1967 = vunpack.c.l.bf16 %v1935
    %v1968 = vunpack.c.l.bf16 %v1936
    %v1969 = vunpack.c.l.bf16 %v1937
    %v1970 = vunpack.c.l.bf16 %v1938
    %v1971 = vunpack.c.l.bf16 %v1939
    %v1972 = vunpack.c.l.bf16 %v1940
    %v1973 = vunpack.c.l.bf16 %v1941
    %v1974 = vunpack.c.l.bf16 %v1942
    %v1975 = vunpack.c.l.bf16 %v1943
    %v1976 = vunpack.c.l.bf16 %v1944
    %v1977 = vunpack.c.l.bf16 %v1945
    %v1978 = vunpack.c.l.bf16 %v1946
    %v1979 = vunpack.c.l.bf16 %v1947
    %v1980 = vunpack.c.l.bf16 %v1948
    %s1981 = scalar_lea.vmem [#allocation12], 2
    %v1982 = vld [vmem:[%s1981] sm:$0x1]
    %v1984 = vlaneseq
    %v1985 = vshrl.u32 %v1984, 7
    %v1986 = vsub.s32 0, %v1985
    %v1987 = vrot.slane %v1982, %v1986
    %1989 = vmatprep.subr.mxu0 0.0
    %1990 = vmatpush1.msra.mxu0 %v1949
    %1991 = vmatprep.subr.mxu0 0.0
    %1992 = vmatpush1.msra.mxu0 %v1950
    %1993 = vmatprep.subr.mxu0 0.0
    %1994 = vmatpush1.msra.mxu0 %v1951
    %1995 = vmatprep.subr.mxu0 0.0
    %1996 = vmatpush1.msra.mxu0 %v1952
    %1997 = vmatprep.subr.mxu0 0.0
    %1998 = vmatpush1.msra.mxu0 %v1953
    %1999 = vmatprep.subr.mxu0 0.0
    %2000 = vmatpush1.msra.mxu0 %v1954
    %2001 = vmatprep.subr.mxu0 0.0
    %2002 = vmatpush1.msra.mxu0 %v1955
    %2003 = vmatprep.subr.mxu0 0.0
    %2004 = vmatpush1.msra.mxu0 %v1956
    %2005 = vmatprep.subr.mxu0 0.0
    %2006 = vmatpush1.msra.mxu0 %v1957
    %2007 = vmatprep.subr.mxu0 0.0
    %2008 = vmatpush1.msra.mxu0 %v1958
    %2009 = vmatprep.subr.mxu0 0.0
    %2010 = vmatpush1.msra.mxu0 %v1959
    %2011 = vmatprep.subr.mxu0 0.0
    %2012 = vmatpush1.msra.mxu0 %v1960
    %2013 = vmatprep.subr.mxu0 0.0
    %2014 = vmatpush1.msra.mxu0 %v1961
    %2015 = vmatprep.subr.mxu0 0.0
    %2016 = vmatpush1.msra.mxu0 %v1962
    %2017 = vmatprep.subr.mxu0 0.0
    %2018 = vmatpush1.msra.mxu0 %v1963
    %2019 = vmatprep.subr.mxu0 0.0
    %2020 = vmatpush1.msra.mxu0 %v1964
    %2021 = vmatprep.subr.mxu0 0.0
    %2022 = vmatpush1.msra.mxu0 %v1965
    %2023 = vmatprep.subr.mxu0 0.0
    %2024 = vmatpush1.msra.mxu0 %v1966
    %2025 = vmatprep.subr.mxu0 0.0
    %2026 = vmatpush1.msra.mxu0 %v1967
    %2027 = vmatprep.subr.mxu0 0.0
    %2028 = vmatpush1.msra.mxu0 %v1968
    %2029 = vmatprep.subr.mxu0 0.0
    %2030 = vmatpush1.msra.mxu0 %v1969
    %2031 = vmatprep.subr.mxu0 0.0
    %2032 = vmatpush1.msra.mxu0 %v1970
    %2033 = vmatprep.subr.mxu0 0.0
    %2034 = vmatpush1.msra.mxu0 %v1971
    %2035 = vmatprep.subr.mxu0 0.0
    %2036 = vmatpush1.msra.mxu0 %v1972
    %2037 = vmatprep.subr.mxu0 0.0
    %2038 = vmatpush1.msra.mxu0 %v1973
    %2039 = vmatprep.subr.mxu0 0.0
    %2040 = vmatpush1.msra.mxu0 %v1974
    %2041 = vmatprep.subr.mxu0 0.0
    %2042 = vmatpush1.msra.mxu0 %v1975
    %2043 = vmatprep.subr.mxu0 0.0
    %2044 = vmatpush1.msra.mxu0 %v1976
    %2045 = vmatprep.subr.mxu0 0.0
    %2046 = vmatpush1.msra.mxu0 %v1977
    %2047 = vmatprep.subr.mxu0 0.0
    %2048 = vmatpush1.msra.mxu0 %v1978
    %2049 = vmatprep.subr.mxu0 0.0
    %2050 = vmatpush1.msra.mxu0 %v1979
    %2051 = vmatprep.subr.mxu0 0.0
    %2052 = vmatpush1.msra.mxu0 %v1980
    %2053 = vmatprep.mubr.f32.mxu0 %v1915
    %2054 = vmatmul.mubr.f32.gmra.mrb[0].mxu0 %v1914
    %v2055 = vpop.f32.mrb[0].mxu0
    %v2056 = vadd.f32 %v1987, %v2055
    %v2057 = vpop.f32.mrb[0].mxu0
    %2058 = vdwg.mxu0
    %v2059 = vadd.f32 %v1780, %v2056
    %s2060 = scalar_lea.vmem [#allocation13], 2
    %v2061 = vld [vmem:[%s2060] sm:$0x1]
    %s2062 = scalar_lea.vmem [#allocation15], 2
    %v2063 = vld [vmem:[%s2062] sm:$0x1]
    %2064 = vadd.xlane.f32.xlu0 %v2059
    %v2065 = vpop.xlane.xlu0 %2064
    %v2066 = vmul.f32 %v2065, %v603
    %v2067 = vmul.f32 %v2059, %v2059
    %2068 = vadd.xlane.f32.xlu0 %v2067
    %v2069 = vpop.xlane.xlu0 %2068
    %v2070 = vmul.f32 %v2069, %v603
    %v2071 = vmul.f32 %v2066, %v2066
    %v2072 = vsub.f32 %v2070, %v2071
    %v2073 = vsub.f32 %v2059, %v2066
    %v2074 = vadd.f32 %v2072, 1e-05
    %v2075 = vrsqrt.pop %v2074
    %v2076 = vmul.f32 %v2073, %v2075
    %v2078 = vlaneseq
    %v2079 = vshrl.u32 %v2078, 7
    %v2080 = vsub.s32 0, %v2079
    %v2081 = vrot.slane %v2061, %v2080
    %v2083 = vmul.f32 %v2076, %v2081
    %v2085 = vlaneseq
    %v2086 = vshrl.u32 %v2085, 7
    %v2087 = vsub.s32 0, %v2086
    %v2088 = vrot.slane %v2063, %v2087
    %v2090 = vadd.f32 %v2083, %v2088
    %s2091 = scalar_lea.vmem [#allocation2], 192
    %v2092 = vld [vmem:[%s2091] sm:$0xf]
    %v2093 = vld [vmem:[%s2091 + $0x4] sm:$0xf]
    %v2094 = vld [vmem:[%s2091 + $0x8] sm:$0xf]
    %v2095 = vld [vmem:[%s2091 + $0xc] sm:$0xf]
    %v2096 = vld [vmem:[%s2091 + $0x10] sm:$0xf]
    %v2097 = vld [vmem:[%s2091 + $0x14] sm:$0xf]
    %v2098 = vld [vmem:[%s2091 + $0x18] sm:$0xf]
    %v2099 = vld [vmem:[%s2091 + $0x1c] sm:$0xf]
    %v2100 = vld [vmem:[%s2091 + $0x20] sm:$0xf]
    %v2101 = vld [vmem:[%s2091 + $0x24] sm:$0xf]
    %v2102 = vld [vmem:[%s2091 + $0x28] sm:$0xf]
    %v2103 = vld [vmem:[%s2091 + $0x2c] sm:$0xf]
    %v2104 = vld [vmem:[%s2091 + $0x30] sm:$0xf]
    %v2105 = vld [vmem:[%s2091 + $0x34] sm:$0xf]
    %v2106 = vld [vmem:[%s2091 + $0x38] sm:$0xf]
    %v2107 = vld [vmem:[%s2091 + $0x3c] sm:$0xf]
    %v2108 = vunpack.c.l.bf16 %v2092
    %v2109 = vunpack.c.l.bf16 %v2093
    %v2110 = vunpack.c.l.bf16 %v2094
    %v2111 = vunpack.c.l.bf16 %v2095
    %v2112 = vunpack.c.l.bf16 %v2096
    %v2113 = vunpack.c.l.bf16 %v2097
    %v2114 = vunpack.c.l.bf16 %v2098
    %v2115 = vunpack.c.l.bf16 %v2099
    %v2116 = vunpack.c.l.bf16 %v2100
    %v2117 = vunpack.c.l.bf16 %v2101
    %v2118 = vunpack.c.l.bf16 %v2102
    %v2119 = vunpack.c.l.bf16 %v2103
    %v2120 = vunpack.c.l.bf16 %v2104
    %v2121 = vunpack.c.l.bf16 %v2105
    %v2122 = vunpack.c.l.bf16 %v2106
    %v2123 = vunpack.c.l.bf16 %v2107
    %s2124 = scalar_lea.vmem %s7, 3
    %v2125 = vld [vmem:[%s2124] sm:$0x1]
    %v2127 = vlaneseq
    %v2128 = vshrl.u32 %v2127, 7
    %v2129 = vsub.s32 0, %v2128
    %v2130 = vrot.slane %v2125, %v2129
    %2132 = vmatprep.subr.mxu0 0.0
    %2133 = vmatpush1.msra.mxu0 %v2108
    %2134 = vmatprep.subr.mxu0 0.0
    %2135 = vmatpush1.msra.mxu0 %v2109
    %2136 = vmatprep.subr.mxu0 0.0
    %2137 = vmatpush1.msra.mxu0 %v2110
    %2138 = vmatprep.subr.mxu0 0.0
    %2139 = vmatpush1.msra.mxu0 %v2111
    %2140 = vmatprep.subr.mxu0 0.0
    %2141 = vmatpush1.msra.mxu0 %v2112
    %2142 = vmatprep.subr.mxu0 0.0
    %2143 = vmatpush1.msra.mxu0 %v2113
    %2144 = vmatprep.subr.mxu0 0.0
    %2145 = vmatpush1.msra.mxu0 %v2114
    %2146 = vmatprep.subr.mxu0 0.0
    %2147 = vmatpush1.msra.mxu0 %v2115
    %2148 = vmatprep.subr.mxu0 0.0
    %2149 = vmatpush1.msra.mxu0 %v2116
    %2150 = vmatprep.subr.mxu0 0.0
    %2151 = vmatpush1.msra.mxu0 %v2117
    %2152 = vmatprep.subr.mxu0 0.0
    %2153 = vmatpush1.msra.mxu0 %v2118
    %2154 = vmatprep.subr.mxu0 0.0
    %2155 = vmatpush1.msra.mxu0 %v2119
    %2156 = vmatprep.subr.mxu0 0.0
    %2157 = vmatpush1.msra.mxu0 %v2120
    %2158 = vmatprep.subr.mxu0 0.0
    %2159 = vmatpush1.msra.mxu0 %v2121
    %2160 = vmatprep.subr.mxu0 0.0
    %2161 = vmatpush1.msra.mxu0 %v2122
    %2162 = vmatprep.subr.mxu0 0.0
    %2163 = vmatpush1.msra.mxu0 %v2123
    %2164 = vmatprep.subr.mxu0 0.0
    %2165 = vmatpush1.msra.mxu0 0.0
    %2166 = vmatprep.subr.mxu0 0.0
    %2167 = vmatpush1.msra.mxu0 0.0
    %2168 = vmatprep.subr.mxu0 0.0
    %2169 = vmatpush1.msra.mxu0 0.0
    %2170 = vmatprep.subr.mxu0 0.0
    %2171 = vmatpush1.msra.mxu0 0.0
    %2172 = vmatprep.subr.mxu0 0.0
    %2173 = vmatpush1.msra.mxu0 0.0
    %2174 = vmatprep.subr.mxu0 0.0
    %2175 = vmatpush1.msra.mxu0 0.0
    %2176 = vmatprep.subr.mxu0 0.0
    %2177 = vmatpush1.msra.mxu0 0.0
    %2178 = vmatprep.subr.mxu0 0.0
    %2179 = vmatpush1.msra.mxu0 0.0
    %2180 = vmatprep.subr.mxu0 0.0
    %2181 = vmatpush1.msra.mxu0 0.0
    %2182 = vmatprep.subr.mxu0 0.0
    %2183 = vmatpush1.msra.mxu0 0.0
    %2184 = vmatprep.subr.mxu0 0.0
    %2185 = vmatpush1.msra.mxu0 0.0
    %2186 = vmatprep.subr.mxu0 0.0
    %2187 = vmatpush1.msra.mxu0 0.0
    %2188 = vmatprep.subr.mxu0 0.0
    %2189 = vmatpush1.msra.mxu0 0.0
    %2190 = vmatprep.subr.mxu0 0.0
    %2191 = vmatpush1.msra.mxu0 0.0
    %2192 = vmatprep.subr.mxu0 0.0
    %2193 = vmatpush1.msra.mxu0 0.0
    %2194 = vmatprep.subr.mxu0 0.0
    %2195 = vmatpush1.msra.mxu0 0.0
    %2196 = vmatprep.mubr.f32.mxu0 0.0
    %2197 = vmatmul.mubr.f32.gmra.mrb[0].mxu0 %v2090
    %v2198 = vpop.f32.mrb[0].mxu0
    %v2199 = vadd.f32 %v2130, %v2198
    %v2200 = vpop.f32.mrb[0].mxu0
    %2201 = vdwg.mxu0
    %v2202 = vadd.f32 %v2090, %v2199
    %s2203 = scalar_lea.vmem [#allocation4], 3
    %v2204 = vld [vmem:[%s2203] sm:$0x1]
    %s2205 = scalar_lea.vmem [#allocation6], 3
    %v2206 = vld [vmem:[%s2205] sm:$0x1]
    %2207 = vadd.xlane.f32.xlu0 %v2202
    %v2208 = vpop.xlane.xlu0 %2207
    %v2209 = vmul.f32 %v2208, %v603
    %v2210 = vmul.f32 %v2202, %v2202
    %2211 = vadd.xlane.f32.xlu0 %v2210
    %v2212 = vpop.xlane.xlu0 %2211
    %v2213 = vmul.f32 %v2212, %v603
    %v2214 = vmul.f32 %v2209, %v2209
    %v2215 = vsub.f32 %v2213, %v2214
    %v2216 = vsub.f32 %v2202, %v2209
    %v2217 = vadd.f32 %v2215, 1e-05
    %v2218 = vrsqrt.pop %v2217
    %v2219 = vmul.f32 %v2216, %v2218
    %v2221 = vlaneseq
    %v2222 = vshrl.u32 %v2221, 7
    %v2223 = vsub.s32 0, %v2222
    %v2224 = vrot.slane %v2204, %v2223
    %v2226 = vmul.f32 %v2219, %v2224
    %v2228 = vlaneseq
    %v2229 = vshrl.u32 %v2228, 7
    %v2230 = vsub.s32 0, %v2229
    %v2231 = vrot.slane %v2206, %v2230
    %v2233 = vadd.f32 %v2226, %v2231
    %s2234 = scalar_lea.vmem [#allocation7], 384
    %v2235 = vld [vmem:[%s2234] sm:$0xff]
    %v2236 = vld [vmem:[%s2234 + $0x8] sm:$0xff]
    %v2237 = vld [vmem:[%s2234 + $0x10] sm:$0xff]
    %v2238 = vld [vmem:[%s2234 + $0x18] sm:$0xff]
    %v2239 = vld [vmem:[%s2234 + $0x20] sm:$0xff]
    %v2240 = vld [vmem:[%s2234 + $0x28] sm:$0xff]
    %v2241 = vld [vmem:[%s2234 + $0x30] sm:$0xff]
    %v2242 = vld [vmem:[%s2234 + $0x38] sm:$0xff]
    %v2243 = vld [vmem:[%s2234 + $0x40] sm:$0xff]
    %v2244 = vld [vmem:[%s2234 + $0x48] sm:$0xff]
    %v2245 = vld [vmem:[%s2234 + $0x50] sm:$0xff]
    %v2246 = vld [vmem:[%s2234 + $0x58] sm:$0xff]
    %v2247 = vld [vmem:[%s2234 + $0x60] sm:$0xff]
    %v2248 = vld [vmem:[%s2234 + $0x68] sm:$0xff]
    %v2249 = vld [vmem:[%s2234 + $0x70] sm:$0xff]
    %v2250 = vld [vmem:[%s2234 + $0x78] sm:$0xff]
    %v2251 = vunpack.c.l.bf16 %v2235
    %v2252 = vunpack.c.h.bf16 %v2235
    %v2253 = vunpack.c.l.bf16 %v2236
    %v2254 = vunpack.c.h.bf16 %v2236
    %v2255 = vunpack.c.l.bf16 %v2237
    %v2256 = vunpack.c.h.bf16 %v2237
    %v2257 = vunpack.c.l.bf16 %v2238
    %v2258 = vunpack.c.h.bf16 %v2238
    %v2259 = vunpack.c.l.bf16 %v2239
    %v2260 = vunpack.c.h.bf16 %v2239
    %v2261 = vunpack.c.l.bf16 %v2240
    %v2262 = vunpack.c.h.bf16 %v2240
    %v2263 = vunpack.c.l.bf16 %v2241
    %v2264 = vunpack.c.h.bf16 %v2241
    %v2265 = vunpack.c.l.bf16 %v2242
    %v2266 = vunpack.c.h.bf16 %v2242
    %v2267 = vunpack.c.l.bf16 %v2243
    %v2268 = vunpack.c.h.bf16 %v2243
    %v2269 = vunpack.c.l.bf16 %v2244
    %v2270 = vunpack.c.h.bf16 %v2244
    %v2271 = vunpack.c.l.bf16 %v2245
    %v2272 = vunpack.c.h.bf16 %v2245
    %v2273 = vunpack.c.l.bf16 %v2246
    %v2274 = vunpack.c.h.bf16 %v2246
    %v2275 = vunpack.c.l.bf16 %v2247
    %v2276 = vunpack.c.h.bf16 %v2247
    %v2277 = vunpack.c.l.bf16 %v2248
    %v2278 = vunpack.c.h.bf16 %v2248
    %v2279 = vunpack.c.l.bf16 %v2249
    %v2280 = vunpack.c.h.bf16 %v2249
    %v2281 = vunpack.c.l.bf16 %v2250
    %v2282 = vunpack.c.h.bf16 %v2250
    %s2283 = scalar_lea.vmem [#allocation9], 6
    %v2284 = vld [vmem:[%s2283] sm:$0x3]
    %v2286 = vlaneseq
    %v2287 = vshrl.u32 %v2286, 7
    %v2288 = vsub.s32 0, %v2287
    %v2289 = vrot.slane %v2284, %v2288
    %v2290 = vlaneseq
    %v2291 = vshrl.u32 %v2290, 7
    %v2292 = vsub.s32 1, %v2291
    %v2293 = vrot.slane %v2284, %v2292
    %2296 = vmatprep.subr.mxu0 %v2252
    %2297 = vmatpush1.msra.mxu0 %v2251
    %2298 = vmatprep.subr.mxu0 %v2254
    %2299 = vmatpush1.msra.mxu0 %v2253
    %2300 = vmatprep.subr.mxu0 %v2256
    %2301 = vmatpush1.msra.mxu0 %v2255
    %2302 = vmatprep.subr.mxu0 %v2258
    %2303 = vmatpush1.msra.mxu0 %v2257
    %2304 = vmatprep.subr.mxu0 %v2260
    %2305 = vmatpush1.msra.mxu0 %v2259
    %2306 = vmatprep.subr.mxu0 %v2262
    %2307 = vmatpush1.msra.mxu0 %v2261
    %2308 = vmatprep.subr.mxu0 %v2264
    %2309 = vmatpush1.msra.mxu0 %v2263
    %2310 = vmatprep.subr.mxu0 %v2266
    %2311 = vmatpush1.msra.mxu0 %v2265
    %2312 = vmatprep.subr.mxu0 %v2268
    %2313 = vmatpush1.msra.mxu0 %v2267
    %2314 = vmatprep.subr.mxu0 %v2270
    %2315 = vmatpush1.msra.mxu0 %v2269
    %2316 = vmatprep.subr.mxu0 %v2272
    %2317 = vmatpush1.msra.mxu0 %v2271
    %2318 = vmatprep.subr.mxu0 %v2274
    %2319 = vmatpush1.msra.mxu0 %v2273
    %2320 = vmatprep.subr.mxu0 %v2276
    %2321 = vmatpush1.msra.mxu0 %v2275
    %2322 = vmatprep.subr.mxu0 %v2278
    %2323 = vmatpush1.msra.mxu0 %v2277
    %2324 = vmatprep.subr.mxu0 %v2280
    %2325 = vmatpush1.msra.mxu0 %v2279
    %2326 = vmatprep.subr.mxu0 %v2282
    %2327 = vmatpush1.msra.mxu0 %v2281
    %2328 = vmatprep.subr.mxu0 0.0
    %2329 = vmatpush1.msra.mxu0 0.0
    %2330 = vmatprep.subr.mxu0 0.0
    %2331 = vmatpush1.msra.mxu0 0.0
    %2332 = vmatprep.subr.mxu0 0.0
    %2333 = vmatpush1.msra.mxu0 0.0
    %2334 = vmatprep.subr.mxu0 0.0
    %2335 = vmatpush1.msra.mxu0 0.0
    %2336 = vmatprep.subr.mxu0 0.0
    %2337 = vmatpush1.msra.mxu0 0.0
    %2338 = vmatprep.subr.mxu0 0.0
    %2339 = vmatpush1.msra.mxu0 0.0
    %2340 = vmatprep.subr.mxu0 0.0
    %2341 = vmatpush1.msra.mxu0 0.0
    %2342 = vmatprep.subr.mxu0 0.0
    %2343 = vmatpush1.msra.mxu0 0.0
    %2344 = vmatprep.subr.mxu0 0.0
    %2345 = vmatpush1.msra.mxu0 0.0
    %2346 = vmatprep.subr.mxu0 0.0
    %2347 = vmatpush1.msra.mxu0 0.0
    %2348 = vmatprep.subr.mxu0 0.0
    %2349 = vmatpush1.msra.mxu0 0.0
    %2350 = vmatprep.subr.mxu0 0.0
    %2351 = vmatpush1.msra.mxu0 0.0
    %2352 = vmatprep.subr.mxu0 0.0
    %2353 = vmatpush1.msra.mxu0 0.0
    %2354 = vmatprep.subr.mxu0 0.0
    %2355 = vmatpush1.msra.mxu0 0.0
    %2356 = vmatprep.subr.mxu0 0.0
    %2357 = vmatpush1.msra.mxu0 0.0
    %2358 = vmatprep.subr.mxu0 0.0
    %2359 = vmatpush1.msra.mxu0 0.0
    %2360 = vmatprep.mubr.f32.mxu0 0.0
    %2361 = vmatmul.mubr.f32.gmra.mrb[0].mxu0 %v2233
    %v2362 = vpop.f32.mrb[0].mxu0
    %v2363 = vadd.f32 %v2289, %v2362
    %v2364 = vpop.f32.mrb[0].mxu0
    %v2365 = vadd.f32 %v2293, %v2364
    %2366 = vdwg.mxu0
    %v2367 = vmax.f32 %v2363, 0.0
    %v2368 = vmax.f32 %v2365, 0.0
    %s2369 = scalar_lea.vmem [#allocation10], 384
    %v2370 = vld [vmem:[%s2369] sm:$0xf]
    %v2371 = vld [vmem:[%s2369 + $0x4] sm:$0xf]
    %v2372 = vld [vmem:[%s2369 + $0x8] sm:$0xf]
    %v2373 = vld [vmem:[%s2369 + $0xc] sm:$0xf]
    %v2374 = vld [vmem:[%s2369 + $0x10] sm:$0xf]
    %v2375 = vld [vmem:[%s2369 + $0x14] sm:$0xf]
    %v2376 = vld [vmem:[%s2369 + $0x18] sm:$0xf]
    %v2377 = vld [vmem:[%s2369 + $0x1c] sm:$0xf]
    %v2378 = vld [vmem:[%s2369 + $0x20] sm:$0xf]
    %v2379 = vld [vmem:[%s2369 + $0x24] sm:$0xf]
    %v2380 = vld [vmem:[%s2369 + $0x28] sm:$0xf]
    %v2381 = vld [vmem:[%s2369 + $0x2c] sm:$0xf]
    %v2382 = vld [vmem:[%s2369 + $0x30] sm:$0xf]
    %v2383 = vld [vmem:[%s2369 + $0x34] sm:$0xf]
    %v2384 = vld [vmem:[%s2369 + $0x38] sm:$0xf]
    %v2385 = vld [vmem:[%s2369 + $0x3c] sm:$0xf]
    %v2386 = vld [vmem:[%s2369 + $0x40] sm:$0xf]
    %v2387 = vld [vmem:[%s2369 + $0x44] sm:$0xf]
    %v2388 = vld [vmem:[%s2369 + $0x48] sm:$0xf]
    %v2389 = vld [vmem:[%s2369 + $0x4c] sm:$0xf]
    %v2390 = vld [vmem:[%s2369 + $0x50] sm:$0xf]
    %v2391 = vld [vmem:[%s2369 + $0x54] sm:$0xf]
    %v2392 = vld [vmem:[%s2369 + $0x58] sm:$0xf]
    %v2393 = vld [vmem:[%s2369 + $0x5c] sm:$0xf]
    %v2394 = vld [vmem:[%s2369 + $0x60] sm:$0xf]
    %v2395 = vld [vmem:[%s2369 + $0x64] sm:$0xf]
    %v2396 = vld [vmem:[%s2369 + $0x68] sm:$0xf]
    %v2397 = vld [vmem:[%s2369 + $0x6c] sm:$0xf]
    %v2398 = vld [vmem:[%s2369 + $0x70] sm:$0xf]
    %v2399 = vld [vmem:[%s2369 + $0x74] sm:$0xf]
    %v2400 = vld [vmem:[%s2369 + $0x78] sm:$0xf]
    %v2401 = vld [vmem:[%s2369 + $0x7c] sm:$0xf]
    %v2402 = vunpack.c.l.bf16 %v2370
    %v2403 = vunpack.c.l.bf16 %v2371
    %v2404 = vunpack.c.l.bf16 %v2372
    %v2405 = vunpack.c.l.bf16 %v2373
    %v2406 = vunpack.c.l.bf16 %v2374
    %v2407 = vunpack.c.l.bf16 %v2375
    %v2408 = vunpack.c.l.bf16 %v2376
    %v2409 = vunpack.c.l.bf16 %v2377
    %v2410 = vunpack.c.l.bf16 %v2378
    %v2411 = vunpack.c.l.bf16 %v2379
    %v2412 = vunpack.c.l.bf16 %v2380
    %v2413 = vunpack.c.l.bf16 %v2381
    %v2414 = vunpack.c.l.bf16 %v2382
    %v2415 = vunpack.c.l.bf16 %v2383
    %v2416 = vunpack.c.l.bf16 %v2384
    %v2417 = vunpack.c.l.bf16 %v2385
    %v2418 = vunpack.c.l.bf16 %v2386
    %v2419 = vunpack.c.l.bf16 %v2387
    %v2420 = vunpack.c.l.bf16 %v2388
    %v2421 = vunpack.c.l.bf16 %v2389
    %v2422 = vunpack.c.l.bf16 %v2390
    %v2423 = vunpack.c.l.bf16 %v2391
    %v2424 = vunpack.c.l.bf16 %v2392
    %v2425 = vunpack.c.l.bf16 %v2393
    %v2426 = vunpack.c.l.bf16 %v2394
    %v2427 = vunpack.c.l.bf16 %v2395
    %v2428 = vunpack.c.l.bf16 %v2396
    %v2429 = vunpack.c.l.bf16 %v2397
    %v2430 = vunpack.c.l.bf16 %v2398
    %v2431 = vunpack.c.l.bf16 %v2399
    %v2432 = vunpack.c.l.bf16 %v2400
    %v2433 = vunpack.c.l.bf16 %v2401
    %s2434 = scalar_lea.vmem [#allocation12], 3
    %v2435 = vld [vmem:[%s2434] sm:$0x1]
    %v2437 = vlaneseq
    %v2438 = vshrl.u32 %v2437, 7
    %v2439 = vsub.s32 0, %v2438
    %v2440 = vrot.slane %v2435, %v2439
    %2442 = vmatprep.subr.mxu0 0.0
    %2443 = vmatpush1.msra.mxu0 %v2402
    %2444 = vmatprep.subr.mxu0 0.0
    %2445 = vmatpush1.msra.mxu0 %v2403
    %2446 = vmatprep.subr.mxu0 0.0
    %2447 = vmatpush1.msra.mxu0 %v2404
    %2448 = vmatprep.subr.mxu0 0.0
    %2449 = vmatpush1.msra.mxu0 %v2405
    %2450 = vmatprep.subr.mxu0 0.0
    %2451 = vmatpush1.msra.mxu0 %v2406
    %2452 = vmatprep.subr.mxu0 0.0
    %2453 = vmatpush1.msra.mxu0 %v2407
    %2454 = vmatprep.subr.mxu0 0.0
    %2455 = vmatpush1.msra.mxu0 %v2408
    %2456 = vmatprep.subr.mxu0 0.0
    %2457 = vmatpush1.msra.mxu0 %v2409
    %2458 = vmatprep.subr.mxu0 0.0
    %2459 = vmatpush1.msra.mxu0 %v2410
    %2460 = vmatprep.subr.mxu0 0.0
    %2461 = vmatpush1.msra.mxu0 %v2411
    %2462 = vmatprep.subr.mxu0 0.0
    %2463 = vmatpush1.msra.mxu0 %v2412
    %2464 = vmatprep.subr.mxu0 0.0
    %2465 = vmatpush1.msra.mxu0 %v2413
    %2466 = vmatprep.subr.mxu0 0.0
    %2467 = vmatpush1.msra.mxu0 %v2414
    %2468 = vmatprep.subr.mxu0 0.0
    %2469 = vmatpush1.msra.mxu0 %v2415
    %2470 = vmatprep.subr.mxu0 0.0
    %2471 = vmatpush1.msra.mxu0 %v2416
    %2472 = vmatprep.subr.mxu0 0.0
    %2473 = vmatpush1.msra.mxu0 %v2417
    %2474 = vmatprep.subr.mxu0 0.0
    %2475 = vmatpush1.msra.mxu0 %v2418
    %2476 = vmatprep.subr.mxu0 0.0
    %2477 = vmatpush1.msra.mxu0 %v2419
    %2478 = vmatprep.subr.mxu0 0.0
    %2479 = vmatpush1.msra.mxu0 %v2420
    %2480 = vmatprep.subr.mxu0 0.0
    %2481 = vmatpush1.msra.mxu0 %v2421
    %2482 = vmatprep.subr.mxu0 0.0
    %2483 = vmatpush1.msra.mxu0 %v2422
    %2484 = vmatprep.subr.mxu0 0.0
    %2485 = vmatpush1.msra.mxu0 %v2423
    %2486 = vmatprep.subr.mxu0 0.0
    %2487 = vmatpush1.msra.mxu0 %v2424
    %2488 = vmatprep.subr.mxu0 0.0
    %2489 = vmatpush1.msra.mxu0 %v2425
    %2490 = vmatprep.subr.mxu0 0.0
    %2491 = vmatpush1.msra.mxu0 %v2426
    %2492 = vmatprep.subr.mxu0 0.0
    %2493 = vmatpush1.msra.mxu0 %v2427
    %2494 = vmatprep.subr.mxu0 0.0
    %2495 = vmatpush1.msra.mxu0 %v2428
    %2496 = vmatprep.subr.mxu0 0.0
    %2497 = vmatpush1.msra.mxu0 %v2429
    %2498 = vmatprep.subr.mxu0 0.0
    %2499 = vmatpush1.msra.mxu0 %v2430
    %2500 = vmatprep.subr.mxu0 0.0
    %2501 = vmatpush1.msra.mxu0 %v2431
    %2502 = vmatprep.subr.mxu0 0.0
    %2503 = vmatpush1.msra.mxu0 %v2432
    %2504 = vmatprep.subr.mxu0 0.0
    %2505 = vmatpush1.msra.mxu0 %v2433
    %2506 = vmatprep.mubr.f32.mxu0 %v2368
    %2507 = vmatmul.mubr.f32.gmra.mrb[0].mxu0 %v2367
    %v2508 = vpop.f32.mrb[0].mxu0
    %v2509 = vadd.f32 %v2440, %v2508
    %v2510 = vpop.f32.mrb[0].mxu0
    %2511 = vdwg.mxu0
    %v2512 = vadd.f32 %v2233, %v2509
    %s2513 = scalar_lea.vmem [#allocation13], 3
    %v2514 = vld [vmem:[%s2513] sm:$0x1]
    %s2515 = scalar_lea.vmem [#allocation15], 3
    %v2516 = vld [vmem:[%s2515] sm:$0x1]
    %2517 = vadd.xlane.f32.xlu0 %v2512
    %v2518 = vpop.xlane.xlu0 %2517
    %v2519 = vmul.f32 %v2518, %v603
    %v2520 = vmul.f32 %v2512, %v2512
    %2521 = vadd.xlane.f32.xlu0 %v2520
    %v2522 = vpop.xlane.xlu0 %2521
    %v2523 = vmul.f32 %v2522, %v603
    %v2524 = vmul.f32 %v2519, %v2519
    %v2525 = vsub.f32 %v2523, %v2524
    %v2526 = vsub.f32 %v2512, %v2519
    %v2527 = vadd.f32 %v2525, 1e-05
    %v2528 = vrsqrt.pop %v2527
    %v2529 = vmul.f32 %v2526, %v2528
    %v2531 = vlaneseq
    %v2532 = vshrl.u32 %v2531, 7
    %v2533 = vsub.s32 0, %v2532
    %v2534 = vrot.slane %v2514, %v2533
    %v2536 = vmul.f32 %v2529, %v2534
    %v2538 = vlaneseq
    %v2539 = vshrl.u32 %v2538, 7
    %v2540 = vsub.s32 0, %v2539
    %v2541 = vrot.slane %v2516, %v2540
    %v2543 = vadd.f32 %v2536, %v2541
    %v2544 = vld [vmem:[#allocation19] sm:$0xf]
    %v2545 = vld [vmem:[#allocation19 + $0x4] sm:$0xf]
    %v2546 = vld [vmem:[#allocation19 + $0x8] sm:$0xf]
    %v2547 = vld [vmem:[#allocation19 + $0xc] sm:$0xf]
    %v2548 = vld [vmem:[#allocation19 + $0x10] sm:$0xf]
    %v2549 = vld [vmem:[#allocation19 + $0x14] sm:$0xf]
    %v2550 = vld [vmem:[#allocation19 + $0x18] sm:$0xf]
    %v2551 = vld [vmem:[#allocation19 + $0x1c] sm:$0xf]
    %v2552 = vld [vmem:[#allocation19 + $0x20] sm:$0xf]
    %v2553 = vld [vmem:[#allocation19 + $0x24] sm:$0xf]
    %v2554 = vld [vmem:[#allocation19 + $0x28] sm:$0xf]
    %v2555 = vld [vmem:[#allocation19 + $0x2c] sm:$0xf]
    %v2556 = vld [vmem:[#allocation19 + $0x30] sm:$0xf]
    %v2557 = vld [vmem:[#allocation19 + $0x34] sm:$0xf]
    %v2558 = vld [vmem:[#allocation19 + $0x38] sm:$0xf]
    %v2559 = vld [vmem:[#allocation19 + $0x3c] sm:$0xf]
    %v2560 = vunpack.c.l.bf16 %v2544
    %v2561 = vunpack.c.l.bf16 %v2545
    %v2562 = vunpack.c.l.bf16 %v2546
    %v2563 = vunpack.c.l.bf16 %v2547
    %v2564 = vunpack.c.l.bf16 %v2548
    %v2565 = vunpack.c.l.bf16 %v2549
    %v2566 = vunpack.c.l.bf16 %v2550
    %v2567 = vunpack.c.l.bf16 %v2551
    %v2568 = vunpack.c.l.bf16 %v2552
    %v2569 = vunpack.c.l.bf16 %v2553
    %v2570 = vunpack.c.l.bf16 %v2554
    %v2571 = vunpack.c.l.bf16 %v2555
    %v2572 = vunpack.c.l.bf16 %v2556
    %v2573 = vunpack.c.l.bf16 %v2557
    %v2574 = vunpack.c.l.bf16 %v2558
    %v2575 = vunpack.c.l.bf16 %v2559
    %v2576 = vld [vmem:[%s22] sm:$0x1]
    %v2578 = vlaneseq
    %v2579 = vshrl.u32 %v2578, 7
    %v2580 = vsub.s32 0, %v2579
    %v2581 = vrot.slane %v2576, %v2580
    %2583 = vmatprep.subr.mxu0 0.0
    %2584 = vmatpush1.msra.mxu0 %v2560
    %2585 = vmatprep.subr.mxu0 0.0
    %2586 = vmatpush1.msra.mxu0 %v2561
    %2587 = vmatprep.subr.mxu0 0.0
    %2588 = vmatpush1.msra.mxu0 %v2562
    %2589 = vmatprep.subr.mxu0 0.0
    %2590 = vmatpush1.msra.mxu0 %v2563
    %2591 = vmatprep.subr.mxu0 0.0
    %2592 = vmatpush1.msra.mxu0 %v2564
    %2593 = vmatprep.subr.mxu0 0.0
    %2594 = vmatpush1.msra.mxu0 %v2565
    %2595 = vmatprep.subr.mxu0 0.0
    %2596 = vmatpush1.msra.mxu0 %v2566
    %2597 = vmatprep.subr.mxu0 0.0
    %2598 = vmatpush1.msra.mxu0 %v2567
    %2599 = vmatprep.subr.mxu0 0.0
    %2600 = vmatpush1.msra.mxu0 %v2568
    %2601 = vmatprep.subr.mxu0 0.0
    %2602 = vmatpush1.msra.mxu0 %v2569
    %2603 = vmatprep.subr.mxu0 0.0
    %2604 = vmatpush1.msra.mxu0 %v2570
    %2605 = vmatprep.subr.mxu0 0.0
    %2606 = vmatpush1.msra.mxu0 %v2571
    %2607 = vmatprep.subr.mxu0 0.0
    %2608 = vmatpush1.msra.mxu0 %v2572
    %2609 = vmatprep.subr.mxu0 0.0
    %2610 = vmatpush1.msra.mxu0 %v2573
    %2611 = vmatprep.subr.mxu0 0.0
    %2612 = vmatpush1.msra.mxu0 %v2574
    %2613 = vmatprep.subr.mxu0 0.0
    %2614 = vmatpush1.msra.mxu0 %v2575
    %2615 = vmatprep.subr.mxu0 0.0
    %2616 = vmatpush1.msra.mxu0 0.0
    %2617 = vmatprep.subr.mxu0 0.0
    %2618 = vmatpush1.msra.mxu0 0.0
    %2619 = vmatprep.subr.mxu0 0.0
    %2620 = vmatpush1.msra.mxu0 0.0
    %2621 = vmatprep.subr.mxu0 0.0
    %2622 = vmatpush1.msra.mxu0 0.0
    %2623 = vmatprep.subr.mxu0 0.0
    %2624 = vmatpush1.msra.mxu0 0.0
    %2625 = vmatprep.subr.mxu0 0.0
    %2626 = vmatpush1.msra.mxu0 0.0
    %2627 = vmatprep.subr.mxu0 0.0
    %2628 = vmatpush1.msra.mxu0 0.0
    %2629 = vmatprep.subr.mxu0 0.0
    %2630 = vmatpush1.msra.mxu0 0.0
    %2631 = vmatprep.subr.mxu0 0.0
    %2632 = vmatpush1.msra.mxu0 0.0
    %2633 = vmatprep.subr.mxu0 0.0
    %2634 = vmatpush1.msra.mxu0 0.0
    %2635 = vmatprep.subr.mxu0 0.0
    %2636 = vmatpush1.msra.mxu0 0.0
    %2637 = vmatprep.subr.mxu0 0.0
    %2638 = vmatpush1.msra.mxu0 0.0
    %2639 = vmatprep.subr.mxu0 0.0
    %2640 = vmatpush1.msra.mxu0 0.0
    %2641 = vmatprep.subr.mxu0 0.0
    %2642 = vmatpush1.msra.mxu0 0.0
    %2643 = vmatprep.subr.mxu0 0.0
    %2644 = vmatpush1.msra.mxu0 0.0
    %2645 = vmatprep.subr.mxu0 0.0
    %2646 = vmatpush1.msra.mxu0 0.0
    %2647 = vmatprep.mubr.f32.mxu0 0.0
    %2648 = vmatmul.mubr.f32.gmra.mrb[0].mxu0 %v2543
    %v2649 = vpop.f32.mrb[0].mxu0
    %v2650 = vadd.f32 %v2581, %v2649
    %v2651 = vpop.f32.mrb[0].mxu0
    %2652 = vdwg.mxu0
    %2653 = vst [vmem:[%s23] sm:$0xff] %v2650
    // Predicated region
    $region142: #{vae_forward.1} parent=1 // pred_check
      _
    $region143: #{vae_forward.1} parent=1 // pred_check_branch
      %2655 = sbr.rel (0) target = $region145
    $region144: #{vae_forward.1} parent=1 // pred_region
      _
    $region145: #{vae_forward.1} parent=1 // pred_fallthru
      _
    // Predicated region
    $region146: #{vae_forward.1} parent=1 // pred_check
      _
    $region147: #{vae_forward.1} parent=1 // pred_check_branch
      %2657 = sbr.rel (0) target = $region149
    $region148: #{vae_forward.1} parent=1 // pred_region
      _
    $region149: #{vae_forward.1} parent=1 // pred_fallthru
      _
    // Predicated region
    $region150: #{vae_forward.1} parent=1 // pred_check
      _
    $region151: #{vae_forward.1} parent=1 // pred_check_branch
      %2659 = sbr.rel (0) target = $region153
    $region152: #{vae_forward.1} parent=1 // pred_region
      _
    $region153: #{vae_forward.1} parent=1 // pred_fallthru
      _
    // Predicated region
    $region154: #{vae_forward.1} parent=1 // pred_check
      _
    $region155: #{vae_forward.1} parent=1 // pred_check_branch
      %2661 = sbr.rel (0) target = $region157
    $region156: #{vae_forward.1} parent=1 // pred_region
      _
    $region157: #{vae_forward.1} parent=1 // pred_fallthru
      _
    // Predicated region
    $region158: #{vae_forward.1} parent=1 // pred_check
      _
    $region159: #{vae_forward.1} parent=1 // pred_check_branch
      %2663 = sbr.rel (0) target = $region161
    $region160: #{vae_forward.1} parent=1 // pred_region
      _
    $region161: #{vae_forward.1} parent=1 // pred_fallthru
      _
    // Predicated region
    $region162: #{vae_forward.1} parent=1 // pred_check
      _
    $region163: #{vae_forward.1} parent=1 // pred_check_branch
      %2665 = sbr.rel (0) target = $region165
    $region164: #{vae_forward.1} parent=1 // pred_region
      _
    $region165: #{vae_forward.1} parent=1 // pred_fallthru
      _
    %2666 = vsyncpa [#allocation3], 1
    %2667 = vsyncpa [#allocation5], 1
    %2668 = vsyncpa [#allocation8], 1
    %2669 = vsyncpa [#allocation11], 1
    %2670 = vsyncpa [#allocation14], 1
    %2671 = vsyncpa [#allocation17], 1
    %2672 = vsyncpa [#allocation20], 1

</llo_original>
